<compile_context>
chip_gen: v7x
topology: tpu7x:2x2x1
jax: 0.10.0
libtpu: 0.0.40
codegen_flags: <defaults>
</compile_context>

<pallas_src>
import functools

import jax
import jax.numpy as jnp
from jax import lax
from jax.experimental import pallas as pl
from jax.experimental.pallas import tpu as pltpu


def _pick_tile(total, preferred):
    """Largest multiple-of-8 divisor of `total` that is <= preferred."""
    best = None
    for t in range(8, min(total, preferred) + 1, 8):
        if total % t == 0:
            best = t
    return best if best is not None else total


# ---------------------------------------------------------------------------
# Kernel A: 3x3 conv (stride 1, pad 1, no bias) on one (TH, W) row tile,
#           plus per-tile BatchNorm partial sums (sum, sum of squares).
# ---------------------------------------------------------------------------
def _conv_stats_kernel(x_mid_ref, x_top_ref, x_bot_ref, w_ref,
                       out_ref, stats_ref, xp_ref, acc_ref,
                       *, TH, W, Cin, Cout):
    h = pl.program_id(1)
    nh = pl.num_programs(1)

    # Assemble the zero-padded (TH+2, W+2, Cin) input tile in VMEM scratch.
    # Halo rows come from dedicated 1-row blocks of the neighbouring tiles;
    # they are left zero at the image top/bottom boundary (padding = 1).
    xp_ref[...] = jnp.zeros_like(xp_ref)
    xp_ref[1:TH + 1, 1:W + 1, :] = x_mid_ref[0]

    @pl.when(h > 0)
    def _():
        xp_ref[0:1, 1:W + 1, :] = x_top_ref[0]

    @pl.when(h < nh - 1)
    def _():
        xp_ref[TH + 1:TH + 2, 1:W + 1, :] = x_bot_ref[0]

    # 3x3 conv: 9 shifted (TH*W, Cin) x (Cin, Cout) MXU matmuls accumulated
    # in an explicit f32 VMEM scratch accumulator.
    acc_ref[...] = jnp.zeros_like(acc_ref)
    for kh in range(3):
        for kw in range(3):
            patch = xp_ref[kh:kh + TH, kw:kw + W, :]          # (TH, W, Cin)
            acc_ref[...] += jnp.dot(patch.reshape(TH * W, Cin),
                                    w_ref[kh, kw],
                                    preferred_element_type=jnp.float32)

    acc = acc_ref[...]                                        # (TH*W, Cout) f32

    # Per-tile BatchNorm partial sums; combined across tiles outside the kernel.
    stats_ref[0, 0:1, :] = jnp.sum(acc, axis=0, keepdims=True)
    stats_ref[0, 1:2, :] = jnp.sum(acc * acc, axis=0, keepdims=True)

    out_ref[0] = acc


# ---------------------------------------------------------------------------
# Kernel B: per-channel affine (BN scale/bias) + ReLU over a lane-dense
#           (rows, W*Cout) view of the conv output.
# ---------------------------------------------------------------------------
def _bn_relu_kernel(y_ref, scale_ref, bias_ref, o_ref):
    o_ref[...] = jnp.maximum(
        y_ref[...] * scale_ref[...] + bias_ref[...], 0.0).astype(o_ref.dtype)


@functools.partial(jax.jit,
                   static_argnames=("batch_norm", "eps", "block_h",
                                    "block_rows"))
def block_forward(x_nchw, w_oihw, gamma, beta, *, batch_norm=True, eps=1e-5,
                  block_h=None, block_rows=None):
    """Forward pass of `Block`; input/output are NCHW (PyTorch convention)."""
    N, Cin, H, W = x_nchw.shape
    Cout = w_oihw.shape[0]

    TH = block_h if block_h is not None else _pick_tile(H, 64)
    assert H % TH == 0, "row tile must divide H"
    NHT = H // TH

    # Layout glue (would disappear if the surrounding model were NHWC).
    x_nhwc = jnp.transpose(x_nchw, (0, 2, 3, 1))              # (N, H, W, Cin)
    w_hwio = jnp.transpose(w_oihw, (2, 3, 1, 0))              # (3, 3, Cin, Cout)

    kernel_a = functools.partial(_conv_stats_kernel,
                                 TH=TH, W=W, Cin=Cin, Cout=Cout)

    conv_flops = 2 * N * H * W * 9 * Cin * Cout
    conv_bytes = 4 * (N * H * W * (Cin + Cout) + 9 * Cin * Cout
                      + N * NHT * 2 * Cout)

    conv, stats = pl.pallas_call(
        kernel_a,
        grid=(N, NHT),
        in_specs=[
            # main row tile
            pl.BlockSpec((1, TH, W, Cin), lambda n, h: (n, h, 0, 0)),
            # 1-row halo blocks from the neighbouring tiles (clamped at the
            # image edges; zeroed inside the kernel at the boundary)
            pl.BlockSpec((1, 1, W, Cin),
                         lambda n, h: (n, jnp.maximum(h * TH - 1, 0), 0, 0)),
            pl.BlockSpec((1, 1, W, Cin),
                         lambda n, h: (n, jnp.minimum(h * TH + TH, H - 1), 0, 0)),
            # weights, resident across the grid
            pl.BlockSpec((3, 3, Cin, Cout), lambda n, h: (0, 0, 0, 0)),
        ],
        out_specs=(
            pl.BlockSpec((1, TH * W, Cout), lambda n, h: (n * NHT + h, 0, 0)),
            pl.BlockSpec((1, 2, Cout), lambda n, h: (n * NHT + h, 0, 0)),
        ),
        out_shape=(
            jax.ShapeDtypeStruct((N * NHT, TH * W, Cout), jnp.float32),
            jax.ShapeDtypeStruct((N * NHT, 2, Cout), jnp.float32),
        ),
        scratch_shapes=[
            pltpu.VMEM((TH + 2, W + 2, Cin), x_nhwc.dtype),   # padded tile
            pltpu.VMEM((TH * W, Cout), jnp.float32),          # f32 accumulator
        ],
        compiler_params=pltpu.CompilerParams(
            dimension_semantics=("parallel", "parallel"),
            vmem_limit_bytes=32 * 1024 * 1024),
        cost_estimate=pl.CostEstimate(flops=conv_flops, transcendentals=0,
                                      bytes_accessed=conv_bytes),
    )(x_nhwc, x_nhwc, x_nhwc, w_hwio)

    # ---- finalize BatchNorm statistics (tiny (2, Cout) reduction).
    if batch_norm:
        s = jnp.sum(stats, axis=0)                            # (2, Cout)
        count = jnp.float32(N * H * W)
        mean = s[0] / count
        var = jnp.maximum(s[1] / count - mean * mean, 0.0)    # biased variance
        inv = lax.rsqrt(var + eps)
        scale = gamma.astype(jnp.float32) * inv
        bias = beta.astype(jnp.float32) - mean * scale
    else:
        scale = jnp.ones((Cout,), jnp.float32)
        bias = jnp.zeros((Cout,), jnp.float32)
    # TODO(synk): BatchNorm2d's running_mean/running_var update (training-time
    # side effect) is not modeled; only the forward output is produced.

    # ---- BN affine + ReLU over a lane-dense (rows, W*Cout) slab.
    WC = W * Cout
    y2d = conv.reshape(N * H, WC)        # row-major merge: no data movement
    scale_wc = jnp.tile(scale, W).reshape(1, WC)
    bias_wc = jnp.tile(bias, W).reshape(1, WC)

    TB = block_rows if block_rows is not None else _pick_tile(N * H, 256)
    assert (N * H) % TB == 0

    out2d = pl.pallas_call(
        _bn_relu_kernel,
        grid=((N * H) // TB,),
        in_specs=[
            pl.BlockSpec((TB, WC), lambda i: (i, 0)),
            pl.BlockSpec((1, WC), lambda i: (0, 0)),
            pl.BlockSpec((1, WC), lambda i: (0, 0)),
        ],
        out_specs=pl.BlockSpec((TB, WC), lambda i: (i, 0)),
        out_shape=jax.ShapeDtypeStruct((N * H, WC), jnp.float32),
        compiler_params=pltpu.CompilerParams(
            dimension_semantics=("parallel",),
            vmem_limit_bytes=32 * 1024 * 1024),
        cost_estimate=pl.CostEstimate(flops=2 * N * H * WC, transcendentals=0,
                                      bytes_accessed=4 * 2 * N * H * WC),
    )(y2d, scale_wc, bias_wc)

    out_nhwc = out2d.reshape(N, H, W, Cout)
    return jnp.transpose(out_nhwc, (0, 3, 1, 2))              # back to NCHW


def _reference(x_nchw, w_oihw, gamma, beta, *, batch_norm=True, eps=1e-5):
    out = lax.conv_general_dilated(
        x_nchw.astype(jnp.float32), w_oihw.astype(jnp.float32),
        window_strides=(1, 1), padding=((1, 1), (1, 1)),
        dimension_numbers=("NCHW", "OIHW", "NCHW"))
    if batch_norm:
        mean = out.mean(axis=(0, 2, 3), keepdims=True)
        var = out.var(axis=(0, 2, 3), keepdims=True)          # biased
        out = (out - mean) * lax.rsqrt(var + eps)
        out = out * gamma.reshape(1, -1, 1, 1) + beta.reshape(1, -1, 1, 1)
    return jnp.maximum(out, 0.0)


if __name__ == "__main__":
    # Small deterministic setup consistent with the module.
    N, Cin, H, W = 2, 4, 16, 16
    Cout = 8
    batch_norm = True

    key = jax.random.PRNGKey(0)
    kx, kw = jax.random.split(key)
    x = jax.random.normal(kx, (N, Cin, H, W), dtype=jnp.float32)
    conv_w = 0.1 * jax.random.normal(kw, (Cout, Cin, 3, 3), dtype=jnp.float32)
    gamma = 1.0 + 0.05 * jnp.arange(Cout, dtype=jnp.float32)
    beta = 0.02 * jnp.arange(Cout, dtype=jnp.float32)

    # block_h=8 -> 2 row tiles per image: exercises the cross-tile halo path.
    out = block_forward(x, conv_w, gamma, beta, batch_norm=batch_norm,
                        block_h=8, block_rows=8)
    out = jax.block_until_ready(out)

    ref = _reference(x, conv_w, gamma, beta, batch_norm=batch_norm)
    assert out.shape == (N, Cout, H, W)
    err = jnp.max(jnp.abs(out - ref))
    assert jnp.allclose(out, ref, rtol=1e-4, atol=1e-4), f"max abs err = {err}"

    print("KERNEL_OK")
</pallas_src>

<mosaic_0001>
module attributes {stable_mosaic.version = 11 : i64} {
  func.func @_conv_stats_kernel(%arg0: i32, %arg1: i32, %arg2: memref<1x8x16x4xf32, #tpu.memory_space<vmem>>, %arg3: memref<1x1x16x4xf32, #tpu.memory_space<vmem>>, %arg4: memref<1x1x16x4xf32, #tpu.memory_space<vmem>>, %arg5: memref<3x3x4x8xf32, #tpu.memory_space<vmem>>, %arg6: memref<1x128x8xf32, #tpu.memory_space<vmem>>, %arg7: memref<1x2x8xf32, #tpu.memory_space<vmem>>, %arg8: memref<10x18x4xf32, #tpu.memory_space<vmem>>, %arg9: memref<128x8xf32, #tpu.memory_space<vmem>>) attributes {dimension_semantics = [#tpu.dimension_semantics<parallel>, #tpu.dimension_semantics<parallel>], iteration_bounds = array<i64: 2, 2>, scalar_prefetch = 0 : i64, scratch_operands = 2 : i64, tpu.core_type = #tpu.core_type<tc>, window_params = [{transform_indices = @transform_0, window_bounds = array<i64: 1, 8, 16, 4>}, {transform_indices = @transform_1, window_bounds = array<i64: 1, 1, 16, 4>}, {transform_indices = @transform_2, window_bounds = array<i64: 1, 1, 16, 4>}, {pipeline_mode = #tpu.pipeline_mode<synchronous>, transform_indices = @transform_3, window_bounds = array<i64: 3, 3, 4, 8>}, {transform_indices = @transform_4, window_bounds = array<i64: 1, 128, 8>}, {transform_indices = @transform_5, window_bounds = array<i64: 1, 2, 8>}]} {
    %cst = arith.constant 0.000000e+00 : f32
    %0 = vector.broadcast %cst : f32 to vector<10x18x4xf32>
    %c0 = arith.constant 0 : index
    %c0_0 = arith.constant 0 : index
    %c0_1 = arith.constant 0 : index
    %1 = vector.load %arg8[%c0, %c0_0, %c0_1] : memref<10x18x4xf32, #tpu.memory_space<vmem>>, vector<10x18x4xf32>
    tpu.vector_store %arg8[%c0, %c0_0, %c0_1], %0 {strides = array<i32>} : memref<10x18x4xf32, #tpu.memory_space<vmem>>, vector<10x18x4xf32>,
    %c0_2 = arith.constant 0 : index
    %c0_3 = arith.constant 0 : index
    %c0_4 = arith.constant 0 : index
    %c0_5 = arith.constant 0 : index
    %2 = vector.load %arg2[%c0_2, %c0_3, %c0_4, %c0_5] : memref<1x8x16x4xf32, #tpu.memory_space<vmem>>, vector<1x8x16x4xf32>
    %3 = vector.shape_cast %2 : vector<1x8x16x4xf32> to vector<8x16x4xf32>
    %c1 = arith.constant 1 : index
    %c1_6 = arith.constant 1 : index
    %c0_7 = arith.constant 0 : index
    %4 = vector.load %arg8[%c1, %c1_6, %c0_7] : memref<10x18x4xf32, #tpu.memory_space<vmem>>, vector<8x16x4xf32>
    tpu.vector_store %arg8[%c1, %c1_6, %c0_7], %3 {strides = array<i32>} : memref<10x18x4xf32, #tpu.memory_space<vmem>>, vector<8x16x4xf32>,
    %c0_i32 = arith.constant 0 : i32
    %5 = arith.cmpi sgt, %arg1, %c0_i32 : i32
    %6 = arith.extui %5 : i1 to i32
    %c0_i32_8 = arith.constant 0 : i32
    %7 = arith.cmpi ne, %6, %c0_i32_8 : i32
    scf.if %7 {
      %c0_133 = arith.constant 0 : index
      %c0_134 = arith.constant 0 : index
      %c0_135 = arith.constant 0 : index
      %c0_136 = arith.constant 0 : index
      %100 = vector.load %arg3[%c0_133, %c0_134, %c0_135, %c0_136] : memref<1x1x16x4xf32, #tpu.memory_space<vmem>>, vector<1x1x16x4xf32>
      %101 = vector.shape_cast %100 : vector<1x1x16x4xf32> to vector<1x16x4xf32>
      %c0_137 = arith.constant 0 : index
      %c1_138 = arith.constant 1 : index
      %c0_139 = arith.constant 0 : index
      %102 = vector.load %arg8[%c0_137, %c1_138, %c0_139] : memref<10x18x4xf32, #tpu.memory_space<vmem>>, vector<1x16x4xf32>
      tpu.vector_store %arg8[%c0_137, %c1_138, %c0_139], %101 {strides = array<i32>} : memref<10x18x4xf32, #tpu.memory_space<vmem>>, vector<1x16x4xf32>,
    } else {
    }
    %c1_i32 = arith.constant 1 : i32
    %8 = arith.cmpi slt, %arg1, %c1_i32 : i32
    %9 = arith.extui %8 : i1 to i32
    %c0_i32_9 = arith.constant 0 : i32
    %10 = arith.cmpi ne, %9, %c0_i32_9 : i32
    scf.if %10 {
      %c0_133 = arith.constant 0 : index
      %c0_134 = arith.constant 0 : index
      %c0_135 = arith.constant 0 : index
      %c0_136 = arith.constant 0 : index
      %100 = vector.load %arg4[%c0_133, %c0_134, %c0_135, %c0_136] : memref<1x1x16x4xf32, #tpu.memory_space<vmem>>, vector<1x1x16x4xf32>
      %101 = vector.shape_cast %100 : vector<1x1x16x4xf32> to vector<1x16x4xf32>
      %c9 = arith.constant 9 : index
      %c1_137 = arith.constant 1 : index
      %c0_138 = arith.constant 0 : index
      %102 = vector.load %arg8[%c9, %c1_137, %c0_138] : memref<10x18x4xf32, #tpu.memory_space<vmem>>, vector<1x16x4xf32>
      tpu.vector_store %arg8[%c9, %c1_137, %c0_138], %101 {strides = array<i32>} : memref<10x18x4xf32, #tpu.memory_space<vmem>>, vector<1x16x4xf32>,
    } else {
    }
    %cst_10 = arith.constant 0.000000e+00 : f32
    %11 = vector.broadcast %cst_10 : f32 to vector<128x8xf32>
    %c0_11 = arith.constant 0 : index
    %c0_12 = arith.constant 0 : index
    %12 = vector.load %arg9[%c0_11, %c0_12] : memref<128x8xf32, #tpu.memory_space<vmem>>, vector<128x8xf32>
    tpu.vector_store %arg9[%c0_11, %c0_12], %11 {strides = array<i32>} : memref<128x8xf32, #tpu.memory_space<vmem>>, vector<128x8xf32>,
    %c0_13 = arith.constant 0 : index
    %c0_14 = arith.constant 0 : index
    %c0_15 = arith.constant 0 : index
    %13 = vector.load %arg8[%c0_13, %c0_14, %c0_15] : memref<10x18x4xf32, #tpu.memory_space<vmem>>, vector<8x16x4xf32>
    %c0_16 = arith.constant 0 : index
    %c0_17 = arith.constant 0 : index
    %14 = vector.load %arg9[%c0_16, %c0_17] : memref<128x8xf32, #tpu.memory_space<vmem>>, vector<128x8xf32>
    %15 = vector.shape_cast %13 : vector<8x16x4xf32> to vector<128x4xf32>
    %c0_18 = arith.constant 0 : index
    %c0_19 = arith.constant 0 : index
    %c0_20 = arith.constant 0 : index
    %c0_21 = arith.constant 0 : index
    %16 = vector.load %arg5[%c0_18, %c0_19, %c0_20, %c0_21] : memref<3x3x4x8xf32, #tpu.memory_space<vmem>>, vector<1x1x4x8xf32>
    %17 = vector.shape_cast %16 : vector<1x1x4x8xf32> to vector<4x8xf32>
    %cst_22 = arith.constant dense<0.000000e+00> : vector<128x8xf32>
    %18 = tpu.matmul %15, %17, %cst_22 {dimension_numbers = #tpu.dot_dimension_numbers<[1], [0], [0], [1], [0, 0, 1, 1], [], []>} : vector<128x4xf32>, vector<4x8xf32>, vector<128x8xf32> -> vector<128x8xf32>
    %19 = arith.addf %14, %18 : vector<128x8xf32>
    %c0_23 = arith.constant 0 : index
    %c0_24 = arith.constant 0 : index
    %20 = vector.load %arg9[%c0_23, %c0_24] : memref<128x8xf32, #tpu.memory_space<vmem>>, vector<128x8xf32>
    tpu.vector_store %arg9[%c0_23, %c0_24], %19 {strides = array<i32>} : memref<128x8xf32, #tpu.memory_space<vmem>>, vector<128x8xf32>,
    %c0_25 = arith.constant 0 : index
    %c1_26 = arith.constant 1 : index
    %c0_27 = arith.constant 0 : index
    %21 = vector.load %arg8[%c0_25, %c1_26, %c0_27] : memref<10x18x4xf32, #tpu.memory_space<vmem>>, vector<8x16x4xf32>
    %c0_28 = arith.constant 0 : index
    %c0_29 = arith.constant 0 : index
    %22 = vector.load %arg9[%c0_28, %c0_29] : memref<128x8xf32, #tpu.memory_space<vmem>>, vector<128x8xf32>
    %23 = vector.shape_cast %21 : vector<8x16x4xf32> to vector<128x4xf32>
    %c0_30 = arith.constant 0 : index
    %c1_31 = arith.constant 1 : index
    %c0_32 = arith.constant 0 : index
    %c0_33 = arith.constant 0 : index
    %24 = vector.load %arg5[%c0_30, %c1_31, %c0_32, %c0_33] : memref<3x3x4x8xf32, #tpu.memory_space<vmem>>, vector<1x1x4x8xf32>
    %25 = vector.shape_cast %24 : vector<1x1x4x8xf32> to vector<4x8xf32>
    %cst_34 = arith.constant dense<0.000000e+00> : vector<128x8xf32>
    %26 = tpu.matmul %23, %25, %cst_34 {dimension_numbers = #tpu.dot_dimension_numbers<[1], [0], [0], [1], [0, 0, 1, 1], [], []>} : vector<128x4xf32>, vector<4x8xf32>, vector<128x8xf32> -> vector<128x8xf32>
    %27 = arith.addf %22, %26 : vector<128x8xf32>
    %c0_35 = arith.constant 0 : index
    %c0_36 = arith.constant 0 : index
    %28 = vector.load %arg9[%c0_35, %c0_36] : memref<128x8xf32, #tpu.memory_space<vmem>>, vector<128x8xf32>
    tpu.vector_store %arg9[%c0_35, %c0_36], %27 {strides = array<i32>} : memref<128x8xf32, #tpu.memory_space<vmem>>, vector<128x8xf32>,
    %c0_37 = arith.constant 0 : index
    %c2 = arith.constant 2 : index
    %c0_38 = arith.constant 0 : index
    %29 = vector.load %arg8[%c0_37, %c2, %c0_38] : memref<10x18x4xf32, #tpu.memory_space<vmem>>, vector<8x16x4xf32>
    %c0_39 = arith.constant 0 : index
    %c0_40 = arith.constant 0 : index
    %30 = vector.load %arg9[%c0_39, %c0_40] : memref<128x8xf32, #tpu.memory_space<vmem>>, vector<128x8xf32>
    %31 = vector.shape_cast %29 : vector<8x16x4xf32> to vector<128x4xf32>
    %c0_41 = arith.constant 0 : index
    %c2_42 = arith.constant 2 : index
    %c0_43 = arith.constant 0 : index
    %c0_44 = arith.constant 0 : index
    %32 = vector.load %arg5[%c0_41, %c2_42, %c0_43, %c0_44] : memref<3x3x4x8xf32, #tpu.memory_space<vmem>>, vector<1x1x4x8xf32>
    %33 = vector.shape_cast %32 : vector<1x1x4x8xf32> to vector<4x8xf32>
    %cst_45 = arith.constant dense<0.000000e+00> : vector<128x8xf32>
    %34 = tpu.matmul %31, %33, %cst_45 {dimension_numbers = #tpu.dot_dimension_numbers<[1], [0], [0], [1], [0, 0, 1, 1], [], []>} : vector<128x4xf32>, vector<4x8xf32>, vector<128x8xf32> -> vector<128x8xf32>
    %35 = arith.addf %30, %34 : vector<128x8xf32>
    %c0_46 = arith.constant 0 : index
    %c0_47 = arith.constant 0 : index
    %36 = vector.load %arg9[%c0_46, %c0_47] : memref<128x8xf32, #tpu.memory_space<vmem>>, vector<128x8xf32>
    tpu.vector_store %arg9[%c0_46, %c0_47], %35 {strides = array<i32>} : memref<128x8xf32, #tpu.memory_space<vmem>>, vector<128x8xf32>,
    %c1_48 = arith.constant 1 : index
    %c0_49 = arith.constant 0 : index
    %c0_50 = arith.constant 0 : index
    %37 = vector.load %arg8[%c1_48, %c0_49, %c0_50] : memref<10x18x4xf32, #tpu.memory_space<vmem>>, vector<8x16x4xf32>
    %c0_51 = arith.constant 0 : index
    %c0_52 = arith.constant 0 : index
    %38 = vector.load %arg9[%c0_51, %c0_52] : memref<128x8xf32, #tpu.memory_space<vmem>>, vector<128x8xf32>
    %39 = vector.shape_cast %37 : vector<8x16x4xf32> to vector<128x4xf32>
    %c1_53 = arith.constant 1 : index
    %c0_54 = arith.constant 0 : index
    %c0_55 = arith.constant 0 : index
    %c0_56 = arith.constant 0 : index
    %40 = vector.load %arg5[%c1_53, %c0_54, %c0_55, %c0_56] : memref<3x3x4x8xf32, #tpu.memory_space<vmem>>, vector<1x1x4x8xf32>
    %41 = vector.shape_cast %40 : vector<1x1x4x8xf32> to vector<4x8xf32>
    %cst_57 = arith.constant dense<0.000000e+00> : vector<128x8xf32>
    %42 = tpu.matmul %39, %41, %cst_57 {dimension_numbers = #tpu.dot_dimension_numbers<[1], [0], [0], [1], [0, 0, 1, 1], [], []>} : vector<128x4xf32>, vector<4x8xf32>, vector<128x8xf32> -> vector<128x8xf32>
    %43 = arith.addf %38, %42 : vector<128x8xf32>
    %c0_58 = arith.constant 0 : index
    %c0_59 = arith.constant 0 : index
    %44 = vector.load %arg9[%c0_58, %c0_59] : memref<128x8xf32, #tpu.memory_space<vmem>>, vector<128x8xf32>
    tpu.vector_store %arg9[%c0_58, %c0_59], %43 {strides = array<i32>} : memref<128x8xf32, #tpu.memory_space<vmem>>, vector<128x8xf32>,
    %c1_60 = arith.constant 1 : index
    %c1_61 = arith.constant 1 : index
    %c0_62 = arith.constant 0 : index
    %45 = vector.load %arg8[%c1_60, %c1_61, %c0_62] : memref<10x18x4xf32, #tpu.memory_space<vmem>>, vector<8x16x4xf32>
    %c0_63 = arith.constant 0 : index
    %c0_64 = arith.constant 0 : index
    %46 = vector.load %arg9[%c0_63, %c0_64] : memref<128x8xf32, #tpu.memory_space<vmem>>, vector<128x8xf32>
    %47 = vector.shape_cast %45 : vector<8x16x4xf32> to vector<128x4xf32>
    %c1_65 = arith.constant 1 : index
    %c1_66 = arith.constant 1 : index
    %c0_67 = arith.constant 0 : index
    %c0_68 = arith.constant 0 : index
    %48 = vector.load %arg5[%c1_65, %c1_66, %c0_67, %c0_68] : memref<3x3x4x8xf32, #tpu.memory_space<vmem>>, vector<1x1x4x8xf32>
    %49 = vector.shape_cast %48 : vector<1x1x4x8xf32> to vector<4x8xf32>
    %cst_69 = arith.constant dense<0.000000e+00> : vector<128x8xf32>
    %50 = tpu.matmul %47, %49, %cst_69 {dimension_numbers = #tpu.dot_dimension_numbers<[1], [0], [0], [1], [0, 0, 1, 1], [], []>} : vector<128x4xf32>, vector<4x8xf32>, vector<128x8xf32> -> vector<128x8xf32>
    %51 = arith.addf %46, %50 : vector<128x8xf32>
    %c0_70 = arith.constant 0 : index
    %c0_71 = arith.constant 0 : index
    %52 = vector.load %arg9[%c0_70, %c0_71] : memref<128x8xf32, #tpu.memory_space<vmem>>, vector<128x8xf32>
    tpu.vector_store %arg9[%c0_70, %c0_71], %51 {strides = array<i32>} : memref<128x8xf32, #tpu.memory_space<vmem>>, vector<128x8xf32>,
    %c1_72 = arith.constant 1 : index
    %c2_73 = arith.constant 2 : index
    %c0_74 = arith.constant 0 : index
    %53 = vector.load %arg8[%c1_72, %c2_73, %c0_74] : memref<10x18x4xf32, #tpu.memory_space<vmem>>, vector<8x16x4xf32>
    %c0_75 = arith.constant 0 : index
    %c0_76 = arith.constant 0 : index
    %54 = vector.load %arg9[%c0_75, %c0_76] : memref<128x8xf32, #tpu.memory_space<vmem>>, vector<128x8xf32>
    %55 = vector.shape_cast %53 : vector<8x16x4xf32> to vector<128x4xf32>
    %c1_77 = arith.constant 1 : index
    %c2_78 = arith.constant 2 : index
    %c0_79 = arith.constant 0 : index
    %c0_80 = arith.constant 0 : index
    %56 = vector.load %arg5[%c1_77, %c2_78, %c0_79, %c0_80] : memref<3x3x4x8xf32, #tpu.memory_space<vmem>>, vector<1x1x4x8xf32>
    %57 = vector.shape_cast %56 : vector<1x1x4x8xf32> to vector<4x8xf32>
    %cst_81 = arith.constant dense<0.000000e+00> : vector<128x8xf32>
    %58 = tpu.matmul %55, %57, %cst_81 {dimension_numbers = #tpu.dot_dimension_numbers<[1], [0], [0], [1], [0, 0, 1, 1], [], []>} : vector<128x4xf32>, vector<4x8xf32>, vector<128x8xf32> -> vector<128x8xf32>
    %59 = arith.addf %54, %58 : vector<128x8xf32>
    %c0_82 = arith.constant 0 : index
    %c0_83 = arith.constant 0 : index
    %60 = vector.load %arg9[%c0_82, %c0_83] : memref<128x8xf32, #tpu.memory_space<vmem>>, vector<128x8xf32>
    tpu.vector_store %arg9[%c0_82, %c0_83], %59 {strides = array<i32>} : memref<128x8xf32, #tpu.memory_space<vmem>>, vector<128x8xf32>,
    %c2_84 = arith.constant 2 : index
    %c0_85 = arith.constant 0 : index
    %c0_86 = arith.constant 0 : index
    %61 = vector.load %arg8[%c2_84, %c0_85, %c0_86] : memref<10x18x4xf32, #tpu.memory_space<vmem>>, vector<8x16x4xf32>
    %c0_87 = arith.constant 0 : index
    %c0_88 = arith.constant 0 : index
    %62 = vector.load %arg9[%c0_87, %c0_88] : memref<128x8xf32, #tpu.memory_space<vmem>>, vector<128x8xf32>
    %63 = vector.shape_cast %61 : vector<8x16x4xf32> to vector<128x4xf32>
    %c2_89 = arith.constant 2 : index
    %c0_90 = arith.constant 0 : index
    %c0_91 = arith.constant 0 : index
    %c0_92 = arith.constant 0 : index
    %64 = vector.load %arg5[%c2_89, %c0_90, %c0_91, %c0_92] : memref<3x3x4x8xf32, #tpu.memory_space<vmem>>, vector<1x1x4x8xf32>
    %65 = vector.shape_cast %64 : vector<1x1x4x8xf32> to vector<4x8xf32>
    %cst_93 = arith.constant dense<0.000000e+00> : vector<128x8xf32>
    %66 = tpu.matmul %63, %65, %cst_93 {dimension_numbers = #tpu.dot_dimension_numbers<[1], [0], [0], [1], [0, 0, 1, 1], [], []>} : vector<128x4xf32>, vector<4x8xf32>, vector<128x8xf32> -> vector<128x8xf32>
    %67 = arith.addf %62, %66 : vector<128x8xf32>
    %c0_94 = arith.constant 0 : index
    %c0_95 = arith.constant 0 : index
    %68 = vector.load %arg9[%c0_94, %c0_95] : memref<128x8xf32, #tpu.memory_space<vmem>>, vector<128x8xf32>
    tpu.vector_store %arg9[%c0_94, %c0_95], %67 {strides = array<i32>} : memref<128x8xf32, #tpu.memory_space<vmem>>, vector<128x8xf32>,
    %c2_96 = arith.constant 2 : index
    %c1_97 = arith.constant 1 : index
    %c0_98 = arith.constant 0 : index
    %69 = vector.load %arg8[%c2_96, %c1_97, %c0_98] : memref<10x18x4xf32, #tpu.memory_space<vmem>>, vector<8x16x4xf32>
    %c0_99 = arith.constant 0 : index
    %c0_100 = arith.constant 0 : index
    %70 = vector.load %arg9[%c0_99, %c0_100] : memref<128x8xf32, #tpu.memory_space<vmem>>, vector<128x8xf32>
    %71 = vector.shape_cast %69 : vector<8x16x4xf32> to vector<128x4xf32>
    %c2_101 = arith.constant 2 : index
    %c1_102 = arith.constant 1 : index
    %c0_103 = arith.constant 0 : index
    %c0_104 = arith.constant 0 : index
    %72 = vector.load %arg5[%c2_101, %c1_102, %c0_103, %c0_104] : memref<3x3x4x8xf32, #tpu.memory_space<vmem>>, vector<1x1x4x8xf32>
    %73 = vector.shape_cast %72 : vector<1x1x4x8xf32> to vector<4x8xf32>
    %cst_105 = arith.constant dense<0.000000e+00> : vector<128x8xf32>
    %74 = tpu.matmul %71, %73, %cst_105 {dimension_numbers = #tpu.dot_dimension_numbers<[1], [0], [0], [1], [0, 0, 1, 1], [], []>} : vector<128x4xf32>, vector<4x8xf32>, vector<128x8xf32> -> vector<128x8xf32>
    %75 = arith.addf %70, %74 : vector<128x8xf32>
    %c0_106 = arith.constant 0 : index
    %c0_107 = arith.constant 0 : index
    %76 = vector.load %arg9[%c0_106, %c0_107] : memref<128x8xf32, #tpu.memory_space<vmem>>, vector<128x8xf32>
    tpu.vector_store %arg9[%c0_106, %c0_107], %75 {strides = array<i32>} : memref<128x8xf32, #tpu.memory_space<vmem>>, vector<128x8xf32>,
    %c2_108 = arith.constant 2 : index
    %c2_109 = arith.constant 2 : index
    %c0_110 = arith.constant 0 : index
    %77 = vector.load %arg8[%c2_108, %c2_109, %c0_110] : memref<10x18x4xf32, #tpu.memory_space<vmem>>, vector<8x16x4xf32>
    %c0_111 = arith.constant 0 : index
    %c0_112 = arith.constant 0 : index
    %78 = vector.load %arg9[%c0_111, %c0_112] : memref<128x8xf32, #tpu.memory_space<vmem>>, vector<128x8xf32>
    %79 = vector.shape_cast %77 : vector<8x16x4xf32> to vector<128x4xf32>
    %c2_113 = arith.constant 2 : index
    %c2_114 = arith.constant 2 : index
    %c0_115 = arith.constant 0 : index
    %c0_116 = arith.constant 0 : index
    %80 = vector.load %arg5[%c2_113, %c2_114, %c0_115, %c0_116] : memref<3x3x4x8xf32, #tpu.memory_space<vmem>>, vector<1x1x4x8xf32>
    %81 = vector.shape_cast %80 : vector<1x1x4x8xf32> to vector<4x8xf32>
    %cst_117 = arith.constant dense<0.000000e+00> : vector<128x8xf32>
    %82 = tpu.matmul %79, %81, %cst_117 {dimension_numbers = #tpu.dot_dimension_numbers<[1], [0], [0], [1], [0, 0, 1, 1], [], []>} : vector<128x4xf32>, vector<4x8xf32>, vector<128x8xf32> -> vector<128x8xf32>
    %83 = arith.addf %78, %82 : vector<128x8xf32>
    %c0_118 = arith.constant 0 : index
    %c0_119 = arith.constant 0 : index
    %84 = vector.load %arg9[%c0_118, %c0_119] : memref<128x8xf32, #tpu.memory_space<vmem>>, vector<128x8xf32>
    tpu.vector_store %arg9[%c0_118, %c0_119], %83 {strides = array<i32>} : memref<128x8xf32, #tpu.memory_space<vmem>>, vector<128x8xf32>,
    %c0_120 = arith.constant 0 : index
    %c0_121 = arith.constant 0 : index
    %85 = vector.load %arg9[%c0_120, %c0_121] : memref<128x8xf32, #tpu.memory_space<vmem>>, vector<128x8xf32>
    %cst_122 = arith.constant dense<0.000000e+00> : vector<8xf32>
    %86 = vector.multi_reduction <add>, %85, %cst_122 [0] : vector<128x8xf32> to vector<8xf32>
    %87 = vector.shape_cast %86 : vector<8xf32> to vector<1x8xf32>
    %c0_123 = arith.constant 0 : index
    %c0_124 = arith.constant 0 : index
    %c0_125 = arith.constant 0 : index
    %88 = vector.load %arg7[%c0_123, %c0_124, %c0_125] : memref<1x2x8xf32, #tpu.memory_space<vmem>>, vector<1x1x8xf32>
    %89 = vector.shape_cast %88 : vector<1x1x8xf32> to vector<1x8xf32>
    %90 = vector.shape_cast %87 : vector<1x8xf32> to vector<1x1x8xf32>
    tpu.vector_store %arg7[%c0_123, %c0_124, %c0_125], %90 {strides = array<i32>} : memref<1x2x8xf32, #tpu.memory_space<vmem>>, vector<1x1x8xf32>,
    %91 = arith.mulf %85, %85 : vector<128x8xf32>
    %cst_126 = arith.constant dense<0.000000e+00> : vector<8xf32>
    %92 = vector.multi_reduction <add>, %91, %cst_126 [0] : vector<128x8xf32> to vector<8xf32>
    %93 = vector.shape_cast %92 : vector<8xf32> to vector<1x8xf32>
    %c0_127 = arith.constant 0 : index
    %c1_128 = arith.constant 1 : index
    %c0_129 = arith.constant 0 : index
    %94 = vector.load %arg7[%c0_127, %c1_128, %c0_129] : memref<1x2x8xf32, #tpu.memory_space<vmem>>, vector<1x1x8xf32>
    %95 = vector.shape_cast %94 : vector<1x1x8xf32> to vector<1x8xf32>
    %96 = vector.shape_cast %93 : vector<1x8xf32> to vector<1x1x8xf32>
    tpu.vector_store %arg7[%c0_127, %c1_128, %c0_129], %96 {strides = array<i32>} : memref<1x2x8xf32, #tpu.memory_space<vmem>>, vector<1x1x8xf32>,
    %c0_130 = arith.constant 0 : index
    %c0_131 = arith.constant 0 : index
    %c0_132 = arith.constant 0 : index
    %97 = vector.load %arg6[%c0_130, %c0_131, %c0_132] : memref<1x128x8xf32, #tpu.memory_space<vmem>>, vector<1x128x8xf32>
    %98 = vector.shape_cast %97 : vector<1x128x8xf32> to vector<128x8xf32>
    %99 = vector.shape_cast %85 : vector<128x8xf32> to vector<1x128x8xf32>
    tpu.vector_store %arg6[%c0_130, %c0_131, %c0_132], %99 {strides = array<i32>} : memref<1x128x8xf32, #tpu.memory_space<vmem>>, vector<1x128x8xf32>,
    return
  }
  func.func @transform_0(%arg0: i32, %arg1: i32) -> (i32, i32, i32, i32) {
    %c0_i32 = arith.constant 0 : i32
    %c0_i32_0 = arith.constant 0 : i32
    %c0_i32_1 = arith.constant 0 : i32
    return %arg0, %arg1, %c0_i32, %c0_i32_0 : i32, i32, i32, i32
  }
  func.func @transform_1(%arg0: i32, %arg1: i32) -> (i32, i32, i32, i32) {
    %c8_i32 = arith.constant 8 : i32
    %0 = arith.muli %arg1, %c8_i32 : i32
    %c1_i32 = arith.constant 1 : i32
    %1 = arith.subi %0, %c1_i32 : i32
    %c0_i32 = arith.constant 0 : i32
    %2 = arith.maxsi %1, %c0_i32 : i32
    %c0_i32_0 = arith.constant 0 : i32
    %c0_i32_1 = arith.constant 0 : i32
    %c0_i32_2 = arith.constant 0 : i32
    return %arg0, %2, %c0_i32_0, %c0_i32_1 : i32, i32, i32, i32
  }
  func.func @transform_2(%arg0: i32, %arg1: i32) -> (i32, i32, i32, i32) {
    %c8_i32 = arith.constant 8 : i32
    %0 = arith.muli %arg1, %c8_i32 : i32
    %c8_i32_0 = arith.constant 8 : i32
    %1 = arith.addi %0, %c8_i32_0 : i32
    %c15_i32 = arith.constant 15 : i32
    %2 = arith.minsi %1, %c15_i32 : i32
    %c0_i32 = arith.constant 0 : i32
    %c0_i32_1 = arith.constant 0 : i32
    %c0_i32_2 = arith.constant 0 : i32
    return %arg0, %2, %c0_i32, %c0_i32_1 : i32, i32, i32, i32
  }
  func.func @transform_3(%arg0: i32, %arg1: i32) -> (i32, i32, i32, i32) {
    %c0_i32 = arith.constant 0 : i32
    %c0_i32_0 = arith.constant 0 : i32
    %c0_i32_1 = arith.constant 0 : i32
    %c0_i32_2 = arith.constant 0 : i32
    %c0_i32_3 = arith.constant 0 : i32
    return %c0_i32, %c0_i32_0, %c0_i32_1, %c0_i32_2 : i32, i32, i32, i32
  }
  func.func @transform_4(%arg0: i32, %arg1: i32) -> (i32, i32, i32) {
    %c2_i32 = arith.constant 2 : i32
    %0 = arith.muli %arg0, %c2_i32 : i32
    %1 = arith.addi %0, %arg1 : i32
    %c0_i32 = arith.constant 0 : i32
    %c0_i32_0 = arith.constant 0 : i32
    %c0_i32_1 = arith.constant 0 : i32
    return %1, %c0_i32, %c0_i32_0 : i32, i32, i32
  }
  func.func @transform_5(%arg0: i32, %arg1: i32) -> (i32, i32, i32) {
    %c2_i32 = arith.constant 2 : i32
    %0 = arith.muli %arg0, %c2_i32 : i32
    %1 = arith.addi %0, %arg1 : i32
    %c0_i32 = arith.constant 0 : i32
    %c0_i32_0 = arith.constant 0 : i32
    %c0_i32_1 = arith.constant 0 : i32
    return %1, %c0_i32, %c0_i32_0 : i32, i32, i32
  }
}

module attributes {stable_mosaic.version = 11 : i64} {
  func.func @_bn_relu_kernel(%arg0: i32, %arg1: memref<8x128xf32, #tpu.memory_space<vmem>>, %arg2: memref<1x128xf32, #tpu.memory_space<vmem>>, %arg3: memref<1x128xf32, #tpu.memory_space<vmem>>, %arg4: memref<8x128xf32, #tpu.memory_space<vmem>>) attributes {dimension_semantics = [#tpu.dimension_semantics<parallel>], iteration_bounds = array<i64: 4>, scalar_prefetch = 0 : i64, scratch_operands = 0 : i64, tpu.core_type = #tpu.core_type<tc>, window_params = [{transform_indices = @transform_0, window_bounds = array<i64: 8, 128>}, {pipeline_mode = #tpu.pipeline_mode<synchronous>, transform_indices = @transform_1, window_bounds = array<i64: 1, 128>}, {pipeline_mode = #tpu.pipeline_mode<synchronous>, transform_indices = @transform_2, window_bounds = array<i64: 1, 128>}, {transform_indices = @transform_3, window_bounds = array<i64: 8, 128>}]} {
    %c0 = arith.constant 0 : index
    %c0_0 = arith.constant 0 : index
    %0 = vector.load %arg1[%c0, %c0_0] : memref<8x128xf32, #tpu.memory_space<vmem>>, vector<8x128xf32>
    %c0_1 = arith.constant 0 : index
    %c0_2 = arith.constant 0 : index
    %1 = vector.load %arg2[%c0_1, %c0_2] : memref<1x128xf32, #tpu.memory_space<vmem>>, vector<1x128xf32>
    %2 = vector.broadcast %1 : vector<1x128xf32> to vector<8x128xf32>
    %3 = arith.mulf %0, %2 : vector<8x128xf32>
    %c0_3 = arith.constant 0 : index
    %c0_4 = arith.constant 0 : index
    %4 = vector.load %arg3[%c0_3, %c0_4] : memref<1x128xf32, #tpu.memory_space<vmem>>, vector<1x128xf32>
    %5 = vector.broadcast %4 : vector<1x128xf32> to vector<8x128xf32>
    %6 = arith.addf %3, %5 : vector<8x128xf32>
    %cst = arith.constant 0.000000e+00 : f32
    %7 = vector.broadcast %cst : f32 to vector<8x128xf32>
    %8 = arith.maximumf %6, %7 : vector<8x128xf32>
    %c0_5 = arith.constant 0 : index
    %c0_6 = arith.constant 0 : index
    %9 = vector.load %arg4[%c0_5, %c0_6] : memref<8x128xf32, #tpu.memory_space<vmem>>, vector<8x128xf32>
    tpu.vector_store %arg4[%c0_5, %c0_6], %8 {strides = array<i32>} : memref<8x128xf32, #tpu.memory_space<vmem>>, vector<8x128xf32>,
    return
  }
  func.func @transform_0(%arg0: i32) -> (i32, i32) {
    %c0_i32 = arith.constant 0 : i32
    %c0_i32_0 = arith.constant 0 : i32
    return %arg0, %c0_i32 : i32, i32
  }
  func.func @transform_1(%arg0: i32) -> (i32, i32) {
    %c0_i32 = arith.constant 0 : i32
    %c0_i32_0 = arith.constant 0 : i32
    %c0_i32_1 = arith.constant 0 : i32
    return %c0_i32, %c0_i32_0 : i32, i32
  }
  func.func @transform_2(%arg0: i32) -> (i32, i32) {
    %c0_i32 = arith.constant 0 : i32
    %c0_i32_0 = arith.constant 0 : i32
    %c0_i32_1 = arith.constant 0 : i32
    return %c0_i32, %c0_i32_0 : i32, i32
  }
  func.func @transform_3(%arg0: i32) -> (i32, i32) {
    %c0_i32 = arith.constant 0 : i32
    %c0_i32_0 = arith.constant 0 : i32
    return %arg0, %c0_i32 : i32, i32
  }
}

</mosaic_0001>

<llo_original>
// kernel: tile.18
$region0: #{tile.18}
  #allocation0 [shape = 's32[1]{0}', space=sflag, size = 0x4, scoped, tag = 'scoped memory for tile.18']
  %s0 = inlined_call_operand.vmem [shape: f32[8], index: 0, kind: input, shape index: {}]
  %s1 = inlined_call_operand.vmem [shape: f32[16,8], index: 1, kind: output, shape index: {}]
  // Predicated region
  $region2: #{tile.18} parent=0 // pred_check
    _
  $region3: #{tile.18} parent=0 // pred_check_branch
    %3 = sbr.rel (0) target = $region5
  $region4: #{tile.18} parent=0 // pred_region
    _
  $region5: #{tile.18} parent=0 // pred_fallthru
    _
  %v4 = vld [vmem:[%s0] ss:$0 sm:$0xff]
  %5 = vst [vmem:[%s1] sm:$0xff] %v4
  %s6 = scalar_lea.vmem %s1, 8
  %7 = vst [vmem:[%s6] sm:$0xff] %v4

// kernel: tile.19
$region0: #{tile.19}
  %s0 = inlined_call_operand.vmem [shape: f32[16,8], index: 0, kind: input, shape index: {}]
  %s1 = inlined_call_operand.vmem [shape: f32[1,128], index: 1, kind: output, shape index: {}]
  $region1: #{tile.19} parent=0
    #allocation0 [shape = 'u8[4096]{0}', space=vmem, size = 0x1000, scoped, tag = 'scoped mem for output reshape']
    %v2 = vld [vmem:[%s0] sm:$0x1]
    %vm3 = vcmask 64512
    %4 = vst.msk [vmem:[#allocation0] sm:$0x1] %vm3, %v2
    %s5 = scalar_lea.vmem %s0, 15
    %v6 = vld [vmem:[%s5] sm:$0x1]
    %7 = vrot.lane.b32.xlu0 %v6, 120
    %v8 = vpop.permute.xlu0 %7
    %vm9 = vcmask 1048512
    %10 = vst.msk [vmem:[#allocation0] sm:$0x1] %vm9, %v8
    %s11 = scalar_lea.vmem %s0, 14
    %v12 = vld [vmem:[%s11] sm:$0x1]
    %13 = vrot.lane.b32.xlu0 %v12, 112
    %v14 = vpop.permute.xlu0 %13
    %vm15 = vcmask 982912
    %16 = vst.msk [vmem:[#allocation0] sm:$0x1] %vm15, %v14
    %s17 = scalar_lea.vmem %s0, 13
    %v18 = vld [vmem:[%s17] sm:$0x1]
    %19 = vrot.lane.b32.xlu0 %v18, 104
    %v20 = vpop.permute.xlu0 %19
    %vm21 = vcmask 917312
    %22 = vst.msk [vmem:[#allocation0] sm:$0x1] %vm21, %v20
    %s23 = scalar_lea.vmem %s0, 12
    %v24 = vld [vmem:[%s23] sm:$0x1]
    %25 = vrot.lane.b32.xlu0 %v24, 96
    %v26 = vpop.permute.xlu0 %25
    %vm27 = vcmask 851712
    %28 = vst.msk [vmem:[#allocation0] sm:$0x1] %vm27, %v26
    %s29 = scalar_lea.vmem %s0, 11
    %v30 = vld [vmem:[%s29] sm:$0x1]
    %31 = vrot.lane.b32.xlu0 %v30, 88
    %v32 = vpop.permute.xlu0 %31
    %vm33 = vcmask 786112
    %34 = vst.msk [vmem:[#allocation0] sm:$0x1] %vm33, %v32
    %s35 = scalar_lea.vmem %s0, 10
    %v36 = vld [vmem:[%s35] sm:$0x1]
    %37 = vrot.lane.b32.xlu0 %v36, 80
    %v38 = vpop.permute.xlu0 %37
    %vm39 = vcmask 720512
    %40 = vst.msk [vmem:[#allocation0] sm:$0x1] %vm39, %v38
    %s41 = scalar_lea.vmem %s0, 9
    %v42 = vld [vmem:[%s41] sm:$0x1]
    %43 = vrot.lane.b32.xlu0 %v42, 72
    %v44 = vpop.permute.xlu0 %43
    %vm45 = vcmask 654912
    %46 = vst.msk [vmem:[#allocation0] sm:$0x1] %vm45, %v44
    %s47 = scalar_lea.vmem %s0, 8
    %v48 = vld [vmem:[%s47] sm:$0x1]
    %49 = vrot.lane.b32.xlu0 %v48, 64
    %v50 = vpop.permute.xlu0 %49
    %vm51 = vcmask 589312
    %52 = vst.msk [vmem:[#allocation0] sm:$0x1] %vm51, %v50
    %s53 = scalar_lea.vmem %s0, 7
    %v54 = vld [vmem:[%s53] sm:$0x1]
    %55 = vrot.lane.b32.xlu0 %v54, 56
    %v56 = vpop.permute.xlu0 %55
    %vm57 = vcmask 523712
    %58 = vst.msk [vmem:[#allocation0] sm:$0x1] %vm57, %v56
    %s59 = scalar_lea.vmem %s0, 6
    %v60 = vld [vmem:[%s59] sm:$0x1]
    %61 = vrot.lane.b32.xlu0 %v60, 48
    %v62 = vpop.permute.xlu0 %61
    %vm63 = vcmask 458112
    %64 = vst.msk [vmem:[#allocation0] sm:$0x1] %vm63, %v62
    %s65 = scalar_lea.vmem %s0, 5
    %v66 = vld [vmem:[%s65] sm:$0x1]
    %67 = vrot.lane.b32.xlu0 %v66, 40
    %v68 = vpop.permute.xlu0 %67
    %vm69 = vcmask 392512
    %70 = vst.msk [vmem:[#allocation0] sm:$0x1] %vm69, %v68
    %s71 = scalar_lea.vmem %s0, 4
    %v72 = vld [vmem:[%s71] sm:$0x1]
    %73 = vrot.lane.b32.xlu0 %v72, 32
    %v74 = vpop.permute.xlu0 %73
    %vm75 = vcmask 326912
    %76 = vst.msk [vmem:[#allocation0] sm:$0x1] %vm75, %v74
    %s77 = scalar_lea.vmem %s0, 3
    %v78 = vld [vmem:[%s77] sm:$0x1]
    %79 = vrot.lane.b32.xlu0 %v78, 24
    %v80 = vpop.permute.xlu0 %79
    %vm81 = vcmask 261312
    %82 = vst.msk [vmem:[#allocation0] sm:$0x1] %vm81, %v80
    %s83 = scalar_lea.vmem %s0, 2
    %v84 = vld [vmem:[%s83] sm:$0x1]
    %85 = vrot.lane.b32.xlu0 %v84, 16
    %v86 = vpop.permute.xlu0 %85
    %vm87 = vcmask 195712
    %88 = vst.msk [vmem:[#allocation0] sm:$0x1] %vm87, %v86
    %s89 = scalar_lea.vmem %s0, 1
    %v90 = vld [vmem:[%s89] sm:$0x1]
    %91 = vrot.lane.b32.xlu0 %v90, 8
    %v92 = vpop.permute.xlu0 %91
    %vm93 = vcmask 130112
    %94 = vst.msk [vmem:[#allocation0] sm:$0x1] %vm93, %v92
    %s96 = sshllo.u32 0, 1
    %v98 = vld [vmem:[#allocation0] sm:%s96]
    %s99 = sshllo.u32 0, 1
    %100 = vst [vmem:[%s1] sm:%s99] %v98

// kernel: block_forward.3
$region0: #{block_forward.3}
  #allocation0 [shape = 'u32[]', space=smem, size = 0x4, offset = 0x4, fixed_abs, tag = 'smem constant byte address 0x4 - core index']
  #allocation1 [shape = 'u32[144,128]{1,0:T(1,128)}', space=vmem, size = 0x12000, scoped, tag = 'internal scratch']
  %s0 = inlined_call_operand.vmem [shape: f32[32,128], index: 0, kind: input, shape index: {}]
  %s1 = inlined_call_operand.vmem [shape: f32[1,128], index: 1, kind: input, shape index: {}]
  %s2 = inlined_call_operand.vmem [shape: f32[1,128], index: 2, kind: input, shape index: {}]
  %s3 = inlined_call_operand.vmem [shape: f32[32,128], index: 3, kind: output, shape index: {}]
  %s4 = sld [smem:[#allocation0]]
  $region45: #{block_forward.3} parent=0
    _
  %s6 = ssub.s32 1, %s4
  %s7 = scalar_select 0, %s6, %s4
  loop: start=0, step=1, limit=6
  $region2: #{block_forward.3} parent=0 // loop_pre_header
    _
  $region3: #{block_forward.3} parent=0 // loop_header
    %s9 = sphi 0, %s13
    %p10 = scmp.ge.s32.totalorder %s9, 6
    %s19 = sphi 0, %s21
    %s22 = sphi 0, %s19
    %s23 = sphi 0, %s22
    %s39 = sphi 0, %s23
    %s43 = sphi 0, %s43
    %s45 = sphi 0, %s43
    %s46 = sphi 0, %s45
    %s60 = sphi 0, %s46
    %s64 = sphi 0, %s64
    %s66 = sphi 0, %s64
    %s67 = sphi 0, %s66
    %s81 = sphi 0, %s67
    %s87 = sphi 0, %s89
    %s90 = sphi 0, %s87
    %s91 = sphi 0, %s90
    %s107 = sphi 0, %s91
  $region4: #{block_forward.3} parent=0 // loop_header_branch
    %12 = sbr.rel (%p10) target = $region8
  $region5: #{block_forward.3} parent=0 // loop_body
    %s14 = ssub.s32 %s9, 1
    %s15 = ssub.s32 %s9, 2
    %s16 = sadd.s32 %s9, 1
    %s17 = ssub.s32 %s9, %s16
    %p18 = scmp.eq.s32.totalorder %s17, 0
    %s20 = sadd.s32 %s19, 1
    %s21 = scalar_select %p18, %s19, %s20
    %p24 = pneg %p18
    %p25 = scmp.eq.s32.totalorder %s9, 3
    %p26 = por %p24, %p25
    %p27 = scmp.ne.s32.totalorder %s19, %s22
    %p28 = scmp.eq.s32.totalorder %s9, 0
    %p29 = por %p27, %p28
    %p30 = scmp.ne.s32.totalorder %s19, %s22
    %p31 = scmp.eq.s32.totalorder %s14, 3
    %p32 = por %p30, %p31
    %p33 = scmp.ne.s32.totalorder %s22, %s23
    %p34 = scmp.eq.s32.totalorder %s14, 0
    %p35 = por %p33, %p34
    %p36 = scmp.ne.s32.totalorder %s22, %s23
    %p37 = scmp.eq.s32.totalorder %s15, 3
    %p38 = por %p36, %p37
    %p40 = scmp.ne.s32.totalorder %s23, %s39
    %p41 = scmp.eq.s32.totalorder %s15, 0
    %p42 = por %p40, %p41
    %s44 = sadd.s32 %s43, 1
    %p47 = scmp.eq.s32.totalorder %s9, 3
    %p48 = scmp.ne.s32.totalorder %s43, %s45
    %p49 = scmp.eq.s32.totalorder %s9, 0
    %p50 = por %p48, %p49
    %p51 = scmp.ne.s32.totalorder %s43, %s45
    %p52 = scmp.eq.s32.totalorder %s14, 3
    %p53 = por %p51, %p52
    %p54 = scmp.ne.s32.totalorder %s45, %s46
    %p55 = scmp.eq.s32.totalorder %s14, 0
    %p56 = por %p54, %p55
    %p57 = scmp.ne.s32.totalorder %s45, %s46
    %p58 = scmp.eq.s32.totalorder %s15, 3
    %p59 = por %p57, %p58
    %p61 = scmp.ne.s32.totalorder %s46, %s60
    %p62 = scmp.eq.s32.totalorder %s15, 0
    %p63 = por %p61, %p62
    %s65 = sadd.s32 %s64, 1
    %p68 = scmp.eq.s32.totalorder %s9, 3
    %p69 = scmp.ne.s32.totalorder %s64, %s66
    %p70 = scmp.eq.s32.totalorder %s9, 0
    %p71 = por %p69, %p70
    %p72 = scmp.ne.s32.totalorder %s64, %s66
    %p73 = scmp.eq.s32.totalorder %s14, 3
    %p74 = por %p72, %p73
    %p75 = scmp.ne.s32.totalorder %s66, %s67
    %p76 = scmp.eq.s32.totalorder %s14, 0
    %p77 = por %p75, %p76
    %p78 = scmp.ne.s32.totalorder %s66, %s67
    %p79 = scmp.eq.s32.totalorder %s15, 3
    %p80 = por %p78, %p79
    %p82 = scmp.ne.s32.totalorder %s67, %s81
    %p83 = scmp.eq.s32.totalorder %s15, 0
    %p84 = por %p82, %p83
    %s85 = ssub.s32 %s9, %s16
    %p86 = scmp.eq.s32.totalorder %s85, 0
    %s88 = sadd.s32 %s87, 1
    %s89 = scalar_select %p86, %s87, %s88
    %p92 = pneg %p86
    %p93 = scmp.eq.s32.totalorder %s9, 3
    %p94 = por %p92, %p93
    %p95 = scmp.ne.s32.totalorder %s87, %s90
    %p96 = scmp.eq.s32.totalorder %s9, 0
    %p97 = por %p95, %p96
    %p98 = scmp.ne.s32.totalorder %s87, %s90
    %p99 = scmp.eq.s32.totalorder %s14, 3
    %p100 = por %p98, %p99
    %p101 = scmp.ne.s32.totalorder %s90, %s91
    %p102 = scmp.eq.s32.totalorder %s14, 0
    %p103 = por %p101, %p102
    %p104 = scmp.ne.s32.totalorder %s90, %s91
    %p105 = scmp.eq.s32.totalorder %s15, 3
    %p106 = por %p104, %p105
    %p108 = scmp.ne.s32.totalorder %s91, %s107
    %p109 = scmp.eq.s32.totalorder %s15, 0
    %p110 = por %p108, %p109
    %p111 = scmp.le.s32.totalorder 1, %s9
    %p112 = scmp.lt.s32.totalorder %s9, 5
    %p113 = pnand %p111, %p112
    %p114 = pneg %p113
    // Predicated region
    $region9: #{block_forward.3} parent=5 // pred_check
      _
    $region10: #{block_forward.3} parent=5 // pred_check_branch
      %116 = sbr.rel (%p113) target = $region12
    $region11: #{block_forward.3} parent=5 // pred_region
      %s117 = ssub.s32 %s9, 1
      // Predicated region
      $region13: #{block_forward.3} parent=11 // pred_check
        %p118 = pneg %p56
      $region14: #{block_forward.3} parent=11 // pred_check_branch
        %120 = sbr.rel (%p118) target = $region16
      $region15: #{block_forward.3} parent=11 // pred_region
        _
      $region16: #{block_forward.3} parent=11 // pred_fallthru
        _
      // Predicated region
      $region17: #{block_forward.3} parent=11 // pred_check
        %p121 = pneg %p77
      $region18: #{block_forward.3} parent=11 // pred_check_branch
        %123 = sbr.rel (%p121) target = $region20
      $region19: #{block_forward.3} parent=11 // pred_region
        _
      $region20: #{block_forward.3} parent=11 // pred_fallthru
        _
    $region12: #{block_forward.3} parent=5 // pred_fallthru
      _
    %p124 = scmp.lt.s32.totalorder %s9, 4
    // Predicated region
    $region21: #{block_forward.3} parent=5 // pred_check
      %p125 = pneg %p124
    $region22: #{block_forward.3} parent=5 // pred_check_branch
      %127 = sbr.rel (%p125) target = $region24
    $region23: #{block_forward.3} parent=5 // pred_region
      // Predicated region
      $region25: #{block_forward.3} parent=23 // pred_check
        %p128 = pneg %p29
      $region26: #{block_forward.3} parent=23 // pred_check_branch
        %130 = sbr.rel (%p128) target = $region28
      $region27: #{block_forward.3} parent=23 // pred_region
        %p131 = scmp.lt.s32.totalorder %s9, 3
        %s132 = scalar_select %p131, %s9, 3
        %s133 = smul.addr %s132, 8
        %s134 = scalar_lea.vmem %s0, %s133
      $region28: #{block_forward.3} parent=23 // pred_fallthru
        _
    $region24: #{block_forward.3} parent=5 // pred_fallthru
      _
    %p135 = scmp.le.s32.totalorder 1, %s9
    %p136 = scmp.lt.s32.totalorder %s9, 5
    %p137 = pnand %p135, %p136
    %p138 = pneg %p137
    // Predicated region
    $region29: #{block_forward.3} parent=5 // pred_check
      _
    $region30: #{block_forward.3} parent=5 // pred_check_branch
      %140 = sbr.rel (%p137) target = $region32
    $region31: #{block_forward.3} parent=5 // pred_region
      %s141 = ssub.s32 %s9, 1
      %p142 = scmp.lt.s32.totalorder %s14, 3
      %s143 = scalar_select %p142, %s14, 3
      %s144 = smul.addr %s143, 8
      %s145 = scalar_lea.vmem %s0, %s144
      %p146 = pneg %p35
      %p147 = pneg %p32
      %p148 = pneg %p56
      %p149 = pneg %p53
      %p150 = pneg %p77
      %p151 = pneg %p74
      %p152 = pneg %p103
      %p153 = pneg %p100
      %p154 = scmp.lt.s32.totalorder %s14, 3
      %s155 = scalar_select %p154, %s14, 3
      %s156 = smul.addr %s155, 8
      %s157 = scalar_lea.vmem %s3, %s156
      %p158 = scmp.lt.s32.totalorder %s14, 3
      %s159 = scalar_select %p158, %s14, 3
      %s160 = smul.addr %s159, 8
      %s161 = scalar_lea.vmem %s0, %s160
      %p162 = scmp.lt.s32.totalorder %s14, 3
      %s163 = scalar_select %p162, %s14, 3
      %s164 = smul.addr %s163, 8
      %s165 = scalar_lea.vmem %s3, %s164
      %v166 = vld [vmem:[%s161] sm:$0xff]
      %v167 = vld [vmem:[%s1] sm:$0x1]
      %v169 = vlaneseq
      %v170 = vshrl.u32 %v169, 7
      %v171 = vsub.s32 0, %v170
      %v172 = vrot.slane %v167, %v171
      %v174 = vmul.f32 %v166, %v172
      %v175 = vld [vmem:[%s2] sm:$0x1]
      %v177 = vlaneseq
      %v178 = vshrl.u32 %v177, 7
      %v179 = vsub.s32 0, %v178
      %v180 = vrot.slane %v175, %v179
      %v182 = vadd.f32 %v174, %v180
      %v183 = vmax.f32 %v182, 0.0
      %184 = vst [vmem:[%s165] sm:$0xff] %v183
      %p185 = scmp.lt.s32.totalorder %s14, 3
      %s186 = scalar_select %p185, %s14, 3
      %s187 = smul.addr %s186, 8
      %s188 = scalar_lea.vmem %s3, %s187
      // Predicated region
      $region33: #{block_forward.3} parent=31 // pred_check
        %p189 = pneg %p100
      $region34: #{block_forward.3} parent=31 // pred_check_branch
        %191 = sbr.rel (%p189) target = $region36
      $region35: #{block_forward.3} parent=31 // pred_region
        _
      $region36: #{block_forward.3} parent=31 // pred_fallthru
        _
    $region32: #{block_forward.3} parent=5 // pred_fallthru
      _
    %p192 = scmp.le.s32.totalorder 2, %s9
    // Predicated region
    $region37: #{block_forward.3} parent=5 // pred_check
      %p193 = pneg %p192
    $region38: #{block_forward.3} parent=5 // pred_check_branch
      %195 = sbr.rel (%p193) target = $region40
    $region39: #{block_forward.3} parent=5 // pred_region
      %s196 = ssub.s32 %s9, 2
      // Predicated region
      $region41: #{block_forward.3} parent=39 // pred_check
        %p197 = pneg %p106
      $region42: #{block_forward.3} parent=39 // pred_check_branch
        %199 = sbr.rel (%p197) target = $region44
      $region43: #{block_forward.3} parent=39 // pred_region
        %p200 = scmp.lt.s32.totalorder %s15, 3
        %s201 = scalar_select %p200, %s15, 3
        %s202 = smul.addr %s201, 8
        %s203 = scalar_lea.vmem %s3, %s202
      $region44: #{block_forward.3} parent=39 // pred_fallthru
        _
    $region40: #{block_forward.3} parent=5 // pred_fallthru
      _
  $region6: #{block_forward.3} parent=0 // loop_footer
    %s13 = sadd.s32 1, %s9
  $region7: #{block_forward.3} parent=0 // loop_footer_branch
    %8 = sbr.rel target = $region3
  $region8: #{block_forward.3} parent=0 // loop_exit
    _

// kernel: block_forward.2
$region0: #{block_forward.2}
  #allocation0 [shape = 'u32[]', space=smem, size = 0x4, offset = 0x4, fixed_abs, tag = 'smem constant byte address 0x4 - core index']
  #allocation1 [shape = 'u32[144,128]{1,0:T(1,128)}', space=vmem, size = 0x12000, scoped, tag = 'internal scratch']
  #allocation2 [shape = 'f32[10,18,4]{2,1,0:T(8,128)}', space=vmem, size = 0x1e000, scoped, tag = 'scratch operand']
  #allocation3 [shape = 'f32[128,8]{1,0:T(8,128)}', space=vmem, size = 0x10000, scoped, tag = 'scratch operand']
  %s0 = inlined_call_operand.vmem [shape: f32[2,16,16,4], index: 0, kind: input, shape index: {}, may-alias: {0,1,2}]
  %s1 = inlined_call_operand.vmem [shape: f32[2,16,16,4], index: 1, kind: input, shape index: {}, may-alias: {0,1,2}]
  %s2 = inlined_call_operand.vmem [shape: f32[2,16,16,4], index: 2, kind: input, shape index: {}, may-alias: {0,1,2}]
  %s3 = inlined_call_operand.vmem [shape: f32[3,3,4,8], index: 3, kind: input, shape index: {}]
  %s4 = inlined_call_operand.vmem [shape: f32[4,128,8], index: 4, kind: output, shape index: {0}]
  %s5 = inlined_call_operand.vmem [shape: f32[4,2,8], index: 5, kind: output, shape index: {1}]
  %6 = xla_tuple %s4, %s5
  %s7 = sld [smem:[#allocation0]]
  $region65: #{block_forward.2} parent=0
    _
  %s9 = ssub.s32 1, %s7
  %s10 = scalar_select 0, %s9, %s7
  loop: start=0, step=1, limit=6
  $region2: #{block_forward.2} parent=0 // loop_pre_header
    _
  $region3: #{block_forward.2} parent=0 // loop_header
    %s12 = sphi 0, %s16
    %p13 = scmp.ge.s32.totalorder %s12, 6
    %s19 = sphi 0, %s31
    %s20 = sphi 0, %s27
    %s21 = sphi 0, %s19
    %s22 = sphi 0, %s20
    %s23 = sphi 0, %s21
    %s24 = sphi 0, %s22
    %s36 = sphi 0, %s38
    %s39 = sphi 0, %s36
    %s40 = sphi 0, %s39
    %s56 = sphi 0, %s40
    %s72 = sphi 0, %s74
    %s75 = sphi 0, %s72
    %s76 = sphi 0, %s75
    %s92 = sphi 0, %s76
    %s108 = sphi 0, %s110
    %s111 = sphi 0, %s108
    %s112 = sphi 0, %s111
    %s128 = sphi 0, %s112
    %s132 = sphi 0, %s132
    %s134 = sphi 0, %s132
    %s135 = sphi 0, %s134
    %s149 = sphi 0, %s135
    %s159 = sphi 0, %s161
    %s162 = sphi 0, %s159
    %s163 = sphi 0, %s162
    %s179 = sphi 0, %s163
    %s189 = sphi 0, %s191
    %s192 = sphi 0, %s189
    %s193 = sphi 0, %s192
    %s209 = sphi 0, %s193
  $region4: #{block_forward.2} parent=0 // loop_header_branch
    %15 = sbr.rel (%p13) target = $region8
  $region5: #{block_forward.2} parent=0 // loop_body
    %s17 = ssub.s32 %s12, 1
    %s18 = ssub.s32 %s12, 2
    %s25 = sadd.s32 1, %s20
    %p26 = scmp.ge.s32.totalorder %s25, 2
    %s27 = scalar_select %p26, 0, %s25
    %s28 = sadd.s32 1, %s19
    %s29 = scalar_select %p26, %s28, %s19
    %p30 = scmp.ge.s32.totalorder %s29, 2
    %s31 = scalar_select %p30, 0, %s29
    %s32 = ssub.s32 %s19, %s31
    %s33 = ssub.s32 %s20, %s27
    %s34 = sor.u32 %s32, %s33
    %p35 = scmp.eq.s32.totalorder %s34, 0
    %s37 = sadd.s32 %s36, 1
    %s38 = scalar_select %p35, %s36, %s37
    %p41 = pneg %p35
    %p42 = scmp.eq.s32.totalorder %s12, 3
    %p43 = por %p41, %p42
    %p44 = scmp.ne.s32.totalorder %s36, %s39
    %p45 = scmp.eq.s32.totalorder %s12, 0
    %p46 = por %p44, %p45
    %p47 = scmp.ne.s32.totalorder %s36, %s39
    %p48 = scmp.eq.s32.totalorder %s17, 3
    %p49 = por %p47, %p48
    %p50 = scmp.ne.s32.totalorder %s39, %s40
    %p51 = scmp.eq.s32.totalorder %s17, 0
    %p52 = por %p50, %p51
    %p53 = scmp.ne.s32.totalorder %s39, %s40
    %p54 = scmp.eq.s32.totalorder %s18, 3
    %p55 = por %p53, %p54
    %p57 = scmp.ne.s32.totalorder %s40, %s56
    %p58 = scmp.eq.s32.totalorder %s18, 0
    %p59 = por %p57, %p58
    %s60 = smul.u32 %s20, 8
    %s61 = ssub.s32 %s60, 1
    %p62 = scmp.gt.s32.totalorder %s61, 0
    %s63 = scalar_select %p62, %s61, 0
    %s64 = smul.u32 %s27, 8
    %s65 = ssub.s32 %s64, 1
    %p66 = scmp.gt.s32.totalorder %s65, 0
    %s67 = scalar_select %p66, %s65, 0
    %s68 = ssub.s32 %s19, %s31
    %s69 = ssub.s32 %s63, %s67
    %s70 = sor.u32 %s68, %s69
    %p71 = scmp.eq.s32.totalorder %s70, 0
    %s73 = sadd.s32 %s72, 1
    %s74 = scalar_select %p71, %s72, %s73
    %p77 = pneg %p71
    %p78 = scmp.eq.s32.totalorder %s12, 3
    %p79 = por %p77, %p78
    %p80 = scmp.ne.s32.totalorder %s72, %s75
    %p81 = scmp.eq.s32.totalorder %s12, 0
    %p82 = por %p80, %p81
    %p83 = scmp.ne.s32.totalorder %s72, %s75
    %p84 = scmp.eq.s32.totalorder %s17, 3
    %p85 = por %p83, %p84
    %p86 = scmp.ne.s32.totalorder %s75, %s76
    %p87 = scmp.eq.s32.totalorder %s17, 0
    %p88 = por %p86, %p87
    %p89 = scmp.ne.s32.totalorder %s75, %s76
    %p90 = scmp.eq.s32.totalorder %s18, 3
    %p91 = por %p89, %p90
    %p93 = scmp.ne.s32.totalorder %s76, %s92
    %p94 = scmp.eq.s32.totalorder %s18, 0
    %p95 = por %p93, %p94
    %s96 = smul.u32 %s20, 8
    %s97 = sadd.s32 %s96, 8
    %p98 = scmp.lt.s32.totalorder %s97, 15
    %s99 = scalar_select %p98, %s97, 15
    %s100 = smul.u32 %s27, 8
    %s101 = sadd.s32 %s100, 8
    %p102 = scmp.lt.s32.totalorder %s101, 15
    %s103 = scalar_select %p102, %s101, 15
    %s104 = ssub.s32 %s19, %s31
    %s105 = ssub.s32 %s99, %s103
    %s106 = sor.u32 %s104, %s105
    %p107 = scmp.eq.s32.totalorder %s106, 0
    %s109 = sadd.s32 %s108, 1
    %s110 = scalar_select %p107, %s108, %s109
    %p113 = pneg %p107
    %p114 = scmp.eq.s32.totalorder %s12, 3
    %p115 = por %p113, %p114
    %p116 = scmp.ne.s32.totalorder %s108, %s111
    %p117 = scmp.eq.s32.totalorder %s12, 0
    %p118 = por %p116, %p117
    %p119 = scmp.ne.s32.totalorder %s108, %s111
    %p120 = scmp.eq.s32.totalorder %s17, 3
    %p121 = por %p119, %p120
    %p122 = scmp.ne.s32.totalorder %s111, %s112
    %p123 = scmp.eq.s32.totalorder %s17, 0
    %p124 = por %p122, %p123
    %p125 = scmp.ne.s32.totalorder %s111, %s112
    %p126 = scmp.eq.s32.totalorder %s18, 3
    %p127 = por %p125, %p126
    %p129 = scmp.ne.s32.totalorder %s112, %s128
    %p130 = scmp.eq.s32.totalorder %s18, 0
    %p131 = por %p129, %p130
    %s133 = sadd.s32 %s132, 1
    %p136 = scmp.eq.s32.totalorder %s12, 3
    %p137 = scmp.ne.s32.totalorder %s132, %s134
    %p138 = scmp.eq.s32.totalorder %s12, 0
    %p139 = por %p137, %p138
    %p140 = scmp.ne.s32.totalorder %s132, %s134
    %p141 = scmp.eq.s32.totalorder %s17, 3
    %p142 = por %p140, %p141
    %p143 = scmp.ne.s32.totalorder %s134, %s135
    %p144 = scmp.eq.s32.totalorder %s17, 0
    %p145 = por %p143, %p144
    %p146 = scmp.ne.s32.totalorder %s134, %s135
    %p147 = scmp.eq.s32.totalorder %s18, 3
    %p148 = por %p146, %p147
    %p150 = scmp.ne.s32.totalorder %s135, %s149
    %p151 = scmp.eq.s32.totalorder %s18, 0
    %p152 = por %p150, %p151
    %s153 = smul.u32 %s19, 2
    %s154 = sadd.s32 %s153, %s20
    %s155 = smul.u32 %s31, 2
    %s156 = sadd.s32 %s155, %s27
    %s157 = ssub.s32 %s154, %s156
    %p158 = scmp.eq.s32.totalorder %s157, 0
    %s160 = sadd.s32 %s159, 1
    %s161 = scalar_select %p158, %s159, %s160
    %p164 = pneg %p158
    %p165 = scmp.eq.s32.totalorder %s12, 3
    %p166 = por %p164, %p165
    %p167 = scmp.ne.s32.totalorder %s159, %s162
    %p168 = scmp.eq.s32.totalorder %s12, 0
    %p169 = por %p167, %p168
    %p170 = scmp.ne.s32.totalorder %s159, %s162
    %p171 = scmp.eq.s32.totalorder %s17, 3
    %p172 = por %p170, %p171
    %p173 = scmp.ne.s32.totalorder %s162, %s163
    %p174 = scmp.eq.s32.totalorder %s17, 0
    %p175 = por %p173, %p174
    %p176 = scmp.ne.s32.totalorder %s162, %s163
    %p177 = scmp.eq.s32.totalorder %s18, 3
    %p178 = por %p176, %p177
    %p180 = scmp.ne.s32.totalorder %s163, %s179
    %p181 = scmp.eq.s32.totalorder %s18, 0
    %p182 = por %p180, %p181
    %s183 = smul.u32 %s19, 2
    %s184 = sadd.s32 %s183, %s20
    %s185 = smul.u32 %s31, 2
    %s186 = sadd.s32 %s185, %s27
    %s187 = ssub.s32 %s184, %s186
    %p188 = scmp.eq.s32.totalorder %s187, 0
    %s190 = sadd.s32 %s189, 1
    %s191 = scalar_select %p188, %s189, %s190
    %p194 = pneg %p188
    %p195 = scmp.eq.s32.totalorder %s12, 3
    %p196 = por %p194, %p195
    %p197 = scmp.ne.s32.totalorder %s189, %s192
    %p198 = scmp.eq.s32.totalorder %s12, 0
    %p199 = por %p197, %p198
    %p200 = scmp.ne.s32.totalorder %s189, %s192
    %p201 = scmp.eq.s32.totalorder %s17, 3
    %p202 = por %p200, %p201
    %p203 = scmp.ne.s32.totalorder %s192, %s193
    %p204 = scmp.eq.s32.totalorder %s17, 0
    %p205 = por %p203, %p204
    %p206 = scmp.ne.s32.totalorder %s192, %s193
    %p207 = scmp.eq.s32.totalorder %s18, 3
    %p208 = por %p206, %p207
    %p210 = scmp.ne.s32.totalorder %s193, %s209
    %p211 = scmp.eq.s32.totalorder %s18, 0
    %p212 = por %p210, %p211
    %p213 = scmp.le.s32.totalorder 1, %s12
    %p214 = scmp.lt.s32.totalorder %s12, 5
    %p215 = pnand %p213, %p214
    %p216 = pneg %p215
    // Predicated region
    $region9: #{block_forward.2} parent=5 // pred_check
      _
    $region10: #{block_forward.2} parent=5 // pred_check_branch
      %218 = sbr.rel (%p215) target = $region12
    $region11: #{block_forward.2} parent=5 // pred_region
      %s219 = ssub.s32 %s12, 1
      // Predicated region
      $region13: #{block_forward.2} parent=11 // pred_check
        %p220 = pneg %p145
      $region14: #{block_forward.2} parent=11 // pred_check_branch
        %222 = sbr.rel (%p220) target = $region16
      $region15: #{block_forward.2} parent=11 // pred_region
        _
      $region16: #{block_forward.2} parent=11 // pred_fallthru
        _
    $region12: #{block_forward.2} parent=5 // pred_fallthru
      _
    %p223 = scmp.lt.s32.totalorder %s12, 4
    // Predicated region
    $region17: #{block_forward.2} parent=5 // pred_check
      %p224 = pneg %p223
    $region18: #{block_forward.2} parent=5 // pred_check_branch
      %226 = sbr.rel (%p224) target = $region20
    $region19: #{block_forward.2} parent=5 // pred_region
      // Predicated region
      $region21: #{block_forward.2} parent=19 // pred_check
        %p227 = pneg %p46
      $region22: #{block_forward.2} parent=19 // pred_check_branch
        %229 = sbr.rel (%p227) target = $region24
      $region23: #{block_forward.2} parent=19 // pred_region
        %s230 = smul.u32 8, %s20
        %p231 = scmp.lt.s32.totalorder %s19, 1
        %s232 = scalar_select %p231, %s19, 1
        %p233 = scmp.lt.s32.totalorder %s230, 15
        %s234 = scalar_select %p233, %s230, 15
        %s235 = smul.addr %s234, 2
        %s236 = smul.addr %s232, 32
        %s237 = sadd.s32 %s235, %s236
        %s238 = smul.addr %s237, 8
        %s239 = scalar_lea.vmem %s0, %s238
        %s240 = smul.u32 8, %s20
      $region24: #{block_forward.2} parent=19 // pred_fallthru
        _
      // Predicated region
      $region25: #{block_forward.2} parent=19 // pred_check
        %p241 = pneg %p82
      $region26: #{block_forward.2} parent=19 // pred_check_branch
        %243 = sbr.rel (%p241) target = $region28
      $region27: #{block_forward.2} parent=19 // pred_region
        %s244 = smul.u32 %s20, 8
        %s245 = ssub.s32 %s244, 1
        %p246 = scmp.gt.s32.totalorder %s245, 0
        %s247 = scalar_select %p246, %s245, 0
        %p248 = scmp.lt.s32.totalorder %s19, 1
        %s249 = scalar_select %p248, %s19, 1
        %p250 = scmp.lt.s32.totalorder %s247, 15
        %s251 = scalar_select %p250, %s247, 15
        %s252 = smul.addr %s251, 2
        %s253 = smul.addr %s249, 32
        %s254 = sadd.s32 %s252, %s253
        %s255 = smul.addr %s254, 8
        %s256 = scalar_lea.vmem %s1, %s255
        %s257 = smul.u32 %s20, 8
        %s258 = ssub.s32 %s257, 1
        %p259 = scmp.gt.s32.totalorder %s258, 0
        %s260 = scalar_select %p259, %s258, 0
      $region28: #{block_forward.2} parent=19 // pred_fallthru
        _
      // Predicated region
      $region29: #{block_forward.2} parent=19 // pred_check
        %p261 = pneg %p118
      $region30: #{block_forward.2} parent=19 // pred_check_branch
        %263 = sbr.rel (%p261) target = $region32
      $region31: #{block_forward.2} parent=19 // pred_region
        %s264 = smul.u32 %s20, 8
        %s265 = sadd.s32 %s264, 8
        %p266 = scmp.lt.s32.totalorder %s265, 15
        %s267 = scalar_select %p266, %s265, 15
        %p268 = scmp.lt.s32.totalorder %s19, 1
        %s269 = scalar_select %p268, %s19, 1
        %p270 = scmp.lt.s32.totalorder %s267, 15
        %s271 = scalar_select %p270, %s267, 15
        %s272 = smul.addr %s271, 2
        %s273 = smul.addr %s269, 32
        %s274 = sadd.s32 %s272, %s273
        %s275 = smul.addr %s274, 8
        %s276 = scalar_lea.vmem %s2, %s275
        %s277 = smul.u32 %s20, 8
        %s278 = sadd.s32 %s277, 8
        %p279 = scmp.lt.s32.totalorder %s278, 15
        %s280 = scalar_select %p279, %s278, 15
      $region32: #{block_forward.2} parent=19 // pred_fallthru
        _
    $region20: #{block_forward.2} parent=5 // pred_fallthru
      _
    %p281 = scmp.le.s32.totalorder 1, %s12
    %p282 = scmp.lt.s32.totalorder %s12, 5
    %p283 = pnand %p281, %p282
    %p284 = pneg %p283
    // Predicated region
    $region33: #{block_forward.2} parent=5 // pred_check
      _
    $region34: #{block_forward.2} parent=5 // pred_check_branch
      %286 = sbr.rel (%p283) target = $region36
    $region35: #{block_forward.2} parent=5 // pred_region
      %s287 = ssub.s32 %s12, 1
      %s288 = smul.u32 8, %s22
      %p289 = scmp.lt.s32.totalorder %s21, 1
      %s290 = scalar_select %p289, %s21, 1
      %p291 = scmp.lt.s32.totalorder %s288, 15
      %s292 = scalar_select %p291, %s288, 15
      %s293 = smul.addr %s292, 2
      %s294 = smul.addr %s290, 32
      %s295 = sadd.s32 %s293, %s294
      %s296 = smul.addr %s295, 8
      %s297 = scalar_lea.vmem %s0, %s296
      %p298 = pneg %p52
      %p299 = pneg %p49
      %s300 = smul.u32 %s22, 8
      %s301 = ssub.s32 %s300, 1
      %p302 = scmp.gt.s32.totalorder %s301, 0
      %s303 = scalar_select %p302, %s301, 0
      %p304 = scmp.lt.s32.totalorder %s21, 1
      %s305 = scalar_select %p304, %s21, 1
      %p306 = scmp.lt.s32.totalorder %s303, 15
      %s307 = scalar_select %p306, %s303, 15
      %s308 = smul.addr %s307, 2
      %s309 = smul.addr %s305, 32
      %s310 = sadd.s32 %s308, %s309
      %s311 = smul.addr %s310, 8
      %s312 = scalar_lea.vmem %s1, %s311
      %p313 = pneg %p88
      %p314 = pneg %p85
      %s315 = smul.u32 %s22, 8
      %s316 = sadd.s32 %s315, 8
      %p317 = scmp.lt.s32.totalorder %s316, 15
      %s318 = scalar_select %p317, %s316, 15
      %p319 = scmp.lt.s32.totalorder %s21, 1
      %s320 = scalar_select %p319, %s21, 1
      %p321 = scmp.lt.s32.totalorder %s318, 15
      %s322 = scalar_select %p321, %s318, 15
      %s323 = smul.addr %s322, 2
      %s324 = smul.addr %s320, 32
      %s325 = sadd.s32 %s323, %s324
      %s326 = smul.addr %s325, 8
      %s327 = scalar_lea.vmem %s2, %s326
      %p328 = pneg %p124
      %p329 = pneg %p121
      %p330 = pneg %p145
      %p331 = pneg %p142
      %p332 = pneg %p175
      %p333 = pneg %p172
      %s334 = smul.u32 %s21, 2
      %s335 = sadd.s32 %s334, %s22
      %p336 = scmp.lt.s32.totalorder %s335, 3
      %s337 = scalar_select %p336, %s335, 3
      %s338 = smul.addr %s337, 16
      %s339 = smul.addr %s338, 8
      %s340 = scalar_lea.vmem %s4, %s339
      %p341 = pneg %p205
      %p342 = pneg %p202
      %s343 = smul.u32 %s21, 2
      %s344 = sadd.s32 %s343, %s22
      %p345 = scmp.lt.s32.totalorder %s344, 3
      %s346 = scalar_select %p345, %s344, 3
      %s347 = smul.addr %s346, 2
      %s348 = scalar_lea.vmem %s5, %s347
      %s349 = smul.u32 8, %s22
      %p350 = scmp.lt.s32.totalorder %s21, 1
      %s351 = scalar_select %p350, %s21, 1
      %p352 = scmp.lt.s32.totalorder %s349, 15
      %s353 = scalar_select %p352, %s349, 15
      %s354 = smul.addr %s353, 2
      %s355 = smul.addr %s351, 32
      %s356 = sadd.s32 %s354, %s355
      %s357 = smul.addr %s356, 8
      %s358 = scalar_lea.vmem %s0, %s357
      %s359 = smul.u32 8, %s22
      %s360 = smul.u32 %s22, 8
      %s361 = ssub.s32 %s360, 1
      %p362 = scmp.gt.s32.totalorder %s361, 0
      %s363 = scalar_select %p362, %s361, 0
      %p364 = scmp.lt.s32.totalorder %s21, 1
      %s365 = scalar_select %p364, %s21, 1
      %p366 = scmp.lt.s32.totalorder %s363, 15
      %s367 = scalar_select %p366, %s363, 15
      %s368 = smul.addr %s367, 2
      %s369 = smul.addr %s365, 32
      %s370 = sadd.s32 %s368, %s369
      %s371 = smul.addr %s370, 8
      %s372 = scalar_lea.vmem %s1, %s371
      %s373 = smul.u32 %s22, 8
      %s374 = ssub.s32 %s373, 1
      %p375 = scmp.gt.s32.totalorder %s374, 0
      %s376 = scalar_select %p375, %s374, 0
      %s377 = smul.u32 %s22, 8
      %s378 = sadd.s32 %s377, 8
      %p379 = scmp.lt.s32.totalorder %s378, 15
      %s380 = scalar_select %p379, %s378, 15
      %p381 = scmp.lt.s32.totalorder %s21, 1
      %s382 = scalar_select %p381, %s21, 1
      %p383 = scmp.lt.s32.totalorder %s380, 15
      %s384 = scalar_select %p383, %s380, 15
      %s385 = smul.addr %s384, 2
      %s386 = smul.addr %s382, 32
      %s387 = sadd.s32 %s385, %s386
      %s388 = smul.addr %s387, 8
      %s389 = scalar_lea.vmem %s2, %s388
      %s390 = smul.u32 %s22, 8
      %s391 = sadd.s32 %s390, 8
      %p392 = scmp.lt.s32.totalorder %s391, 15
      %s393 = scalar_select %p392, %s391, 15
      %s394 = smul.u32 %s21, 2
      %s395 = sadd.s32 %s394, %s22
      %p396 = scmp.lt.s32.totalorder %s395, 3
      %s397 = scalar_select %p396, %s395, 3
      %s398 = smul.addr %s397, 16
      %s399 = smul.addr %s398, 8
      %s400 = scalar_lea.vmem %s4, %s399
      %s401 = smul.u32 %s21, 2
      %s402 = sadd.s32 %s401, %s22
      %s403 = smul.u32 %s21, 2
      %s404 = sadd.s32 %s403, %s22
      %p405 = scmp.lt.s32.totalorder %s404, 3
      %s406 = scalar_select %p405, %s404, 3
      %s407 = smul.addr %s406, 2
      %s408 = scalar_lea.vmem %s5, %s407
      %s409 = smul.u32 %s21, 2
      %s410 = sadd.s32 %s409, %s22
      %vm411 = vcmask 31744
      %412 = vst.msk [vmem:[#allocation2] sm:$0xff] %vm411, 0.0
      %413 = vst.msk [vmem:[#allocation2 + $0x8] sm:$0xff] %vm411, 0.0
      %vm414 = vcmask 25600
      %415 = vst.msk [vmem:[#allocation2 + $0x10] sm:$0x3] %vm414, 0.0
      %416 = vst.msk [vmem:[#allocation2 + $0x18] sm:$0xff] %vm411, 0.0
      %417 = vst.msk [vmem:[#allocation2 + $0x20] sm:$0xff] %vm411, 0.0
      %418 = vst.msk [vmem:[#allocation2 + $0x28] sm:$0x3] %vm414, 0.0
      %419 = vst.msk [vmem:[#allocation2 + $0x30] sm:$0xff] %vm411, 0.0
      %420 = vst.msk [vmem:[#allocation2 + $0x38] sm:$0xff] %vm411, 0.0
      %421 = vst.msk [vmem:[#allocation2 + $0x40] sm:$0x3] %vm414, 0.0
      %422 = vst.msk [vmem:[#allocation2 + $0x48] sm:$0xff] %vm411, 0.0
      %423 = vst.msk [vmem:[#allocation2 + $0x50] sm:$0xff] %vm411, 0.0
      %424 = vst.msk [vmem:[#allocation2 + $0x58] sm:$0x3] %vm414, 0.0
      %425 = vst.msk [vmem:[#allocation2 + $0x60] sm:$0xff] %vm411, 0.0
      %426 = vst.msk [vmem:[#allocation2 + $0x68] sm:$0xff] %vm411, 0.0
      %427 = vst.msk [vmem:[#allocation2 + $0x70] sm:$0x3] %vm414, 0.0
      %428 = vst.msk [vmem:[#allocation2 + $0x78] sm:$0xff] %vm411, 0.0
      %429 = vst.msk [vmem:[#allocation2 + $0x80] sm:$0xff] %vm411, 0.0
      %430 = vst.msk [vmem:[#allocation2 + $0x88] sm:$0x3] %vm414, 0.0
      %431 = vst.msk [vmem:[#allocation2 + $0x90] sm:$0xff] %vm411, 0.0
      %432 = vst.msk [vmem:[#allocation2 + $0x98] sm:$0xff] %vm411, 0.0
      %433 = vst.msk [vmem:[#allocation2 + $0xa0] sm:$0x3] %vm414, 0.0
      %434 = vst.msk [vmem:[#allocation2 + $0xa8] sm:$0xff] %vm411, 0.0
      %435 = vst.msk [vmem:[#allocation2 + $0xb0] sm:$0xff] %vm411, 0.0
      %436 = vst.msk [vmem:[#allocation2 + $0xb8] sm:$0x3] %vm414, 0.0
      %437 = vst.msk [vmem:[#allocation2 + $0xc0] sm:$0xff] %vm411, 0.0
      %438 = vst.msk [vmem:[#allocation2 + $0xc8] sm:$0xff] %vm411, 0.0
      %439 = vst.msk [vmem:[#allocation2 + $0xd0] sm:$0x3] %vm414, 0.0
      %440 = vst.msk [vmem:[#allocation2 + $0xd8] sm:$0xff] %vm411, 0.0
      %441 = vst.msk [vmem:[#allocation2 + $0xe0] sm:$0xff] %vm411, 0.0
      %442 = vst.msk [vmem:[#allocation2 + $0xe8] sm:$0x3] %vm414, 0.0
      %v443 = vld [vmem:[%s358] sm:$0xff]
      %v444 = vld [vmem:[%s358 + $0x8] sm:$0xff]
      %v445 = vld [vmem:[%s358 + $0x10] sm:$0xff]
      %v446 = vld [vmem:[%s358 + $0x18] sm:$0xff]
      %v447 = vld [vmem:[%s358 + $0x20] sm:$0xff]
      %v448 = vld [vmem:[%s358 + $0x28] sm:$0xff]
      %v449 = vld [vmem:[%s358 + $0x30] sm:$0xff]
      %v450 = vld [vmem:[%s358 + $0x38] sm:$0xff]
      %v451 = vld [vmem:[%s358 + $0x40] sm:$0xff]
      %v452 = vld [vmem:[%s358 + $0x48] sm:$0xff]
      %v453 = vld [vmem:[%s358 + $0x50] sm:$0xff]
      %v454 = vld [vmem:[%s358 + $0x58] sm:$0xff]
      %v455 = vld [vmem:[%s358 + $0x60] sm:$0xff]
      %v456 = vld [vmem:[%s358 + $0x68] sm:$0xff]
      %v457 = vld [vmem:[%s358 + $0x70] sm:$0xff]
      %v458 = vld [vmem:[%s358 + $0x78] sm:$0xff]
      %s459 = scalar_lea.vmem [#allocation2], 24
      %460 = vst.msk [vmem:[%s459 + $0x1] sm:$0xff] %vm411, %v443
      %461 = vst.msk [vmem:[%s459 + $0x9] sm:$0xff] %vm411, %v444
      %462 = vst.msk [vmem:[%s459 + $0x19] sm:$0xff] %vm411, %v445
      %463 = vst.msk [vmem:[%s459 + $0x21] sm:$0xff] %vm411, %v446
      %464 = vst.msk [vmem:[%s459 + $0x31] sm:$0xff] %vm411, %v447
      %465 = vst.msk [vmem:[%s459 + $0x39] sm:$0xff] %vm411, %v448
      %466 = vst.msk [vmem:[%s459 + $0x49] sm:$0xff] %vm411, %v449
      %467 = vst.msk [vmem:[%s459 + $0x51] sm:$0xff] %vm411, %v450
      %468 = vst.msk [vmem:[%s459 + $0x61] sm:$0xff] %vm411, %v451
      %469 = vst.msk [vmem:[%s459 + $0x69] sm:$0xff] %vm411, %v452
      %470 = vst.msk [vmem:[%s459 + $0x79] sm:$0xff] %vm411, %v453
      %471 = vst.msk [vmem:[%s459 + $0x81] sm:$0xff] %vm411, %v454
      %472 = vst.msk [vmem:[%s459 + $0x91] sm:$0xff] %vm411, %v455
      %473 = vst.msk [vmem:[%s459 + $0x99] sm:$0xff] %vm411, %v456
      %474 = vst.msk [vmem:[%s459 + $0xa9] sm:$0xff] %vm411, %v457
      %475 = vst.msk [vmem:[%s459 + $0xb1] sm:$0xff] %vm411, %v458
      %p476 = scmp.gt.s32.totalorder %s22, 0
      // Predicated region
      $region37: #{block_forward.2} parent=35 // pred_check
        %p477 = pneg %p476
      $region38: #{block_forward.2} parent=35 // pred_check_branch
        %479 = sbr.rel (%p477) target = $region40
      $region39: #{block_forward.2} parent=35 // pred_region
        %v480 = vld [vmem:[%s372] sm:$0xff]
        %v481 = vld [vmem:[%s372 + $0x8] sm:$0xff]
        %482 = vst.msk [vmem:[#allocation2 + $0x1] sm:$0xff] %vm411, %v480
        %483 = vst.msk [vmem:[#allocation2 + $0x9] sm:$0xff] %vm411, %v481
      $region40: #{block_forward.2} parent=35 // pred_fallthru
        _
      %p484 = scmp.lt.s32.totalorder %s22, 1
      // Predicated region
      $region41: #{block_forward.2} parent=35 // pred_check
        %p485 = pneg %p484
      $region42: #{block_forward.2} parent=35 // pred_check_branch
        %487 = sbr.rel (%p485) target = $region44
      $region43: #{block_forward.2} parent=35 // pred_region
        %v488 = vld [vmem:[%s389] sm:$0xff]
        %v489 = vld [vmem:[%s389 + $0x8] sm:$0xff]
        %s490 = scalar_lea.vmem [#allocation2], 216
        %491 = vst.msk [vmem:[%s490 + $0x1] sm:$0xff] %vm411, %v488
        %492 = vst.msk [vmem:[%s490 + $0x9] sm:$0xff] %vm411, %v489
      $region44: #{block_forward.2} parent=35 // pred_fallthru
        _
      %vm493 = vcmask 64512
      %494 = vst.msk [vmem:[#allocation3] sm:$0xff] %vm493, 0.0
      %495 = vst.msk [vmem:[#allocation3 + $0x8] sm:$0xff] %vm493, 0.0
      %496 = vst.msk [vmem:[#allocation3 + $0x10] sm:$0xff] %vm493, 0.0
      %497 = vst.msk [vmem:[#allocation3 + $0x18] sm:$0xff] %vm493, 0.0
      %498 = vst.msk [vmem:[#allocation3 + $0x20] sm:$0xff] %vm493, 0.0
      %499 = vst.msk [vmem:[#allocation3 + $0x28] sm:$0xff] %vm493, 0.0
      %500 = vst.msk [vmem:[#allocation3 + $0x30] sm:$0xff] %vm493, 0.0
      %501 = vst.msk [vmem:[#allocation3 + $0x38] sm:$0xff] %vm493, 0.0
      %502 = vst.msk [vmem:[#allocation3 + $0x40] sm:$0xff] %vm493, 0.0
      %503 = vst.msk [vmem:[#allocation3 + $0x48] sm:$0xff] %vm493, 0.0
      %504 = vst.msk [vmem:[#allocation3 + $0x50] sm:$0xff] %vm493, 0.0
      %505 = vst.msk [vmem:[#allocation3 + $0x58] sm:$0xff] %vm493, 0.0
      %506 = vst.msk [vmem:[#allocation3 + $0x60] sm:$0xff] %vm493, 0.0
      %507 = vst.msk [vmem:[#allocation3 + $0x68] sm:$0xff] %vm493, 0.0
      %508 = vst.msk [vmem:[#allocation3 + $0x70] sm:$0xff] %vm493, 0.0
      %509 = vst.msk [vmem:[#allocation3 + $0x78] sm:$0xff] %vm493, 0.0
      %v510 = vld [vmem:[#allocation2] sm:$0xff]
      %v511 = vld [vmem:[#allocation2 + $0x8] sm:$0xff]
      %v512 = vld [vmem:[#allocation2 + $0x18] sm:$0xff]
      %v513 = vld [vmem:[#allocation2 + $0x20] sm:$0xff]
      %v514 = vld [vmem:[#allocation2 + $0x30] sm:$0xff]
      %v515 = vld [vmem:[#allocation2 + $0x38] sm:$0xff]
      %v516 = vld [vmem:[#allocation2 + $0x48] sm:$0xff]
      %v517 = vld [vmem:[#allocation2 + $0x50] sm:$0xff]
      %v518 = vld [vmem:[#allocation2 + $0x60] sm:$0xff]
      %v519 = vld [vmem:[#allocation2 + $0x68] sm:$0xff]
      %v520 = vld [vmem:[#allocation2 + $0x78] sm:$0xff]
      %v521 = vld [vmem:[#allocation2 + $0x80] sm:$0xff]
      %v522 = vld [vmem:[#allocation2 + $0x90] sm:$0xff]
      %v523 = vld [vmem:[#allocation2 + $0x98] sm:$0xff]
      %v524 = vld [vmem:[#allocation2 + $0xa8] sm:$0xff]
      %v525 = vld [vmem:[#allocation2 + $0xb0] sm:$0xff]
      %v526 = vld [vmem:[#allocation3] sm:$0xff]
      %v527 = vld [vmem:[#allocation3 + $0x8] sm:$0xff]
      %v528 = vld [vmem:[#allocation3 + $0x10] sm:$0xff]
      %v529 = vld [vmem:[#allocation3 + $0x18] sm:$0xff]
      %v530 = vld [vmem:[#allocation3 + $0x20] sm:$0xff]
      %v531 = vld [vmem:[#allocation3 + $0x28] sm:$0xff]
      %v532 = vld [vmem:[#allocation3 + $0x30] sm:$0xff]
      %v533 = vld [vmem:[#allocation3 + $0x38] sm:$0xff]
      %v534 = vld [vmem:[#allocation3 + $0x40] sm:$0xff]
      %v535 = vld [vmem:[#allocation3 + $0x48] sm:$0xff]
      %v536 = vld [vmem:[#allocation3 + $0x50] sm:$0xff]
      %v537 = vld [vmem:[#allocation3 + $0x58] sm:$0xff]
      %v538 = vld [vmem:[#allocation3 + $0x60] sm:$0xff]
      %v539 = vld [vmem:[#allocation3 + $0x68] sm:$0xff]
      %v540 = vld [vmem:[#allocation3 + $0x70] sm:$0xff]
      %v541 = vld [vmem:[#allocation3 + $0x78] sm:$0xff]
      %v542 = vld [vmem:[%s3] sm:$0xf]
      %v544 = vsel %vm411, %v510, 0
      %v547 = vsel %vm411, %v511, 0
      %v550 = vsel %vm411, %v512, 0
      %v553 = vsel %vm411, %v513, 0
      %v556 = vsel %vm411, %v514, 0
      %v559 = vsel %vm411, %v515, 0
      %v562 = vsel %vm411, %v516, 0
      %v565 = vsel %vm411, %v517, 0
      %v568 = vsel %vm411, %v518, 0
      %v571 = vsel %vm411, %v519, 0
      %v574 = vsel %vm411, %v520, 0
      %v577 = vsel %vm411, %v521, 0
      %v580 = vsel %vm411, %v522, 0
      %v583 = vsel %vm411, %v523, 0
      %v586 = vsel %vm411, %v524, 0
      %v589 = vsel %vm411, %v525, 0
      %vm591 = vcmask 1043456
      %v593 = vsel %vm591, %v542, 0
      %595 = vmatprep.subr.mxu0 0.0
      %596 = vmatpush1.msra.mxu0 %v593
      %597 = vmatprep.subr.mxu0 0.0
      %598 = vmatpush1.msra.mxu0 0.0
      %599 = vmatprep.subr.mxu0 0.0
      %600 = vmatpush1.msra.mxu0 0.0
      %601 = vmatprep.subr.mxu0 0.0
      %602 = vmatpush1.msra.mxu0 0.0
      %603 = vmatprep.subr.mxu0 0.0
      %604 = vmatpush1.msra.mxu0 0.0
      %605 = vmatprep.subr.mxu0 0.0
      %606 = vmatpush1.msra.mxu0 0.0
      %607 = vmatprep.subr.mxu0 0.0
      %608 = vmatpush1.msra.mxu0 0.0
      %609 = vmatprep.subr.mxu0 0.0
      %610 = vmatpush1.msra.mxu0 0.0
      %611 = vmatprep.subr.mxu0 0.0
      %612 = vmatpush1.msra.mxu0 0.0
      %613 = vmatprep.subr.mxu0 0.0
      %614 = vmatpush1.msra.mxu0 0.0
      %615 = vmatprep.subr.mxu0 0.0
      %616 = vmatpush1.msra.mxu0 0.0
      %617 = vmatprep.subr.mxu0 0.0
      %618 = vmatpush1.msra.mxu0 0.0
      %619 = vmatprep.subr.mxu0 0.0
      %620 = vmatpush1.msra.mxu0 0.0
      %621 = vmatprep.subr.mxu0 0.0
      %622 = vmatpush1.msra.mxu0 0.0
      %623 = vmatprep.subr.mxu0 0.0
      %624 = vmatpush1.msra.mxu0 0.0
      %625 = vmatprep.subr.mxu0 0.0
      %626 = vmatpush1.msra.mxu0 0.0
      %627 = vmatprep.subr.mxu0 0.0
      %628 = vmatpush1.msra.mxu0 0.0
      %629 = vmatprep.subr.mxu0 0.0
      %630 = vmatpush1.msra.mxu0 0.0
      %631 = vmatprep.subr.mxu0 0.0
      %632 = vmatpush1.msra.mxu0 0.0
      %633 = vmatprep.subr.mxu0 0.0
      %634 = vmatpush1.msra.mxu0 0.0
      %635 = vmatprep.subr.mxu0 0.0
      %636 = vmatpush1.msra.mxu0 0.0
      %637 = vmatprep.subr.mxu0 0.0
      %638 = vmatpush1.msra.mxu0 0.0
      %639 = vmatprep.subr.mxu0 0.0
      %640 = vmatpush1.msra.mxu0 0.0
      %641 = vmatprep.subr.mxu0 0.0
      %642 = vmatpush1.msra.mxu0 0.0
      %643 = vmatprep.subr.mxu0 0.0
      %644 = vmatpush1.msra.mxu0 0.0
      %645 = vmatprep.subr.mxu0 0.0
      %646 = vmatpush1.msra.mxu0 0.0
      %647 = vmatprep.subr.mxu0 0.0
      %648 = vmatpush1.msra.mxu0 0.0
      %649 = vmatprep.subr.mxu0 0.0
      %650 = vmatpush1.msra.mxu0 0.0
      %651 = vmatprep.subr.mxu0 0.0
      %652 = vmatpush1.msra.mxu0 0.0
      %653 = vmatprep.subr.mxu0 0.0
      %654 = vmatpush1.msra.mxu0 0.0
      %655 = vmatprep.subr.mxu0 0.0
      %656 = vmatpush1.msra.mxu0 0.0
      %657 = vmatprep.subr.mxu0 0.0
      %658 = vmatpush1.msra.mxu0 0.0
      %659 = vmatprep.mubr.f32.mxu0 0.0
      %660 = vmatmul.mubr.f32.gmra.mrb[0].mxu0 %v544
      %v661 = vpop.f32.mrb[0].mxu0
      %v662 = vadd.f32 0.0, %v661
      %v663 = vpop.f32.mrb[0].mxu0
      %664 = vmatprep.mubr.f32.mxu0 0.0
      %665 = vmatmul.mubr.f32.gmra.mrb[0].mxu0 %v547
      %v666 = vpop.f32.mrb[0].mxu0
      %v667 = vadd.f32 0.0, %v666
      %v668 = vpop.f32.mrb[0].mxu0
      %669 = vmatprep.mubr.f32.mxu0 0.0
      %670 = vmatmul.mubr.f32.gmra.mrb[0].mxu0 %v550
      %v671 = vpop.f32.mrb[0].mxu0
      %v672 = vadd.f32 0.0, %v671
      %v673 = vpop.f32.mrb[0].mxu0
      %674 = vmatprep.mubr.f32.mxu0 0.0
      %675 = vmatmul.mubr.f32.gmra.mrb[0].mxu0 %v553
      %v676 = vpop.f32.mrb[0].mxu0
      %v677 = vadd.f32 0.0, %v676
      %v678 = vpop.f32.mrb[0].mxu0
      %679 = vmatprep.mubr.f32.mxu0 0.0
      %680 = vmatmul.mubr.f32.gmra.mrb[0].mxu0 %v556
      %v681 = vpop.f32.mrb[0].mxu0
      %v682 = vadd.f32 0.0, %v681
      %v683 = vpop.f32.mrb[0].mxu0
      %684 = vmatprep.mubr.f32.mxu0 0.0
      %685 = vmatmul.mubr.f32.gmra.mrb[0].mxu0 %v559
      %v686 = vpop.f32.mrb[0].mxu0
      %v687 = vadd.f32 0.0, %v686
      %v688 = vpop.f32.mrb[0].mxu0
      %689 = vmatprep.mubr.f32.mxu0 0.0
      %690 = vmatmul.mubr.f32.gmra.mrb[0].mxu0 %v562
      %v691 = vpop.f32.mrb[0].mxu0
      %v692 = vadd.f32 0.0, %v691
      %v693 = vpop.f32.mrb[0].mxu0
      %694 = vmatprep.mubr.f32.mxu0 0.0
      %695 = vmatmul.mubr.f32.gmra.mrb[0].mxu0 %v565
      %v696 = vpop.f32.mrb[0].mxu0
      %v697 = vadd.f32 0.0, %v696
      %v698 = vpop.f32.mrb[0].mxu0
      %699 = vmatprep.mubr.f32.mxu0 0.0
      %700 = vmatmul.mubr.f32.gmra.mrb[0].mxu0 %v568
      %v701 = vpop.f32.mrb[0].mxu0
      %v702 = vadd.f32 0.0, %v701
      %v703 = vpop.f32.mrb[0].mxu0
      %704 = vmatprep.mubr.f32.mxu0 0.0
      %705 = vmatmul.mubr.f32.gmra.mrb[0].mxu0 %v571
      %v706 = vpop.f32.mrb[0].mxu0
      %v707 = vadd.f32 0.0, %v706
      %v708 = vpop.f32.mrb[0].mxu0
      %709 = vmatprep.mubr.f32.mxu0 0.0
      %710 = vmatmul.mubr.f32.gmra.mrb[0].mxu0 %v574
      %v711 = vpop.f32.mrb[0].mxu0
      %v712 = vadd.f32 0.0, %v711
      %v713 = vpop.f32.mrb[0].mxu0
      %714 = vmatprep.mubr.f32.mxu0 0.0
      %715 = vmatmul.mubr.f32.gmra.mrb[0].mxu0 %v577
      %v716 = vpop.f32.mrb[0].mxu0
      %v717 = vadd.f32 0.0, %v716
      %v718 = vpop.f32.mrb[0].mxu0
      %719 = vmatprep.mubr.f32.mxu0 0.0
      %720 = vmatmul.mubr.f32.gmra.mrb[0].mxu0 %v580
      %v721 = vpop.f32.mrb[0].mxu0
      %v722 = vadd.f32 0.0, %v721
      %v723 = vpop.f32.mrb[0].mxu0
      %724 = vmatprep.mubr.f32.mxu0 0.0
      %725 = vmatmul.mubr.f32.gmra.mrb[0].mxu0 %v583
      %v726 = vpop.f32.mrb[0].mxu0
      %v727 = vadd.f32 0.0, %v726
      %v728 = vpop.f32.mrb[0].mxu0
      %729 = vmatprep.mubr.f32.mxu0 0.0
      %730 = vmatmul.mubr.f32.gmra.mrb[0].mxu0 %v586
      %v731 = vpop.f32.mrb[0].mxu0
      %v732 = vadd.f32 0.0, %v731
      %v733 = vpop.f32.mrb[0].mxu0
      %734 = vmatprep.mubr.f32.mxu0 0.0
      %735 = vmatmul.mubr.f32.gmra.mrb[0].mxu0 %v589
      %v736 = vpop.f32.mrb[0].mxu0
      %v737 = vadd.f32 0.0, %v736
      %v738 = vpop.f32.mrb[0].mxu0
      %739 = vdwg.mxu0
      %v740 = vadd.f32 %v526, %v662
      %v741 = vadd.f32 %v527, %v667
      %v742 = vadd.f32 %v528, %v672
      %v743 = vadd.f32 %v529, %v677
      %v744 = vadd.f32 %v530, %v682
      %v745 = vadd.f32 %v531, %v687
      %v746 = vadd.f32 %v532, %v692
      %v747 = vadd.f32 %v533, %v697
      %v748 = vadd.f32 %v534, %v702
      %v749 = vadd.f32 %v535, %v707
      %v750 = vadd.f32 %v536, %v712
      %v751 = vadd.f32 %v537, %v717
      %v752 = vadd.f32 %v538, %v722
      %v753 = vadd.f32 %v539, %v727
      %v754 = vadd.f32 %v540, %v732
      %v755 = vadd.f32 %v541, %v737
      %756 = vst.msk [vmem:[#allocation3] sm:$0xff] %vm493, %v740
      %757 = vst.msk [vmem:[#allocation3 + $0x8] sm:$0xff] %vm493, %v741
      %758 = vst.msk [vmem:[#allocation3 + $0x10] sm:$0xff] %vm493, %v742
      %759 = vst.msk [vmem:[#allocation3 + $0x18] sm:$0xff] %vm493, %v743
      %760 = vst.msk [vmem:[#allocation3 + $0x20] sm:$0xff] %vm493, %v744
      %761 = vst.msk [vmem:[#allocation3 + $0x28] sm:$0xff] %vm493, %v745
      %762 = vst.msk [vmem:[#allocation3 + $0x30] sm:$0xff] %vm493, %v746
      %763 = vst.msk [vmem:[#allocation3 + $0x38] sm:$0xff] %vm493, %v747
      %764 = vst.msk [vmem:[#allocation3 + $0x40] sm:$0xff] %vm493, %v748
      %765 = vst.msk [vmem:[#allocation3 + $0x48] sm:$0xff] %vm493, %v749
      %766 = vst.msk [vmem:[#allocation3 + $0x50] sm:$0xff] %vm493, %v750
      %767 = vst.msk [vmem:[#allocation3 + $0x58] sm:$0xff] %vm493, %v751
      %768 = vst.msk [vmem:[#allocation3 + $0x60] sm:$0xff] %vm493, %v752
      %769 = vst.msk [vmem:[#allocation3 + $0x68] sm:$0xff] %vm493, %v753
      %770 = vst.msk [vmem:[#allocation3 + $0x70] sm:$0xff] %vm493, %v754
      %771 = vst.msk [vmem:[#allocation3 + $0x78] sm:$0xff] %vm493, %v755
      %v772 = vld [vmem:[#allocation2 + $0x1] sm:$0xff]
      %v773 = vld [vmem:[#allocation2 + $0x9] sm:$0xff]
      %v774 = vld [vmem:[#allocation2 + $0x19] sm:$0xff]
      %v775 = vld [vmem:[#allocation2 + $0x21] sm:$0xff]
      %v776 = vld [vmem:[#allocation2 + $0x31] sm:$0xff]
      %v777 = vld [vmem:[#allocation2 + $0x39] sm:$0xff]
      %v778 = vld [vmem:[#allocation2 + $0x49] sm:$0xff]
      %v779 = vld [vmem:[#allocation2 + $0x51] sm:$0xff]
      %v780 = vld [vmem:[#allocation2 + $0x61] sm:$0xff]
      %v781 = vld [vmem:[#allocation2 + $0x69] sm:$0xff]
      %v782 = vld [vmem:[#allocation2 + $0x79] sm:$0xff]
      %v783 = vld [vmem:[#allocation2 + $0x81] sm:$0xff]
      %v784 = vld [vmem:[#allocation2 + $0x91] sm:$0xff]
      %v785 = vld [vmem:[#allocation2 + $0x99] sm:$0xff]
      %v786 = vld [vmem:[#allocation2 + $0xa9] sm:$0xff]
      %v787 = vld [vmem:[#allocation2 + $0xb1] sm:$0xff]
      %v788 = vld [vmem:[#allocation3] sm:$0xff]
      %v789 = vld [vmem:[#allocation3 + $0x8] sm:$0xff]
      %v790 = vld [vmem:[#allocation3 + $0x10] sm:$0xff]
      %v791 = vld [vmem:[#allocation3 + $0x18] sm:$0xff]
      %v792 = vld [vmem:[#allocation3 + $0x20] sm:$0xff]
      %v793 = vld [vmem:[#allocation3 + $0x28] sm:$0xff]
      %v794 = vld [vmem:[#allocation3 + $0x30] sm:$0xff]
      %v795 = vld [vmem:[#allocation3 + $0x38] sm:$0xff]
      %v796 = vld [vmem:[#allocation3 + $0x40] sm:$0xff]
      %v797 = vld [vmem:[#allocation3 + $0x48] sm:$0xff]
      %v798 = vld [vmem:[#allocation3 + $0x50] sm:$0xff]
      %v799 = vld [vmem:[#allocation3 + $0x58] sm:$0xff]
      %v800 = vld [vmem:[#allocation3 + $0x60] sm:$0xff]
      %v801 = vld [vmem:[#allocation3 + $0x68] sm:$0xff]
      %v802 = vld [vmem:[#allocation3 + $0x70] sm:$0xff]
      %v803 = vld [vmem:[#allocation3 + $0x78] sm:$0xff]
      %s804 = scalar_lea.vmem %s3, 4
      %v805 = vld [vmem:[%s804] sm:$0xf]
      %v807 = vsel %vm411, %v772, 0
      %v810 = vsel %vm411, %v773, 0
      %v813 = vsel %vm411, %v774, 0
      %v816 = vsel %vm411, %v775, 0
      %v819 = vsel %vm411, %v776, 0
      %v822 = vsel %vm411, %v777, 0
      %v825 = vsel %vm411, %v778, 0
      %v828 = vsel %vm411, %v779, 0
      %v831 = vsel %vm411, %v780, 0
      %v834 = vsel %vm411, %v781, 0
      %v837 = vsel %vm411, %v782, 0
      %v840 = vsel %vm411, %v783, 0
      %v843 = vsel %vm411, %v784, 0
      %v846 = vsel %vm411, %v785, 0
      %v849 = vsel %vm411, %v786, 0
      %v852 = vsel %vm411, %v787, 0
      %v855 = vsel %vm591, %v805, 0
      %857 = vmatprep.subr.mxu0 0.0
      %858 = vmatpush1.msra.mxu0 %v855
      %859 = vmatprep.subr.mxu0 0.0
      %860 = vmatpush1.msra.mxu0 0.0
      %861 = vmatprep.subr.mxu0 0.0
      %862 = vmatpush1.msra.mxu0 0.0
      %863 = vmatprep.subr.mxu0 0.0
      %864 = vmatpush1.msra.mxu0 0.0
      %865 = vmatprep.subr.mxu0 0.0
      %866 = vmatpush1.msra.mxu0 0.0
      %867 = vmatprep.subr.mxu0 0.0
      %868 = vmatpush1.msra.mxu0 0.0
      %869 = vmatprep.subr.mxu0 0.0
      %870 = vmatpush1.msra.mxu0 0.0
      %871 = vmatprep.subr.mxu0 0.0
      %872 = vmatpush1.msra.mxu0 0.0
      %873 = vmatprep.subr.mxu0 0.0
      %874 = vmatpush1.msra.mxu0 0.0
      %875 = vmatprep.subr.mxu0 0.0
      %876 = vmatpush1.msra.mxu0 0.0
      %877 = vmatprep.subr.mxu0 0.0
      %878 = vmatpush1.msra.mxu0 0.0
      %879 = vmatprep.subr.mxu0 0.0
      %880 = vmatpush1.msra.mxu0 0.0
      %881 = vmatprep.subr.mxu0 0.0
      %882 = vmatpush1.msra.mxu0 0.0
      %883 = vmatprep.subr.mxu0 0.0
      %884 = vmatpush1.msra.mxu0 0.0
      %885 = vmatprep.subr.mxu0 0.0
      %886 = vmatpush1.msra.mxu0 0.0
      %887 = vmatprep.subr.mxu0 0.0
      %888 = vmatpush1.msra.mxu0 0.0
      %889 = vmatprep.subr.mxu0 0.0
      %890 = vmatpush1.msra.mxu0 0.0
      %891 = vmatprep.subr.mxu0 0.0
      %892 = vmatpush1.msra.mxu0 0.0
      %893 = vmatprep.subr.mxu0 0.0
      %894 = vmatpush1.msra.mxu0 0.0
      %895 = vmatprep.subr.mxu0 0.0
      %896 = vmatpush1.msra.mxu0 0.0
      %897 = vmatprep.subr.mxu0 0.0
      %898 = vmatpush1.msra.mxu0 0.0
      %899 = vmatprep.subr.mxu0 0.0
      %900 = vmatpush1.msra.mxu0 0.0
      %901 = vmatprep.subr.mxu0 0.0
      %902 = vmatpush1.msra.mxu0 0.0
      %903 = vmatprep.subr.mxu0 0.0
      %904 = vmatpush1.msra.mxu0 0.0
      %905 = vmatprep.subr.mxu0 0.0
      %906 = vmatpush1.msra.mxu0 0.0
      %907 = vmatprep.subr.mxu0 0.0
      %908 = vmatpush1.msra.mxu0 0.0
      %909 = vmatprep.subr.mxu0 0.0
      %910 = vmatpush1.msra.mxu0 0.0
      %911 = vmatprep.subr.mxu0 0.0
      %912 = vmatpush1.msra.mxu0 0.0
      %913 = vmatprep.subr.mxu0 0.0
      %914 = vmatpush1.msra.mxu0 0.0
      %915 = vmatprep.subr.mxu0 0.0
      %916 = vmatpush1.msra.mxu0 0.0
      %917 = vmatprep.subr.mxu0 0.0
      %918 = vmatpush1.msra.mxu0 0.0
      %919 = vmatprep.subr.mxu0 0.0
      %920 = vmatpush1.msra.mxu0 0.0
      %921 = vmatprep.mubr.f32.mxu0 0.0
      %922 = vmatmul.mubr.f32.gmra.mrb[0].mxu0 %v807
      %v923 = vpop.f32.mrb[0].mxu0
      %v924 = vadd.f32 0.0, %v923
      %v925 = vpop.f32.mrb[0].mxu0
      %926 = vmatprep.mubr.f32.mxu0 0.0
      %927 = vmatmul.mubr.f32.gmra.mrb[0].mxu0 %v810
      %v928 = vpop.f32.mrb[0].mxu0
      %v929 = vadd.f32 0.0, %v928
      %v930 = vpop.f32.mrb[0].mxu0
      %931 = vmatprep.mubr.f32.mxu0 0.0
      %932 = vmatmul.mubr.f32.gmra.mrb[0].mxu0 %v813
      %v933 = vpop.f32.mrb[0].mxu0
      %v934 = vadd.f32 0.0, %v933
      %v935 = vpop.f32.mrb[0].mxu0
      %936 = vmatprep.mubr.f32.mxu0 0.0
      %937 = vmatmul.mubr.f32.gmra.mrb[0].mxu0 %v816
      %v938 = vpop.f32.mrb[0].mxu0
      %v939 = vadd.f32 0.0, %v938
      %v940 = vpop.f32.mrb[0].mxu0
      %941 = vmatprep.mubr.f32.mxu0 0.0
      %942 = vmatmul.mubr.f32.gmra.mrb[0].mxu0 %v819
      %v943 = vpop.f32.mrb[0].mxu0
      %v944 = vadd.f32 0.0, %v943
      %v945 = vpop.f32.mrb[0].mxu0
      %946 = vmatprep.mubr.f32.mxu0 0.0
      %947 = vmatmul.mubr.f32.gmra.mrb[0].mxu0 %v822
      %v948 = vpop.f32.mrb[0].mxu0
      %v949 = vadd.f32 0.0, %v948
      %v950 = vpop.f32.mrb[0].mxu0
      %951 = vmatprep.mubr.f32.mxu0 0.0
      %952 = vmatmul.mubr.f32.gmra.mrb[0].mxu0 %v825
      %v953 = vpop.f32.mrb[0].mxu0
      %v954 = vadd.f32 0.0, %v953
      %v955 = vpop.f32.mrb[0].mxu0
      %956 = vmatprep.mubr.f32.mxu0 0.0
      %957 = vmatmul.mubr.f32.gmra.mrb[0].mxu0 %v828
      %v958 = vpop.f32.mrb[0].mxu0
      %v959 = vadd.f32 0.0, %v958
      %v960 = vpop.f32.mrb[0].mxu0
      %961 = vmatprep.mubr.f32.mxu0 0.0
      %962 = vmatmul.mubr.f32.gmra.mrb[0].mxu0 %v831
      %v963 = vpop.f32.mrb[0].mxu0
      %v964 = vadd.f32 0.0, %v963
      %v965 = vpop.f32.mrb[0].mxu0
      %966 = vmatprep.mubr.f32.mxu0 0.0
      %967 = vmatmul.mubr.f32.gmra.mrb[0].mxu0 %v834
      %v968 = vpop.f32.mrb[0].mxu0
      %v969 = vadd.f32 0.0, %v968
      %v970 = vpop.f32.mrb[0].mxu0
      %971 = vmatprep.mubr.f32.mxu0 0.0
      %972 = vmatmul.mubr.f32.gmra.mrb[0].mxu0 %v837
      %v973 = vpop.f32.mrb[0].mxu0
      %v974 = vadd.f32 0.0, %v973
      %v975 = vpop.f32.mrb[0].mxu0
      %976 = vmatprep.mubr.f32.mxu0 0.0
      %977 = vmatmul.mubr.f32.gmra.mrb[0].mxu0 %v840
      %v978 = vpop.f32.mrb[0].mxu0
      %v979 = vadd.f32 0.0, %v978
      %v980 = vpop.f32.mrb[0].mxu0
      %981 = vmatprep.mubr.f32.mxu0 0.0
      %982 = vmatmul.mubr.f32.gmra.mrb[0].mxu0 %v843
      %v983 = vpop.f32.mrb[0].mxu0
      %v984 = vadd.f32 0.0, %v983
      %v985 = vpop.f32.mrb[0].mxu0
      %986 = vmatprep.mubr.f32.mxu0 0.0
      %987 = vmatmul.mubr.f32.gmra.mrb[0].mxu0 %v846
      %v988 = vpop.f32.mrb[0].mxu0
      %v989 = vadd.f32 0.0, %v988
      %v990 = vpop.f32.mrb[0].mxu0
      %991 = vmatprep.mubr.f32.mxu0 0.0
      %992 = vmatmul.mubr.f32.gmra.mrb[0].mxu0 %v849
      %v993 = vpop.f32.mrb[0].mxu0
      %v994 = vadd.f32 0.0, %v993
      %v995 = vpop.f32.mrb[0].mxu0
      %996 = vmatprep.mubr.f32.mxu0 0.0
      %997 = vmatmul.mubr.f32.gmra.mrb[0].mxu0 %v852
      %v998 = vpop.f32.mrb[0].mxu0
      %v999 = vadd.f32 0.0, %v998
      %v1000 = vpop.f32.mrb[0].mxu0
      %1001 = vdwg.mxu0
      %v1002 = vadd.f32 %v788, %v924
      %v1003 = vadd.f32 %v789, %v929
      %v1004 = vadd.f32 %v790, %v934
      %v1005 = vadd.f32 %v791, %v939
      %v1006 = vadd.f32 %v792, %v944
      %v1007 = vadd.f32 %v793, %v949
      %v1008 = vadd.f32 %v794, %v954
      %v1009 = vadd.f32 %v795, %v959
      %v1010 = vadd.f32 %v796, %v964
      %v1011 = vadd.f32 %v797, %v969
      %v1012 = vadd.f32 %v798, %v974
      %v1013 = vadd.f32 %v799, %v979
      %v1014 = vadd.f32 %v800, %v984
      %v1015 = vadd.f32 %v801, %v989
      %v1016 = vadd.f32 %v802, %v994
      %v1017 = vadd.f32 %v803, %v999
      %1018 = vst.msk [vmem:[#allocation3] sm:$0xff] %vm493, %v1002
      %1019 = vst.msk [vmem:[#allocation3 + $0x8] sm:$0xff] %vm493, %v1003
      %1020 = vst.msk [vmem:[#allocation3 + $0x10] sm:$0xff] %vm493, %v1004
      %1021 = vst.msk [vmem:[#allocation3 + $0x18] sm:$0xff] %vm493, %v1005
      %1022 = vst.msk [vmem:[#allocation3 + $0x20] sm:$0xff] %vm493, %v1006
      %1023 = vst.msk [vmem:[#allocation3 + $0x28] sm:$0xff] %vm493, %v1007
      %1024 = vst.msk [vmem:[#allocation3 + $0x30] sm:$0xff] %vm493, %v1008
      %1025 = vst.msk [vmem:[#allocation3 + $0x38] sm:$0xff] %vm493, %v1009
      %1026 = vst.msk [vmem:[#allocation3 + $0x40] sm:$0xff] %vm493, %v1010
      %1027 = vst.msk [vmem:[#allocation3 + $0x48] sm:$0xff] %vm493, %v1011
      %1028 = vst.msk [vmem:[#allocation3 + $0x50] sm:$0xff] %vm493, %v1012
      %1029 = vst.msk [vmem:[#allocation3 + $0x58] sm:$0xff] %vm493, %v1013
      %1030 = vst.msk [vmem:[#allocation3 + $0x60] sm:$0xff] %vm493, %v1014
      %1031 = vst.msk [vmem:[#allocation3 + $0x68] sm:$0xff] %vm493, %v1015
      %1032 = vst.msk [vmem:[#allocation3 + $0x70] sm:$0xff] %vm493, %v1016
      %1033 = vst.msk [vmem:[#allocation3 + $0x78] sm:$0xff] %vm493, %v1017
      %v1034 = vld [vmem:[#allocation2 + $0x2] sm:$0xff]
      %v1035 = vld [vmem:[#allocation2 + $0xa] sm:$0xff]
      %v1036 = vld [vmem:[#allocation2 + $0x1a] sm:$0xff]
      %v1037 = vld [vmem:[#allocation2 + $0x22] sm:$0xff]
      %v1038 = vld [vmem:[#allocation2 + $0x32] sm:$0xff]
      %v1039 = vld [vmem:[#allocation2 + $0x3a] sm:$0xff]
      %v1040 = vld [vmem:[#allocation2 + $0x4a] sm:$0xff]
      %v1041 = vld [vmem:[#allocation2 + $0x52] sm:$0xff]
      %v1042 = vld [vmem:[#allocation2 + $0x62] sm:$0xff]
      %v1043 = vld [vmem:[#allocation2 + $0x6a] sm:$0xff]
      %v1044 = vld [vmem:[#allocation2 + $0x7a] sm:$0xff]
      %v1045 = vld [vmem:[#allocation2 + $0x82] sm:$0xff]
      %v1046 = vld [vmem:[#allocation2 + $0x92] sm:$0xff]
      %v1047 = vld [vmem:[#allocation2 + $0x9a] sm:$0xff]
      %v1048 = vld [vmem:[#allocation2 + $0xaa] sm:$0xff]
      %v1049 = vld [vmem:[#allocation2 + $0xb2] sm:$0xff]
      %v1050 = vld [vmem:[#allocation3] sm:$0xff]
      %v1051 = vld [vmem:[#allocation3 + $0x8] sm:$0xff]
      %v1052 = vld [vmem:[#allocation3 + $0x10] sm:$0xff]
      %v1053 = vld [vmem:[#allocation3 + $0x18] sm:$0xff]
      %v1054 = vld [vmem:[#allocation3 + $0x20] sm:$0xff]
      %v1055 = vld [vmem:[#allocation3 + $0x28] sm:$0xff]
      %v1056 = vld [vmem:[#allocation3 + $0x30] sm:$0xff]
      %v1057 = vld [vmem:[#allocation3 + $0x38] sm:$0xff]
      %v1058 = vld [vmem:[#allocation3 + $0x40] sm:$0xff]
      %v1059 = vld [vmem:[#allocation3 + $0x48] sm:$0xff]
      %v1060 = vld [vmem:[#allocation3 + $0x50] sm:$0xff]
      %v1061 = vld [vmem:[#allocation3 + $0x58] sm:$0xff]
      %v1062 = vld [vmem:[#allocation3 + $0x60] sm:$0xff]
      %v1063 = vld [vmem:[#allocation3 + $0x68] sm:$0xff]
      %v1064 = vld [vmem:[#allocation3 + $0x70] sm:$0xff]
      %v1065 = vld [vmem:[#allocation3 + $0x78] sm:$0xff]
      %s1066 = scalar_lea.vmem %s3, 8
      %v1067 = vld [vmem:[%s1066] sm:$0xf]
      %v1069 = vsel %vm411, %v1034, 0
      %v1072 = vsel %vm411, %v1035, 0
      %v1075 = vsel %vm411, %v1036, 0
      %v1078 = vsel %vm411, %v1037, 0
      %v1081 = vsel %vm411, %v1038, 0
      %v1084 = vsel %vm411, %v1039, 0
      %v1087 = vsel %vm411, %v1040, 0
      %v1090 = vsel %vm411, %v1041, 0
      %v1093 = vsel %vm411, %v1042, 0
      %v1096 = vsel %vm411, %v1043, 0
      %v1099 = vsel %vm411, %v1044, 0
      %v1102 = vsel %vm411, %v1045, 0
      %v1105 = vsel %vm411, %v1046, 0
      %v1108 = vsel %vm411, %v1047, 0
      %v1111 = vsel %vm411, %v1048, 0
      %v1114 = vsel %vm411, %v1049, 0
      %v1117 = vsel %vm591, %v1067, 0
      %1119 = vmatprep.subr.mxu0 0.0
      %1120 = vmatpush1.msra.mxu0 %v1117
      %1121 = vmatprep.subr.mxu0 0.0
      %1122 = vmatpush1.msra.mxu0 0.0
      %1123 = vmatprep.subr.mxu0 0.0
      %1124 = vmatpush1.msra.mxu0 0.0
      %1125 = vmatprep.subr.mxu0 0.0
      %1126 = vmatpush1.msra.mxu0 0.0
      %1127 = vmatprep.subr.mxu0 0.0
      %1128 = vmatpush1.msra.mxu0 0.0
      %1129 = vmatprep.subr.mxu0 0.0
      %1130 = vmatpush1.msra.mxu0 0.0
      %1131 = vmatprep.subr.mxu0 0.0
      %1132 = vmatpush1.msra.mxu0 0.0
      %1133 = vmatprep.subr.mxu0 0.0
      %1134 = vmatpush1.msra.mxu0 0.0
      %1135 = vmatprep.subr.mxu0 0.0
      %1136 = vmatpush1.msra.mxu0 0.0
      %1137 = vmatprep.subr.mxu0 0.0
      %1138 = vmatpush1.msra.mxu0 0.0
      %1139 = vmatprep.subr.mxu0 0.0
      %1140 = vmatpush1.msra.mxu0 0.0
      %1141 = vmatprep.subr.mxu0 0.0
      %1142 = vmatpush1.msra.mxu0 0.0
      %1143 = vmatprep.subr.mxu0 0.0
      %1144 = vmatpush1.msra.mxu0 0.0
      %1145 = vmatprep.subr.mxu0 0.0
      %1146 = vmatpush1.msra.mxu0 0.0
      %1147 = vmatprep.subr.mxu0 0.0
      %1148 = vmatpush1.msra.mxu0 0.0
      %1149 = vmatprep.subr.mxu0 0.0
      %1150 = vmatpush1.msra.mxu0 0.0
      %1151 = vmatprep.subr.mxu0 0.0
      %1152 = vmatpush1.msra.mxu0 0.0
      %1153 = vmatprep.subr.mxu0 0.0
      %1154 = vmatpush1.msra.mxu0 0.0
      %1155 = vmatprep.subr.mxu0 0.0
      %1156 = vmatpush1.msra.mxu0 0.0
      %1157 = vmatprep.subr.mxu0 0.0
      %1158 = vmatpush1.msra.mxu0 0.0
      %1159 = vmatprep.subr.mxu0 0.0
      %1160 = vmatpush1.msra.mxu0 0.0
      %1161 = vmatprep.subr.mxu0 0.0
      %1162 = vmatpush1.msra.mxu0 0.0
      %1163 = vmatprep.subr.mxu0 0.0
      %1164 = vmatpush1.msra.mxu0 0.0
      %1165 = vmatprep.subr.mxu0 0.0
      %1166 = vmatpush1.msra.mxu0 0.0
      %1167 = vmatprep.subr.mxu0 0.0
      %1168 = vmatpush1.msra.mxu0 0.0
      %1169 = vmatprep.subr.mxu0 0.0
      %1170 = vmatpush1.msra.mxu0 0.0
      %1171 = vmatprep.subr.mxu0 0.0
      %1172 = vmatpush1.msra.mxu0 0.0
      %1173 = vmatprep.subr.mxu0 0.0
      %1174 = vmatpush1.msra.mxu0 0.0
      %1175 = vmatprep.subr.mxu0 0.0
      %1176 = vmatpush1.msra.mxu0 0.0
      %1177 = vmatprep.subr.mxu0 0.0
      %1178 = vmatpush1.msra.mxu0 0.0
      %1179 = vmatprep.subr.mxu0 0.0
      %1180 = vmatpush1.msra.mxu0 0.0
      %1181 = vmatprep.subr.mxu0 0.0
      %1182 = vmatpush1.msra.mxu0 0.0
      %1183 = vmatprep.mubr.f32.mxu0 0.0
      %1184 = vmatmul.mubr.f32.gmra.mrb[0].mxu0 %v1069
      %v1185 = vpop.f32.mrb[0].mxu0
      %v1186 = vadd.f32 0.0, %v1185
      %v1187 = vpop.f32.mrb[0].mxu0
      %1188 = vmatprep.mubr.f32.mxu0 0.0
      %1189 = vmatmul.mubr.f32.gmra.mrb[0].mxu0 %v1072
      %v1190 = vpop.f32.mrb[0].mxu0
      %v1191 = vadd.f32 0.0, %v1190
      %v1192 = vpop.f32.mrb[0].mxu0
      %1193 = vmatprep.mubr.f32.mxu0 0.0
      %1194 = vmatmul.mubr.f32.gmra.mrb[0].mxu0 %v1075
      %v1195 = vpop.f32.mrb[0].mxu0
      %v1196 = vadd.f32 0.0, %v1195
      %v1197 = vpop.f32.mrb[0].mxu0
      %1198 = vmatprep.mubr.f32.mxu0 0.0
      %1199 = vmatmul.mubr.f32.gmra.mrb[0].mxu0 %v1078
      %v1200 = vpop.f32.mrb[0].mxu0
      %v1201 = vadd.f32 0.0, %v1200
      %v1202 = vpop.f32.mrb[0].mxu0
      %1203 = vmatprep.mubr.f32.mxu0 0.0
      %1204 = vmatmul.mubr.f32.gmra.mrb[0].mxu0 %v1081
      %v1205 = vpop.f32.mrb[0].mxu0
      %v1206 = vadd.f32 0.0, %v1205
      %v1207 = vpop.f32.mrb[0].mxu0
      %1208 = vmatprep.mubr.f32.mxu0 0.0
      %1209 = vmatmul.mubr.f32.gmra.mrb[0].mxu0 %v1084
      %v1210 = vpop.f32.mrb[0].mxu0
      %v1211 = vadd.f32 0.0, %v1210
      %v1212 = vpop.f32.mrb[0].mxu0
      %1213 = vmatprep.mubr.f32.mxu0 0.0
      %1214 = vmatmul.mubr.f32.gmra.mrb[0].mxu0 %v1087
      %v1215 = vpop.f32.mrb[0].mxu0
      %v1216 = vadd.f32 0.0, %v1215
      %v1217 = vpop.f32.mrb[0].mxu0
      %1218 = vmatprep.mubr.f32.mxu0 0.0
      %1219 = vmatmul.mubr.f32.gmra.mrb[0].mxu0 %v1090
      %v1220 = vpop.f32.mrb[0].mxu0
      %v1221 = vadd.f32 0.0, %v1220
      %v1222 = vpop.f32.mrb[0].mxu0
      %1223 = vmatprep.mubr.f32.mxu0 0.0
      %1224 = vmatmul.mubr.f32.gmra.mrb[0].mxu0 %v1093
      %v1225 = vpop.f32.mrb[0].mxu0
      %v1226 = vadd.f32 0.0, %v1225
      %v1227 = vpop.f32.mrb[0].mxu0
      %1228 = vmatprep.mubr.f32.mxu0 0.0
      %1229 = vmatmul.mubr.f32.gmra.mrb[0].mxu0 %v1096
      %v1230 = vpop.f32.mrb[0].mxu0
      %v1231 = vadd.f32 0.0, %v1230
      %v1232 = vpop.f32.mrb[0].mxu0
      %1233 = vmatprep.mubr.f32.mxu0 0.0
      %1234 = vmatmul.mubr.f32.gmra.mrb[0].mxu0 %v1099
      %v1235 = vpop.f32.mrb[0].mxu0
      %v1236 = vadd.f32 0.0, %v1235
      %v1237 = vpop.f32.mrb[0].mxu0
      %1238 = vmatprep.mubr.f32.mxu0 0.0
      %1239 = vmatmul.mubr.f32.gmra.mrb[0].mxu0 %v1102
      %v1240 = vpop.f32.mrb[0].mxu0
      %v1241 = vadd.f32 0.0, %v1240
      %v1242 = vpop.f32.mrb[0].mxu0
      %1243 = vmatprep.mubr.f32.mxu0 0.0
      %1244 = vmatmul.mubr.f32.gmra.mrb[0].mxu0 %v1105
      %v1245 = vpop.f32.mrb[0].mxu0
      %v1246 = vadd.f32 0.0, %v1245
      %v1247 = vpop.f32.mrb[0].mxu0
      %1248 = vmatprep.mubr.f32.mxu0 0.0
      %1249 = vmatmul.mubr.f32.gmra.mrb[0].mxu0 %v1108
      %v1250 = vpop.f32.mrb[0].mxu0
      %v1251 = vadd.f32 0.0, %v1250
      %v1252 = vpop.f32.mrb[0].mxu0
      %1253 = vmatprep.mubr.f32.mxu0 0.0
      %1254 = vmatmul.mubr.f32.gmra.mrb[0].mxu0 %v1111
      %v1255 = vpop.f32.mrb[0].mxu0
      %v1256 = vadd.f32 0.0, %v1255
      %v1257 = vpop.f32.mrb[0].mxu0
      %1258 = vmatprep.mubr.f32.mxu0 0.0
      %1259 = vmatmul.mubr.f32.gmra.mrb[0].mxu0 %v1114
      %v1260 = vpop.f32.mrb[0].mxu0
      %v1261 = vadd.f32 0.0, %v1260
      %v1262 = vpop.f32.mrb[0].mxu0
      %1263 = vdwg.mxu0
      %v1264 = vadd.f32 %v1050, %v1186
      %v1265 = vadd.f32 %v1051, %v1191
      %v1266 = vadd.f32 %v1052, %v1196
      %v1267 = vadd.f32 %v1053, %v1201
      %v1268 = vadd.f32 %v1054, %v1206
      %v1269 = vadd.f32 %v1055, %v1211
      %v1270 = vadd.f32 %v1056, %v1216
      %v1271 = vadd.f32 %v1057, %v1221
      %v1272 = vadd.f32 %v1058, %v1226
      %v1273 = vadd.f32 %v1059, %v1231
      %v1274 = vadd.f32 %v1060, %v1236
      %v1275 = vadd.f32 %v1061, %v1241
      %v1276 = vadd.f32 %v1062, %v1246
      %v1277 = vadd.f32 %v1063, %v1251
      %v1278 = vadd.f32 %v1064, %v1256
      %v1279 = vadd.f32 %v1065, %v1261
      %1280 = vst.msk [vmem:[#allocation3] sm:$0xff] %vm493, %v1264
      %1281 = vst.msk [vmem:[#allocation3 + $0x8] sm:$0xff] %vm493, %v1265
      %1282 = vst.msk [vmem:[#allocation3 + $0x10] sm:$0xff] %vm493, %v1266
      %1283 = vst.msk [vmem:[#allocation3 + $0x18] sm:$0xff] %vm493, %v1267
      %1284 = vst.msk [vmem:[#allocation3 + $0x20] sm:$0xff] %vm493, %v1268
      %1285 = vst.msk [vmem:[#allocation3 + $0x28] sm:$0xff] %vm493, %v1269
      %1286 = vst.msk [vmem:[#allocation3 + $0x30] sm:$0xff] %vm493, %v1270
      %1287 = vst.msk [vmem:[#allocation3 + $0x38] sm:$0xff] %vm493, %v1271
      %1288 = vst.msk [vmem:[#allocation3 + $0x40] sm:$0xff] %vm493, %v1272
      %1289 = vst.msk [vmem:[#allocation3 + $0x48] sm:$0xff] %vm493, %v1273
      %1290 = vst.msk [vmem:[#allocation3 + $0x50] sm:$0xff] %vm493, %v1274
      %1291 = vst.msk [vmem:[#allocation3 + $0x58] sm:$0xff] %vm493, %v1275
      %1292 = vst.msk [vmem:[#allocation3 + $0x60] sm:$0xff] %vm493, %v1276
      %1293 = vst.msk [vmem:[#allocation3 + $0x68] sm:$0xff] %vm493, %v1277
      %1294 = vst.msk [vmem:[#allocation3 + $0x70] sm:$0xff] %vm493, %v1278
      %1295 = vst.msk [vmem:[#allocation3 + $0x78] sm:$0xff] %vm493, %v1279
      %v1296 = vld [vmem:[%s459] sm:$0xff]
      %v1297 = vld [vmem:[%s459 + $0x8] sm:$0xff]
      %v1298 = vld [vmem:[%s459 + $0x18] sm:$0xff]
      %v1299 = vld [vmem:[%s459 + $0x20] sm:$0xff]
      %v1300 = vld [vmem:[%s459 + $0x30] sm:$0xff]
      %v1301 = vld [vmem:[%s459 + $0x38] sm:$0xff]
      %v1302 = vld [vmem:[%s459 + $0x48] sm:$0xff]
      %v1303 = vld [vmem:[%s459 + $0x50] sm:$0xff]
      %v1304 = vld [vmem:[%s459 + $0x60] sm:$0xff]
      %v1305 = vld [vmem:[%s459 + $0x68] sm:$0xff]
      %v1306 = vld [vmem:[%s459 + $0x78] sm:$0xff]
      %v1307 = vld [vmem:[%s459 + $0x80] sm:$0xff]
      %v1308 = vld [vmem:[%s459 + $0x90] sm:$0xff]
      %v1309 = vld [vmem:[%s459 + $0x98] sm:$0xff]
      %v1310 = vld [vmem:[%s459 + $0xa8] sm:$0xff]
      %v1311 = vld [vmem:[%s459 + $0xb0] sm:$0xff]
      %v1312 = vld [vmem:[#allocation3] sm:$0xff]
      %v1313 = vld [vmem:[#allocation3 + $0x8] sm:$0xff]
      %v1314 = vld [vmem:[#allocation3 + $0x10] sm:$0xff]
      %v1315 = vld [vmem:[#allocation3 + $0x18] sm:$0xff]
      %v1316 = vld [vmem:[#allocation3 + $0x20] sm:$0xff]
      %v1317 = vld [vmem:[#allocation3 + $0x28] sm:$0xff]
      %v1318 = vld [vmem:[#allocation3 + $0x30] sm:$0xff]
      %v1319 = vld [vmem:[#allocation3 + $0x38] sm:$0xff]
      %v1320 = vld [vmem:[#allocation3 + $0x40] sm:$0xff]
      %v1321 = vld [vmem:[#allocation3 + $0x48] sm:$0xff]
      %v1322 = vld [vmem:[#allocation3 + $0x50] sm:$0xff]
      %v1323 = vld [vmem:[#allocation3 + $0x58] sm:$0xff]
      %v1324 = vld [vmem:[#allocation3 + $0x60] sm:$0xff]
      %v1325 = vld [vmem:[#allocation3 + $0x68] sm:$0xff]
      %v1326 = vld [vmem:[#allocation3 + $0x70] sm:$0xff]
      %v1327 = vld [vmem:[#allocation3 + $0x78] sm:$0xff]
      %s1328 = scalar_lea.vmem %s3, 12
      %v1329 = vld [vmem:[%s1328] sm:$0xf]
      %v1331 = vsel %vm411, %v1296, 0
      %v1334 = vsel %vm411, %v1297, 0
      %v1337 = vsel %vm411, %v1298, 0
      %v1340 = vsel %vm411, %v1299, 0
      %v1343 = vsel %vm411, %v1300, 0
      %v1346 = vsel %vm411, %v1301, 0
      %v1349 = vsel %vm411, %v1302, 0
      %v1352 = vsel %vm411, %v1303, 0
      %v1355 = vsel %vm411, %v1304, 0
      %v1358 = vsel %vm411, %v1305, 0
      %v1361 = vsel %vm411, %v1306, 0
      %v1364 = vsel %vm411, %v1307, 0
      %v1367 = vsel %vm411, %v1308, 0
      %v1370 = vsel %vm411, %v1309, 0
      %v1373 = vsel %vm411, %v1310, 0
      %v1376 = vsel %vm411, %v1311, 0
      %v1379 = vsel %vm591, %v1329, 0
      %1381 = vmatprep.subr.mxu0 0.0
      %1382 = vmatpush1.msra.mxu0 %v1379
      %1383 = vmatprep.subr.mxu0 0.0
      %1384 = vmatpush1.msra.mxu0 0.0
      %1385 = vmatprep.subr.mxu0 0.0
      %1386 = vmatpush1.msra.mxu0 0.0
      %1387 = vmatprep.subr.mxu0 0.0
      %1388 = vmatpush1.msra.mxu0 0.0
      %1389 = vmatprep.subr.mxu0 0.0
      %1390 = vmatpush1.msra.mxu0 0.0
      %1391 = vmatprep.subr.mxu0 0.0
      %1392 = vmatpush1.msra.mxu0 0.0
      %1393 = vmatprep.subr.mxu0 0.0
      %1394 = vmatpush1.msra.mxu0 0.0
      %1395 = vmatprep.subr.mxu0 0.0
      %1396 = vmatpush1.msra.mxu0 0.0
      %1397 = vmatprep.subr.mxu0 0.0
      %1398 = vmatpush1.msra.mxu0 0.0
      %1399 = vmatprep.subr.mxu0 0.0
      %1400 = vmatpush1.msra.mxu0 0.0
      %1401 = vmatprep.subr.mxu0 0.0
      %1402 = vmatpush1.msra.mxu0 0.0
      %1403 = vmatprep.subr.mxu0 0.0
      %1404 = vmatpush1.msra.mxu0 0.0
      %1405 = vmatprep.subr.mxu0 0.0
      %1406 = vmatpush1.msra.mxu0 0.0
      %1407 = vmatprep.subr.mxu0 0.0
      %1408 = vmatpush1.msra.mxu0 0.0
      %1409 = vmatprep.subr.mxu0 0.0
      %1410 = vmatpush1.msra.mxu0 0.0
      %1411 = vmatprep.subr.mxu0 0.0
      %1412 = vmatpush1.msra.mxu0 0.0
      %1413 = vmatprep.subr.mxu0 0.0
      %1414 = vmatpush1.msra.mxu0 0.0
      %1415 = vmatprep.subr.mxu0 0.0
      %1416 = vmatpush1.msra.mxu0 0.0
      %1417 = vmatprep.subr.mxu0 0.0
      %1418 = vmatpush1.msra.mxu0 0.0
      %1419 = vmatprep.subr.mxu0 0.0
      %1420 = vmatpush1.msra.mxu0 0.0
      %1421 = vmatprep.subr.mxu0 0.0
      %1422 = vmatpush1.msra.mxu0 0.0
      %1423 = vmatprep.subr.mxu0 0.0
      %1424 = vmatpush1.msra.mxu0 0.0
      %1425 = vmatprep.subr.mxu0 0.0
      %1426 = vmatpush1.msra.mxu0 0.0
      %1427 = vmatprep.subr.mxu0 0.0
      %1428 = vmatpush1.msra.mxu0 0.0
      %1429 = vmatprep.subr.mxu0 0.0
      %1430 = vmatpush1.msra.mxu0 0.0
      %1431 = vmatprep.subr.mxu0 0.0
      %1432 = vmatpush1.msra.mxu0 0.0
      %1433 = vmatprep.subr.mxu0 0.0
      %1434 = vmatpush1.msra.mxu0 0.0
      %1435 = vmatprep.subr.mxu0 0.0
      %1436 = vmatpush1.msra.mxu0 0.0
      %1437 = vmatprep.subr.mxu0 0.0
      %1438 = vmatpush1.msra.mxu0 0.0
      %1439 = vmatprep.subr.mxu0 0.0
      %1440 = vmatpush1.msra.mxu0 0.0
      %1441 = vmatprep.subr.mxu0 0.0
      %1442 = vmatpush1.msra.mxu0 0.0
      %1443 = vmatprep.subr.mxu0 0.0
      %1444 = vmatpush1.msra.mxu0 0.0
      %1445 = vmatprep.mubr.f32.mxu0 0.0
      %1446 = vmatmul.mubr.f32.gmra.mrb[0].mxu0 %v1331
      %v1447 = vpop.f32.mrb[0].mxu0
      %v1448 = vadd.f32 0.0, %v1447
      %v1449 = vpop.f32.mrb[0].mxu0
      %1450 = vmatprep.mubr.f32.mxu0 0.0
      %1451 = vmatmul.mubr.f32.gmra.mrb[0].mxu0 %v1334
      %v1452 = vpop.f32.mrb[0].mxu0
      %v1453 = vadd.f32 0.0, %v1452
      %v1454 = vpop.f32.mrb[0].mxu0
      %1455 = vmatprep.mubr.f32.mxu0 0.0
      %1456 = vmatmul.mubr.f32.gmra.mrb[0].mxu0 %v1337
      %v1457 = vpop.f32.mrb[0].mxu0
      %v1458 = vadd.f32 0.0, %v1457
      %v1459 = vpop.f32.mrb[0].mxu0
      %1460 = vmatprep.mubr.f32.mxu0 0.0
      %1461 = vmatmul.mubr.f32.gmra.mrb[0].mxu0 %v1340
      %v1462 = vpop.f32.mrb[0].mxu0
      %v1463 = vadd.f32 0.0, %v1462
      %v1464 = vpop.f32.mrb[0].mxu0
      %1465 = vmatprep.mubr.f32.mxu0 0.0
      %1466 = vmatmul.mubr.f32.gmra.mrb[0].mxu0 %v1343
      %v1467 = vpop.f32.mrb[0].mxu0
      %v1468 = vadd.f32 0.0, %v1467
      %v1469 = vpop.f32.mrb[0].mxu0
      %1470 = vmatprep.mubr.f32.mxu0 0.0
      %1471 = vmatmul.mubr.f32.gmra.mrb[0].mxu0 %v1346
      %v1472 = vpop.f32.mrb[0].mxu0
      %v1473 = vadd.f32 0.0, %v1472
      %v1474 = vpop.f32.mrb[0].mxu0
      %1475 = vmatprep.mubr.f32.mxu0 0.0
      %1476 = vmatmul.mubr.f32.gmra.mrb[0].mxu0 %v1349
      %v1477 = vpop.f32.mrb[0].mxu0
      %v1478 = vadd.f32 0.0, %v1477
      %v1479 = vpop.f32.mrb[0].mxu0
      %1480 = vmatprep.mubr.f32.mxu0 0.0
      %1481 = vmatmul.mubr.f32.gmra.mrb[0].mxu0 %v1352
      %v1482 = vpop.f32.mrb[0].mxu0
      %v1483 = vadd.f32 0.0, %v1482
      %v1484 = vpop.f32.mrb[0].mxu0
      %1485 = vmatprep.mubr.f32.mxu0 0.0
      %1486 = vmatmul.mubr.f32.gmra.mrb[0].mxu0 %v1355
      %v1487 = vpop.f32.mrb[0].mxu0
      %v1488 = vadd.f32 0.0, %v1487
      %v1489 = vpop.f32.mrb[0].mxu0
      %1490 = vmatprep.mubr.f32.mxu0 0.0
      %1491 = vmatmul.mubr.f32.gmra.mrb[0].mxu0 %v1358
      %v1492 = vpop.f32.mrb[0].mxu0
      %v1493 = vadd.f32 0.0, %v1492
      %v1494 = vpop.f32.mrb[0].mxu0
      %1495 = vmatprep.mubr.f32.mxu0 0.0
      %1496 = vmatmul.mubr.f32.gmra.mrb[0].mxu0 %v1361
      %v1497 = vpop.f32.mrb[0].mxu0
      %v1498 = vadd.f32 0.0, %v1497
      %v1499 = vpop.f32.mrb[0].mxu0
      %1500 = vmatprep.mubr.f32.mxu0 0.0
      %1501 = vmatmul.mubr.f32.gmra.mrb[0].mxu0 %v1364
      %v1502 = vpop.f32.mrb[0].mxu0
      %v1503 = vadd.f32 0.0, %v1502
      %v1504 = vpop.f32.mrb[0].mxu0
      %1505 = vmatprep.mubr.f32.mxu0 0.0
      %1506 = vmatmul.mubr.f32.gmra.mrb[0].mxu0 %v1367
      %v1507 = vpop.f32.mrb[0].mxu0
      %v1508 = vadd.f32 0.0, %v1507
      %v1509 = vpop.f32.mrb[0].mxu0
      %1510 = vmatprep.mubr.f32.mxu0 0.0
      %1511 = vmatmul.mubr.f32.gmra.mrb[0].mxu0 %v1370
      %v1512 = vpop.f32.mrb[0].mxu0
      %v1513 = vadd.f32 0.0, %v1512
      %v1514 = vpop.f32.mrb[0].mxu0
      %1515 = vmatprep.mubr.f32.mxu0 0.0
      %1516 = vmatmul.mubr.f32.gmra.mrb[0].mxu0 %v1373
      %v1517 = vpop.f32.mrb[0].mxu0
      %v1518 = vadd.f32 0.0, %v1517
      %v1519 = vpop.f32.mrb[0].mxu0
      %1520 = vmatprep.mubr.f32.mxu0 0.0
      %1521 = vmatmul.mubr.f32.gmra.mrb[0].mxu0 %v1376
      %v1522 = vpop.f32.mrb[0].mxu0
      %v1523 = vadd.f32 0.0, %v1522
      %v1524 = vpop.f32.mrb[0].mxu0
      %1525 = vdwg.mxu0
      %v1526 = vadd.f32 %v1312, %v1448
      %v1527 = vadd.f32 %v1313, %v1453
      %v1528 = vadd.f32 %v1314, %v1458
      %v1529 = vadd.f32 %v1315, %v1463
      %v1530 = vadd.f32 %v1316, %v1468
      %v1531 = vadd.f32 %v1317, %v1473
      %v1532 = vadd.f32 %v1318, %v1478
      %v1533 = vadd.f32 %v1319, %v1483
      %v1534 = vadd.f32 %v1320, %v1488
      %v1535 = vadd.f32 %v1321, %v1493
      %v1536 = vadd.f32 %v1322, %v1498
      %v1537 = vadd.f32 %v1323, %v1503
      %v1538 = vadd.f32 %v1324, %v1508
      %v1539 = vadd.f32 %v1325, %v1513
      %v1540 = vadd.f32 %v1326, %v1518
      %v1541 = vadd.f32 %v1327, %v1523
      %1542 = vst.msk [vmem:[#allocation3] sm:$0xff] %vm493, %v1526
      %1543 = vst.msk [vmem:[#allocation3 + $0x8] sm:$0xff] %vm493, %v1527
      %1544 = vst.msk [vmem:[#allocation3 + $0x10] sm:$0xff] %vm493, %v1528
      %1545 = vst.msk [vmem:[#allocation3 + $0x18] sm:$0xff] %vm493, %v1529
      %1546 = vst.msk [vmem:[#allocation3 + $0x20] sm:$0xff] %vm493, %v1530
      %1547 = vst.msk [vmem:[#allocation3 + $0x28] sm:$0xff] %vm493, %v1531
      %1548 = vst.msk [vmem:[#allocation3 + $0x30] sm:$0xff] %vm493, %v1532
      %1549 = vst.msk [vmem:[#allocation3 + $0x38] sm:$0xff] %vm493, %v1533
      %1550 = vst.msk [vmem:[#allocation3 + $0x40] sm:$0xff] %vm493, %v1534
      %1551 = vst.msk [vmem:[#allocation3 + $0x48] sm:$0xff] %vm493, %v1535
      %1552 = vst.msk [vmem:[#allocation3 + $0x50] sm:$0xff] %vm493, %v1536
      %1553 = vst.msk [vmem:[#allocation3 + $0x58] sm:$0xff] %vm493, %v1537
      %1554 = vst.msk [vmem:[#allocation3 + $0x60] sm:$0xff] %vm493, %v1538
      %1555 = vst.msk [vmem:[#allocation3 + $0x68] sm:$0xff] %vm493, %v1539
      %1556 = vst.msk [vmem:[#allocation3 + $0x70] sm:$0xff] %vm493, %v1540
      %1557 = vst.msk [vmem:[#allocation3 + $0x78] sm:$0xff] %vm493, %v1541
      %v1558 = vld [vmem:[%s459 + $0x1] sm:$0xff]
      %v1559 = vld [vmem:[%s459 + $0x9] sm:$0xff]
      %v1560 = vld [vmem:[%s459 + $0x19] sm:$0xff]
      %v1561 = vld [vmem:[%s459 + $0x21] sm:$0xff]
      %v1562 = vld [vmem:[%s459 + $0x31] sm:$0xff]
      %v1563 = vld [vmem:[%s459 + $0x39] sm:$0xff]
      %v1564 = vld [vmem:[%s459 + $0x49] sm:$0xff]
      %v1565 = vld [vmem:[%s459 + $0x51] sm:$0xff]
      %v1566 = vld [vmem:[%s459 + $0x61] sm:$0xff]
      %v1567 = vld [vmem:[%s459 + $0x69] sm:$0xff]
      %v1568 = vld [vmem:[%s459 + $0x79] sm:$0xff]
      %v1569 = vld [vmem:[%s459 + $0x81] sm:$0xff]
      %v1570 = vld [vmem:[%s459 + $0x91] sm:$0xff]
      %v1571 = vld [vmem:[%s459 + $0x99] sm:$0xff]
      %v1572 = vld [vmem:[%s459 + $0xa9] sm:$0xff]
      %v1573 = vld [vmem:[%s459 + $0xb1] sm:$0xff]
      %v1574 = vld [vmem:[#allocation3] sm:$0xff]
      %v1575 = vld [vmem:[#allocation3 + $0x8] sm:$0xff]
      %v1576 = vld [vmem:[#allocation3 + $0x10] sm:$0xff]
      %v1577 = vld [vmem:[#allocation3 + $0x18] sm:$0xff]
      %v1578 = vld [vmem:[#allocation3 + $0x20] sm:$0xff]
      %v1579 = vld [vmem:[#allocation3 + $0x28] sm:$0xff]
      %v1580 = vld [vmem:[#allocation3 + $0x30] sm:$0xff]
      %v1581 = vld [vmem:[#allocation3 + $0x38] sm:$0xff]
      %v1582 = vld [vmem:[#allocation3 + $0x40] sm:$0xff]
      %v1583 = vld [vmem:[#allocation3 + $0x48] sm:$0xff]
      %v1584 = vld [vmem:[#allocation3 + $0x50] sm:$0xff]
      %v1585 = vld [vmem:[#allocation3 + $0x58] sm:$0xff]
      %v1586 = vld [vmem:[#allocation3 + $0x60] sm:$0xff]
      %v1587 = vld [vmem:[#allocation3 + $0x68] sm:$0xff]
      %v1588 = vld [vmem:[#allocation3 + $0x70] sm:$0xff]
      %v1589 = vld [vmem:[#allocation3 + $0x78] sm:$0xff]
      %s1590 = scalar_lea.vmem %s3, 16
      %v1591 = vld [vmem:[%s1590] sm:$0xf]
      %v1593 = vsel %vm411, %v1558, 0
      %v1596 = vsel %vm411, %v1559, 0
      %v1599 = vsel %vm411, %v1560, 0
      %v1602 = vsel %vm411, %v1561, 0
      %v1605 = vsel %vm411, %v1562, 0
      %v1608 = vsel %vm411, %v1563, 0
      %v1611 = vsel %vm411, %v1564, 0
      %v1614 = vsel %vm411, %v1565, 0
      %v1617 = vsel %vm411, %v1566, 0
      %v1620 = vsel %vm411, %v1567, 0
      %v1623 = vsel %vm411, %v1568, 0
      %v1626 = vsel %vm411, %v1569, 0
      %v1629 = vsel %vm411, %v1570, 0
      %v1632 = vsel %vm411, %v1571, 0
      %v1635 = vsel %vm411, %v1572, 0
      %v1638 = vsel %vm411, %v1573, 0
      %v1641 = vsel %vm591, %v1591, 0
      %1643 = vmatprep.subr.mxu0 0.0
      %1644 = vmatpush1.msra.mxu0 %v1641
      %1645 = vmatprep.subr.mxu0 0.0
      %1646 = vmatpush1.msra.mxu0 0.0
      %1647 = vmatprep.subr.mxu0 0.0
      %1648 = vmatpush1.msra.mxu0 0.0
      %1649 = vmatprep.subr.mxu0 0.0
      %1650 = vmatpush1.msra.mxu0 0.0
      %1651 = vmatprep.subr.mxu0 0.0
      %1652 = vmatpush1.msra.mxu0 0.0
      %1653 = vmatprep.subr.mxu0 0.0
      %1654 = vmatpush1.msra.mxu0 0.0
      %1655 = vmatprep.subr.mxu0 0.0
      %1656 = vmatpush1.msra.mxu0 0.0
      %1657 = vmatprep.subr.mxu0 0.0
      %1658 = vmatpush1.msra.mxu0 0.0
      %1659 = vmatprep.subr.mxu0 0.0
      %1660 = vmatpush1.msra.mxu0 0.0
      %1661 = vmatprep.subr.mxu0 0.0
      %1662 = vmatpush1.msra.mxu0 0.0
      %1663 = vmatprep.subr.mxu0 0.0
      %1664 = vmatpush1.msra.mxu0 0.0
      %1665 = vmatprep.subr.mxu0 0.0
      %1666 = vmatpush1.msra.mxu0 0.0
      %1667 = vmatprep.subr.mxu0 0.0
      %1668 = vmatpush1.msra.mxu0 0.0
      %1669 = vmatprep.subr.mxu0 0.0
      %1670 = vmatpush1.msra.mxu0 0.0
      %1671 = vmatprep.subr.mxu0 0.0
      %1672 = vmatpush1.msra.mxu0 0.0
      %1673 = vmatprep.subr.mxu0 0.0
      %1674 = vmatpush1.msra.mxu0 0.0
      %1675 = vmatprep.subr.mxu0 0.0
      %1676 = vmatpush1.msra.mxu0 0.0
      %1677 = vmatprep.subr.mxu0 0.0
      %1678 = vmatpush1.msra.mxu0 0.0
      %1679 = vmatprep.subr.mxu0 0.0
      %1680 = vmatpush1.msra.mxu0 0.0
      %1681 = vmatprep.subr.mxu0 0.0
      %1682 = vmatpush1.msra.mxu0 0.0
      %1683 = vmatprep.subr.mxu0 0.0
      %1684 = vmatpush1.msra.mxu0 0.0
      %1685 = vmatprep.subr.mxu0 0.0
      %1686 = vmatpush1.msra.mxu0 0.0
      %1687 = vmatprep.subr.mxu0 0.0
      %1688 = vmatpush1.msra.mxu0 0.0
      %1689 = vmatprep.subr.mxu0 0.0
      %1690 = vmatpush1.msra.mxu0 0.0
      %1691 = vmatprep.subr.mxu0 0.0
      %1692 = vmatpush1.msra.mxu0 0.0
      %1693 = vmatprep.subr.mxu0 0.0
      %1694 = vmatpush1.msra.mxu0 0.0
      %1695 = vmatprep.subr.mxu0 0.0
      %1696 = vmatpush1.msra.mxu0 0.0
      %1697 = vmatprep.subr.mxu0 0.0
      %1698 = vmatpush1.msra.mxu0 0.0
      %1699 = vmatprep.subr.mxu0 0.0
      %1700 = vmatpush1.msra.mxu0 0.0
      %1701 = vmatprep.subr.mxu0 0.0
      %1702 = vmatpush1.msra.mxu0 0.0
      %1703 = vmatprep.subr.mxu0 0.0
      %1704 = vmatpush1.msra.mxu0 0.0
      %1705 = vmatprep.subr.mxu0 0.0
      %1706 = vmatpush1.msra.mxu0 0.0
      %1707 = vmatprep.mubr.f32.mxu0 0.0
      %1708 = vmatmul.mubr.f32.gmra.mrb[0].mxu0 %v1593
      %v1709 = vpop.f32.mrb[0].mxu0
      %v1710 = vadd.f32 0.0, %v1709
      %v1711 = vpop.f32.mrb[0].mxu0
      %1712 = vmatprep.mubr.f32.mxu0 0.0
      %1713 = vmatmul.mubr.f32.gmra.mrb[0].mxu0 %v1596
      %v1714 = vpop.f32.mrb[0].mxu0
      %v1715 = vadd.f32 0.0, %v1714
      %v1716 = vpop.f32.mrb[0].mxu0
      %1717 = vmatprep.mubr.f32.mxu0 0.0
      %1718 = vmatmul.mubr.f32.gmra.mrb[0].mxu0 %v1599
      %v1719 = vpop.f32.mrb[0].mxu0
      %v1720 = vadd.f32 0.0, %v1719
      %v1721 = vpop.f32.mrb[0].mxu0
      %1722 = vmatprep.mubr.f32.mxu0 0.0
      %1723 = vmatmul.mubr.f32.gmra.mrb[0].mxu0 %v1602
      %v1724 = vpop.f32.mrb[0].mxu0
      %v1725 = vadd.f32 0.0, %v1724
      %v1726 = vpop.f32.mrb[0].mxu0
      %1727 = vmatprep.mubr.f32.mxu0 0.0
      %1728 = vmatmul.mubr.f32.gmra.mrb[0].mxu0 %v1605
      %v1729 = vpop.f32.mrb[0].mxu0
      %v1730 = vadd.f32 0.0, %v1729
      %v1731 = vpop.f32.mrb[0].mxu0
      %1732 = vmatprep.mubr.f32.mxu0 0.0
      %1733 = vmatmul.mubr.f32.gmra.mrb[0].mxu0 %v1608
      %v1734 = vpop.f32.mrb[0].mxu0
      %v1735 = vadd.f32 0.0, %v1734
      %v1736 = vpop.f32.mrb[0].mxu0
      %1737 = vmatprep.mubr.f32.mxu0 0.0
      %1738 = vmatmul.mubr.f32.gmra.mrb[0].mxu0 %v1611
      %v1739 = vpop.f32.mrb[0].mxu0
      %v1740 = vadd.f32 0.0, %v1739
      %v1741 = vpop.f32.mrb[0].mxu0
      %1742 = vmatprep.mubr.f32.mxu0 0.0
      %1743 = vmatmul.mubr.f32.gmra.mrb[0].mxu0 %v1614
      %v1744 = vpop.f32.mrb[0].mxu0
      %v1745 = vadd.f32 0.0, %v1744
      %v1746 = vpop.f32.mrb[0].mxu0
      %1747 = vmatprep.mubr.f32.mxu0 0.0
      %1748 = vmatmul.mubr.f32.gmra.mrb[0].mxu0 %v1617
      %v1749 = vpop.f32.mrb[0].mxu0
      %v1750 = vadd.f32 0.0, %v1749
      %v1751 = vpop.f32.mrb[0].mxu0
      %1752 = vmatprep.mubr.f32.mxu0 0.0
      %1753 = vmatmul.mubr.f32.gmra.mrb[0].mxu0 %v1620
      %v1754 = vpop.f32.mrb[0].mxu0
      %v1755 = vadd.f32 0.0, %v1754
      %v1756 = vpop.f32.mrb[0].mxu0
      %1757 = vmatprep.mubr.f32.mxu0 0.0
      %1758 = vmatmul.mubr.f32.gmra.mrb[0].mxu0 %v1623
      %v1759 = vpop.f32.mrb[0].mxu0
      %v1760 = vadd.f32 0.0, %v1759
      %v1761 = vpop.f32.mrb[0].mxu0
      %1762 = vmatprep.mubr.f32.mxu0 0.0
      %1763 = vmatmul.mubr.f32.gmra.mrb[0].mxu0 %v1626
      %v1764 = vpop.f32.mrb[0].mxu0
      %v1765 = vadd.f32 0.0, %v1764
      %v1766 = vpop.f32.mrb[0].mxu0
      %1767 = vmatprep.mubr.f32.mxu0 0.0
      %1768 = vmatmul.mubr.f32.gmra.mrb[0].mxu0 %v1629
      %v1769 = vpop.f32.mrb[0].mxu0
      %v1770 = vadd.f32 0.0, %v1769
      %v1771 = vpop.f32.mrb[0].mxu0
      %1772 = vmatprep.mubr.f32.mxu0 0.0
      %1773 = vmatmul.mubr.f32.gmra.mrb[0].mxu0 %v1632
      %v1774 = vpop.f32.mrb[0].mxu0
      %v1775 = vadd.f32 0.0, %v1774
      %v1776 = vpop.f32.mrb[0].mxu0
      %1777 = vmatprep.mubr.f32.mxu0 0.0
      %1778 = vmatmul.mubr.f32.gmra.mrb[0].mxu0 %v1635
      %v1779 = vpop.f32.mrb[0].mxu0
      %v1780 = vadd.f32 0.0, %v1779
      %v1781 = vpop.f32.mrb[0].mxu0
      %1782 = vmatprep.mubr.f32.mxu0 0.0
      %1783 = vmatmul.mubr.f32.gmra.mrb[0].mxu0 %v1638
      %v1784 = vpop.f32.mrb[0].mxu0
      %v1785 = vadd.f32 0.0, %v1784
      %v1786 = vpop.f32.mrb[0].mxu0
      %1787 = vdwg.mxu0
      %v1788 = vadd.f32 %v1574, %v1710
      %v1789 = vadd.f32 %v1575, %v1715
      %v1790 = vadd.f32 %v1576, %v1720
      %v1791 = vadd.f32 %v1577, %v1725
      %v1792 = vadd.f32 %v1578, %v1730
      %v1793 = vadd.f32 %v1579, %v1735
      %v1794 = vadd.f32 %v1580, %v1740
      %v1795 = vadd.f32 %v1581, %v1745
      %v1796 = vadd.f32 %v1582, %v1750
      %v1797 = vadd.f32 %v1583, %v1755
      %v1798 = vadd.f32 %v1584, %v1760
      %v1799 = vadd.f32 %v1585, %v1765
      %v1800 = vadd.f32 %v1586, %v1770
      %v1801 = vadd.f32 %v1587, %v1775
      %v1802 = vadd.f32 %v1588, %v1780
      %v1803 = vadd.f32 %v1589, %v1785
      %1804 = vst.msk [vmem:[#allocation3] sm:$0xff] %vm493, %v1788
      %1805 = vst.msk [vmem:[#allocation3 + $0x8] sm:$0xff] %vm493, %v1789
      %1806 = vst.msk [vmem:[#allocation3 + $0x10] sm:$0xff] %vm493, %v1790
      %1807 = vst.msk [vmem:[#allocation3 + $0x18] sm:$0xff] %vm493, %v1791
      %1808 = vst.msk [vmem:[#allocation3 + $0x20] sm:$0xff] %vm493, %v1792
      %1809 = vst.msk [vmem:[#allocation3 + $0x28] sm:$0xff] %vm493, %v1793
      %1810 = vst.msk [vmem:[#allocation3 + $0x30] sm:$0xff] %vm493, %v1794
      %1811 = vst.msk [vmem:[#allocation3 + $0x38] sm:$0xff] %vm493, %v1795
      %1812 = vst.msk [vmem:[#allocation3 + $0x40] sm:$0xff] %vm493, %v1796
      %1813 = vst.msk [vmem:[#allocation3 + $0x48] sm:$0xff] %vm493, %v1797
      %1814 = vst.msk [vmem:[#allocation3 + $0x50] sm:$0xff] %vm493, %v1798
      %1815 = vst.msk [vmem:[#allocation3 + $0x58] sm:$0xff] %vm493, %v1799
      %1816 = vst.msk [vmem:[#allocation3 + $0x60] sm:$0xff] %vm493, %v1800
      %1817 = vst.msk [vmem:[#allocation3 + $0x68] sm:$0xff] %vm493, %v1801
      %1818 = vst.msk [vmem:[#allocation3 + $0x70] sm:$0xff] %vm493, %v1802
      %1819 = vst.msk [vmem:[#allocation3 + $0x78] sm:$0xff] %vm493, %v1803
      %v1820 = vld [vmem:[%s459 + $0x2] sm:$0xff]
      %v1821 = vld [vmem:[%s459 + $0xa] sm:$0xff]
      %v1822 = vld [vmem:[%s459 + $0x1a] sm:$0xff]
      %v1823 = vld [vmem:[%s459 + $0x22] sm:$0xff]
      %v1824 = vld [vmem:[%s459 + $0x32] sm:$0xff]
      %v1825 = vld [vmem:[%s459 + $0x3a] sm:$0xff]
      %v1826 = vld [vmem:[%s459 + $0x4a] sm:$0xff]
      %v1827 = vld [vmem:[%s459 + $0x52] sm:$0xff]
      %v1828 = vld [vmem:[%s459 + $0x62] sm:$0xff]
      %v1829 = vld [vmem:[%s459 + $0x6a] sm:$0xff]
      %v1830 = vld [vmem:[%s459 + $0x7a] sm:$0xff]
      %v1831 = vld [vmem:[%s459 + $0x82] sm:$0xff]
      %v1832 = vld [vmem:[%s459 + $0x92] sm:$0xff]
      %v1833 = vld [vmem:[%s459 + $0x9a] sm:$0xff]
      %v1834 = vld [vmem:[%s459 + $0xaa] sm:$0xff]
      %v1835 = vld [vmem:[%s459 + $0xb2] sm:$0xff]
      %v1836 = vld [vmem:[#allocation3] sm:$0xff]
      %v1837 = vld [vmem:[#allocation3 + $0x8] sm:$0xff]
      %v1838 = vld [vmem:[#allocation3 + $0x10] sm:$0xff]
      %v1839 = vld [vmem:[#allocation3 + $0x18] sm:$0xff]
      %v1840 = vld [vmem:[#allocation3 + $0x20] sm:$0xff]
      %v1841 = vld [vmem:[#allocation3 + $0x28] sm:$0xff]
      %v1842 = vld [vmem:[#allocation3 + $0x30] sm:$0xff]
      %v1843 = vld [vmem:[#allocation3 + $0x38] sm:$0xff]
      %v1844 = vld [vmem:[#allocation3 + $0x40] sm:$0xff]
      %v1845 = vld [vmem:[#allocation3 + $0x48] sm:$0xff]
      %v1846 = vld [vmem:[#allocation3 + $0x50] sm:$0xff]
      %v1847 = vld [vmem:[#allocation3 + $0x58] sm:$0xff]
      %v1848 = vld [vmem:[#allocation3 + $0x60] sm:$0xff]
      %v1849 = vld [vmem:[#allocation3 + $0x68] sm:$0xff]
      %v1850 = vld [vmem:[#allocation3 + $0x70] sm:$0xff]
      %v1851 = vld [vmem:[#allocation3 + $0x78] sm:$0xff]
      %s1852 = scalar_lea.vmem %s3, 20
      %v1853 = vld [vmem:[%s1852] sm:$0xf]
      %v1855 = vsel %vm411, %v1820, 0
      %v1858 = vsel %vm411, %v1821, 0
      %v1861 = vsel %vm411, %v1822, 0
      %v1864 = vsel %vm411, %v1823, 0
      %v1867 = vsel %vm411, %v1824, 0
      %v1870 = vsel %vm411, %v1825, 0
      %v1873 = vsel %vm411, %v1826, 0
      %v1876 = vsel %vm411, %v1827, 0
      %v1879 = vsel %vm411, %v1828, 0
      %v1882 = vsel %vm411, %v1829, 0
      %v1885 = vsel %vm411, %v1830, 0
      %v1888 = vsel %vm411, %v1831, 0
      %v1891 = vsel %vm411, %v1832, 0
      %v1894 = vsel %vm411, %v1833, 0
      %v1897 = vsel %vm411, %v1834, 0
      %v1900 = vsel %vm411, %v1835, 0
      %v1903 = vsel %vm591, %v1853, 0
      %1905 = vmatprep.subr.mxu0 0.0
      %1906 = vmatpush1.msra.mxu0 %v1903
      %1907 = vmatprep.subr.mxu0 0.0
      %1908 = vmatpush1.msra.mxu0 0.0
      %1909 = vmatprep.subr.mxu0 0.0
      %1910 = vmatpush1.msra.mxu0 0.0
      %1911 = vmatprep.subr.mxu0 0.0
      %1912 = vmatpush1.msra.mxu0 0.0
      %1913 = vmatprep.subr.mxu0 0.0
      %1914 = vmatpush1.msra.mxu0 0.0
      %1915 = vmatprep.subr.mxu0 0.0
      %1916 = vmatpush1.msra.mxu0 0.0
      %1917 = vmatprep.subr.mxu0 0.0
      %1918 = vmatpush1.msra.mxu0 0.0
      %1919 = vmatprep.subr.mxu0 0.0
      %1920 = vmatpush1.msra.mxu0 0.0
      %1921 = vmatprep.subr.mxu0 0.0
      %1922 = vmatpush1.msra.mxu0 0.0
      %1923 = vmatprep.subr.mxu0 0.0
      %1924 = vmatpush1.msra.mxu0 0.0
      %1925 = vmatprep.subr.mxu0 0.0
      %1926 = vmatpush1.msra.mxu0 0.0
      %1927 = vmatprep.subr.mxu0 0.0
      %1928 = vmatpush1.msra.mxu0 0.0
      %1929 = vmatprep.subr.mxu0 0.0
      %1930 = vmatpush1.msra.mxu0 0.0
      %1931 = vmatprep.subr.mxu0 0.0
      %1932 = vmatpush1.msra.mxu0 0.0
      %1933 = vmatprep.subr.mxu0 0.0
      %1934 = vmatpush1.msra.mxu0 0.0
      %1935 = vmatprep.subr.mxu0 0.0
      %1936 = vmatpush1.msra.mxu0 0.0
      %1937 = vmatprep.subr.mxu0 0.0
      %1938 = vmatpush1.msra.mxu0 0.0
      %1939 = vmatprep.subr.mxu0 0.0
      %1940 = vmatpush1.msra.mxu0 0.0
      %1941 = vmatprep.subr.mxu0 0.0
      %1942 = vmatpush1.msra.mxu0 0.0
      %1943 = vmatprep.subr.mxu0 0.0
      %1944 = vmatpush1.msra.mxu0 0.0
      %1945 = vmatprep.subr.mxu0 0.0
      %1946 = vmatpush1.msra.mxu0 0.0
      %1947 = vmatprep.subr.mxu0 0.0
      %1948 = vmatpush1.msra.mxu0 0.0
      %1949 = vmatprep.subr.mxu0 0.0
      %1950 = vmatpush1.msra.mxu0 0.0
      %1951 = vmatprep.subr.mxu0 0.0
      %1952 = vmatpush1.msra.mxu0 0.0
      %1953 = vmatprep.subr.mxu0 0.0
      %1954 = vmatpush1.msra.mxu0 0.0
      %1955 = vmatprep.subr.mxu0 0.0
      %1956 = vmatpush1.msra.mxu0 0.0
      %1957 = vmatprep.subr.mxu0 0.0
      %1958 = vmatpush1.msra.mxu0 0.0
      %1959 = vmatprep.subr.mxu0 0.0
      %1960 = vmatpush1.msra.mxu0 0.0
      %1961 = vmatprep.subr.mxu0 0.0
      %1962 = vmatpush1.msra.mxu0 0.0
      %1963 = vmatprep.subr.mxu0 0.0
      %1964 = vmatpush1.msra.mxu0 0.0
      %1965 = vmatprep.subr.mxu0 0.0
      %1966 = vmatpush1.msra.mxu0 0.0
      %1967 = vmatprep.subr.mxu0 0.0
      %1968 = vmatpush1.msra.mxu0 0.0
      %1969 = vmatprep.mubr.f32.mxu0 0.0
      %1970 = vmatmul.mubr.f32.gmra.mrb[0].mxu0 %v1855
      %v1971 = vpop.f32.mrb[0].mxu0
      %v1972 = vadd.f32 0.0, %v1971
      %v1973 = vpop.f32.mrb[0].mxu0
      %1974 = vmatprep.mubr.f32.mxu0 0.0
      %1975 = vmatmul.mubr.f32.gmra.mrb[0].mxu0 %v1858
      %v1976 = vpop.f32.mrb[0].mxu0
      %v1977 = vadd.f32 0.0, %v1976
      %v1978 = vpop.f32.mrb[0].mxu0
      %1979 = vmatprep.mubr.f32.mxu0 0.0
      %1980 = vmatmul.mubr.f32.gmra.mrb[0].mxu0 %v1861
      %v1981 = vpop.f32.mrb[0].mxu0
      %v1982 = vadd.f32 0.0, %v1981
      %v1983 = vpop.f32.mrb[0].mxu0
      %1984 = vmatprep.mubr.f32.mxu0 0.0
      %1985 = vmatmul.mubr.f32.gmra.mrb[0].mxu0 %v1864
      %v1986 = vpop.f32.mrb[0].mxu0
      %v1987 = vadd.f32 0.0, %v1986
      %v1988 = vpop.f32.mrb[0].mxu0
      %1989 = vmatprep.mubr.f32.mxu0 0.0
      %1990 = vmatmul.mubr.f32.gmra.mrb[0].mxu0 %v1867
      %v1991 = vpop.f32.mrb[0].mxu0
      %v1992 = vadd.f32 0.0, %v1991
      %v1993 = vpop.f32.mrb[0].mxu0
      %1994 = vmatprep.mubr.f32.mxu0 0.0
      %1995 = vmatmul.mubr.f32.gmra.mrb[0].mxu0 %v1870
      %v1996 = vpop.f32.mrb[0].mxu0
      %v1997 = vadd.f32 0.0, %v1996
      %v1998 = vpop.f32.mrb[0].mxu0
      %1999 = vmatprep.mubr.f32.mxu0 0.0
      %2000 = vmatmul.mubr.f32.gmra.mrb[0].mxu0 %v1873
      %v2001 = vpop.f32.mrb[0].mxu0
      %v2002 = vadd.f32 0.0, %v2001
      %v2003 = vpop.f32.mrb[0].mxu0
      %2004 = vmatprep.mubr.f32.mxu0 0.0
      %2005 = vmatmul.mubr.f32.gmra.mrb[0].mxu0 %v1876
      %v2006 = vpop.f32.mrb[0].mxu0
      %v2007 = vadd.f32 0.0, %v2006
      %v2008 = vpop.f32.mrb[0].mxu0
      %2009 = vmatprep.mubr.f32.mxu0 0.0
      %2010 = vmatmul.mubr.f32.gmra.mrb[0].mxu0 %v1879
      %v2011 = vpop.f32.mrb[0].mxu0
      %v2012 = vadd.f32 0.0, %v2011
      %v2013 = vpop.f32.mrb[0].mxu0
      %2014 = vmatprep.mubr.f32.mxu0 0.0
      %2015 = vmatmul.mubr.f32.gmra.mrb[0].mxu0 %v1882
      %v2016 = vpop.f32.mrb[0].mxu0
      %v2017 = vadd.f32 0.0, %v2016
      %v2018 = vpop.f32.mrb[0].mxu0
      %2019 = vmatprep.mubr.f32.mxu0 0.0
      %2020 = vmatmul.mubr.f32.gmra.mrb[0].mxu0 %v1885
      %v2021 = vpop.f32.mrb[0].mxu0
      %v2022 = vadd.f32 0.0, %v2021
      %v2023 = vpop.f32.mrb[0].mxu0
      %2024 = vmatprep.mubr.f32.mxu0 0.0
      %2025 = vmatmul.mubr.f32.gmra.mrb[0].mxu0 %v1888
      %v2026 = vpop.f32.mrb[0].mxu0
      %v2027 = vadd.f32 0.0, %v2026
      %v2028 = vpop.f32.mrb[0].mxu0
      %2029 = vmatprep.mubr.f32.mxu0 0.0
      %2030 = vmatmul.mubr.f32.gmra.mrb[0].mxu0 %v1891
      %v2031 = vpop.f32.mrb[0].mxu0
      %v2032 = vadd.f32 0.0, %v2031
      %v2033 = vpop.f32.mrb[0].mxu0
      %2034 = vmatprep.mubr.f32.mxu0 0.0
      %2035 = vmatmul.mubr.f32.gmra.mrb[0].mxu0 %v1894
      %v2036 = vpop.f32.mrb[0].mxu0
      %v2037 = vadd.f32 0.0, %v2036
      %v2038 = vpop.f32.mrb[0].mxu0
      %2039 = vmatprep.mubr.f32.mxu0 0.0
      %2040 = vmatmul.mubr.f32.gmra.mrb[0].mxu0 %v1897
      %v2041 = vpop.f32.mrb[0].mxu0
      %v2042 = vadd.f32 0.0, %v2041
      %v2043 = vpop.f32.mrb[0].mxu0
      %2044 = vmatprep.mubr.f32.mxu0 0.0
      %2045 = vmatmul.mubr.f32.gmra.mrb[0].mxu0 %v1900
      %v2046 = vpop.f32.mrb[0].mxu0
      %v2047 = vadd.f32 0.0, %v2046
      %v2048 = vpop.f32.mrb[0].mxu0
      %2049 = vdwg.mxu0
      %v2050 = vadd.f32 %v1836, %v1972
      %v2051 = vadd.f32 %v1837, %v1977
      %v2052 = vadd.f32 %v1838, %v1982
      %v2053 = vadd.f32 %v1839, %v1987
      %v2054 = vadd.f32 %v1840, %v1992
      %v2055 = vadd.f32 %v1841, %v1997
      %v2056 = vadd.f32 %v1842, %v2002
      %v2057 = vadd.f32 %v1843, %v2007
      %v2058 = vadd.f32 %v1844, %v2012
      %v2059 = vadd.f32 %v1845, %v2017
      %v2060 = vadd.f32 %v1846, %v2022
      %v2061 = vadd.f32 %v1847, %v2027
      %v2062 = vadd.f32 %v1848, %v2032
      %v2063 = vadd.f32 %v1849, %v2037
      %v2064 = vadd.f32 %v1850, %v2042
      %v2065 = vadd.f32 %v1851, %v2047
      %2066 = vst.msk [vmem:[#allocation3] sm:$0xff] %vm493, %v2050
      %2067 = vst.msk [vmem:[#allocation3 + $0x8] sm:$0xff] %vm493, %v2051
      %2068 = vst.msk [vmem:[#allocation3 + $0x10] sm:$0xff] %vm493, %v2052
      %2069 = vst.msk [vmem:[#allocation3 + $0x18] sm:$0xff] %vm493, %v2053
      %2070 = vst.msk [vmem:[#allocation3 + $0x20] sm:$0xff] %vm493, %v2054
      %2071 = vst.msk [vmem:[#allocation3 + $0x28] sm:$0xff] %vm493, %v2055
      %2072 = vst.msk [vmem:[#allocation3 + $0x30] sm:$0xff] %vm493, %v2056
      %2073 = vst.msk [vmem:[#allocation3 + $0x38] sm:$0xff] %vm493, %v2057
      %2074 = vst.msk [vmem:[#allocation3 + $0x40] sm:$0xff] %vm493, %v2058
      %2075 = vst.msk [vmem:[#allocation3 + $0x48] sm:$0xff] %vm493, %v2059
      %2076 = vst.msk [vmem:[#allocation3 + $0x50] sm:$0xff] %vm493, %v2060
      %2077 = vst.msk [vmem:[#allocation3 + $0x58] sm:$0xff] %vm493, %v2061
      %2078 = vst.msk [vmem:[#allocation3 + $0x60] sm:$0xff] %vm493, %v2062
      %2079 = vst.msk [vmem:[#allocation3 + $0x68] sm:$0xff] %vm493, %v2063
      %2080 = vst.msk [vmem:[#allocation3 + $0x70] sm:$0xff] %vm493, %v2064
      %2081 = vst.msk [vmem:[#allocation3 + $0x78] sm:$0xff] %vm493, %v2065
      %s2082 = scalar_lea.vmem [#allocation2], 48
      %v2083 = vld [vmem:[%s2082] sm:$0xff]
      %v2084 = vld [vmem:[%s2082 + $0x8] sm:$0xff]
      %v2085 = vld [vmem:[%s2082 + $0x18] sm:$0xff]
      %v2086 = vld [vmem:[%s2082 + $0x20] sm:$0xff]
      %v2087 = vld [vmem:[%s2082 + $0x30] sm:$0xff]
      %v2088 = vld [vmem:[%s2082 + $0x38] sm:$0xff]
      %v2089 = vld [vmem:[%s2082 + $0x48] sm:$0xff]
      %v2090 = vld [vmem:[%s2082 + $0x50] sm:$0xff]
      %v2091 = vld [vmem:[%s2082 + $0x60] sm:$0xff]
      %v2092 = vld [vmem:[%s2082 + $0x68] sm:$0xff]
      %v2093 = vld [vmem:[%s2082 + $0x78] sm:$0xff]
      %v2094 = vld [vmem:[%s2082 + $0x80] sm:$0xff]
      %v2095 = vld [vmem:[%s2082 + $0x90] sm:$0xff]
      %v2096 = vld [vmem:[%s2082 + $0x98] sm:$0xff]
      %v2097 = vld [vmem:[%s2082 + $0xa8] sm:$0xff]
      %v2098 = vld [vmem:[%s2082 + $0xb0] sm:$0xff]
      %v2099 = vld [vmem:[#allocation3] sm:$0xff]
      %v2100 = vld [vmem:[#allocation3 + $0x8] sm:$0xff]
      %v2101 = vld [vmem:[#allocation3 + $0x10] sm:$0xff]
      %v2102 = vld [vmem:[#allocation3 + $0x18] sm:$0xff]
      %v2103 = vld [vmem:[#allocation3 + $0x20] sm:$0xff]
      %v2104 = vld [vmem:[#allocation3 + $0x28] sm:$0xff]
      %v2105 = vld [vmem:[#allocation3 + $0x30] sm:$0xff]
      %v2106 = vld [vmem:[#allocation3 + $0x38] sm:$0xff]
      %v2107 = vld [vmem:[#allocation3 + $0x40] sm:$0xff]
      %v2108 = vld [vmem:[#allocation3 + $0x48] sm:$0xff]
      %v2109 = vld [vmem:[#allocation3 + $0x50] sm:$0xff]
      %v2110 = vld [vmem:[#allocation3 + $0x58] sm:$0xff]
      %v2111 = vld [vmem:[#allocation3 + $0x60] sm:$0xff]
      %v2112 = vld [vmem:[#allocation3 + $0x68] sm:$0xff]
      %v2113 = vld [vmem:[#allocation3 + $0x70] sm:$0xff]
      %v2114 = vld [vmem:[#allocation3 + $0x78] sm:$0xff]
      %s2115 = scalar_lea.vmem %s3, 24
      %v2116 = vld [vmem:[%s2115] sm:$0xf]
      %v2118 = vsel %vm411, %v2083, 0
      %v2121 = vsel %vm411, %v2084, 0
      %v2124 = vsel %vm411, %v2085, 0
      %v2127 = vsel %vm411, %v2086, 0
      %v2130 = vsel %vm411, %v2087, 0
      %v2133 = vsel %vm411, %v2088, 0
      %v2136 = vsel %vm411, %v2089, 0
      %v2139 = vsel %vm411, %v2090, 0
      %v2142 = vsel %vm411, %v2091, 0
      %v2145 = vsel %vm411, %v2092, 0
      %v2148 = vsel %vm411, %v2093, 0
      %v2151 = vsel %vm411, %v2094, 0
      %v2154 = vsel %vm411, %v2095, 0
      %v2157 = vsel %vm411, %v2096, 0
      %v2160 = vsel %vm411, %v2097, 0
      %v2163 = vsel %vm411, %v2098, 0
      %v2166 = vsel %vm591, %v2116, 0
      %2168 = vmatprep.subr.mxu0 0.0
      %2169 = vmatpush1.msra.mxu0 %v2166
      %2170 = vmatprep.subr.mxu0 0.0
      %2171 = vmatpush1.msra.mxu0 0.0
      %2172 = vmatprep.subr.mxu0 0.0
      %2173 = vmatpush1.msra.mxu0 0.0
      %2174 = vmatprep.subr.mxu0 0.0
      %2175 = vmatpush1.msra.mxu0 0.0
      %2176 = vmatprep.subr.mxu0 0.0
      %2177 = vmatpush1.msra.mxu0 0.0
      %2178 = vmatprep.subr.mxu0 0.0
      %2179 = vmatpush1.msra.mxu0 0.0
      %2180 = vmatprep.subr.mxu0 0.0
      %2181 = vmatpush1.msra.mxu0 0.0
      %2182 = vmatprep.subr.mxu0 0.0
      %2183 = vmatpush1.msra.mxu0 0.0
      %2184 = vmatprep.subr.mxu0 0.0
      %2185 = vmatpush1.msra.mxu0 0.0
      %2186 = vmatprep.subr.mxu0 0.0
      %2187 = vmatpush1.msra.mxu0 0.0
      %2188 = vmatprep.subr.mxu0 0.0
      %2189 = vmatpush1.msra.mxu0 0.0
      %2190 = vmatprep.subr.mxu0 0.0
      %2191 = vmatpush1.msra.mxu0 0.0
      %2192 = vmatprep.subr.mxu0 0.0
      %2193 = vmatpush1.msra.mxu0 0.0
      %2194 = vmatprep.subr.mxu0 0.0
      %2195 = vmatpush1.msra.mxu0 0.0
      %2196 = vmatprep.subr.mxu0 0.0
      %2197 = vmatpush1.msra.mxu0 0.0
      %2198 = vmatprep.subr.mxu0 0.0
      %2199 = vmatpush1.msra.mxu0 0.0
      %2200 = vmatprep.subr.mxu0 0.0
      %2201 = vmatpush1.msra.mxu0 0.0
      %2202 = vmatprep.subr.mxu0 0.0
      %2203 = vmatpush1.msra.mxu0 0.0
      %2204 = vmatprep.subr.mxu0 0.0
      %2205 = vmatpush1.msra.mxu0 0.0
      %2206 = vmatprep.subr.mxu0 0.0
      %2207 = vmatpush1.msra.mxu0 0.0
      %2208 = vmatprep.subr.mxu0 0.0
      %2209 = vmatpush1.msra.mxu0 0.0
      %2210 = vmatprep.subr.mxu0 0.0
      %2211 = vmatpush1.msra.mxu0 0.0
      %2212 = vmatprep.subr.mxu0 0.0
      %2213 = vmatpush1.msra.mxu0 0.0
      %2214 = vmatprep.subr.mxu0 0.0
      %2215 = vmatpush1.msra.mxu0 0.0
      %2216 = vmatprep.subr.mxu0 0.0
      %2217 = vmatpush1.msra.mxu0 0.0
      %2218 = vmatprep.subr.mxu0 0.0
      %2219 = vmatpush1.msra.mxu0 0.0
      %2220 = vmatprep.subr.mxu0 0.0
      %2221 = vmatpush1.msra.mxu0 0.0
      %2222 = vmatprep.subr.mxu0 0.0
      %2223 = vmatpush1.msra.mxu0 0.0
      %2224 = vmatprep.subr.mxu0 0.0
      %2225 = vmatpush1.msra.mxu0 0.0
      %2226 = vmatprep.subr.mxu0 0.0
      %2227 = vmatpush1.msra.mxu0 0.0
      %2228 = vmatprep.subr.mxu0 0.0
      %2229 = vmatpush1.msra.mxu0 0.0
      %2230 = vmatprep.subr.mxu0 0.0
      %2231 = vmatpush1.msra.mxu0 0.0
      %2232 = vmatprep.mubr.f32.mxu0 0.0
      %2233 = vmatmul.mubr.f32.gmra.mrb[0].mxu0 %v2118
      %v2234 = vpop.f32.mrb[0].mxu0
      %v2235 = vadd.f32 0.0, %v2234
      %v2236 = vpop.f32.mrb[0].mxu0
      %2237 = vmatprep.mubr.f32.mxu0 0.0
      %2238 = vmatmul.mubr.f32.gmra.mrb[0].mxu0 %v2121
      %v2239 = vpop.f32.mrb[0].mxu0
      %v2240 = vadd.f32 0.0, %v2239
      %v2241 = vpop.f32.mrb[0].mxu0
      %2242 = vmatprep.mubr.f32.mxu0 0.0
      %2243 = vmatmul.mubr.f32.gmra.mrb[0].mxu0 %v2124
      %v2244 = vpop.f32.mrb[0].mxu0
      %v2245 = vadd.f32 0.0, %v2244
      %v2246 = vpop.f32.mrb[0].mxu0
      %2247 = vmatprep.mubr.f32.mxu0 0.0
      %2248 = vmatmul.mubr.f32.gmra.mrb[0].mxu0 %v2127
      %v2249 = vpop.f32.mrb[0].mxu0
      %v2250 = vadd.f32 0.0, %v2249
      %v2251 = vpop.f32.mrb[0].mxu0
      %2252 = vmatprep.mubr.f32.mxu0 0.0
      %2253 = vmatmul.mubr.f32.gmra.mrb[0].mxu0 %v2130
      %v2254 = vpop.f32.mrb[0].mxu0
      %v2255 = vadd.f32 0.0, %v2254
      %v2256 = vpop.f32.mrb[0].mxu0
      %2257 = vmatprep.mubr.f32.mxu0 0.0
      %2258 = vmatmul.mubr.f32.gmra.mrb[0].mxu0 %v2133
      %v2259 = vpop.f32.mrb[0].mxu0
      %v2260 = vadd.f32 0.0, %v2259
      %v2261 = vpop.f32.mrb[0].mxu0
      %2262 = vmatprep.mubr.f32.mxu0 0.0
      %2263 = vmatmul.mubr.f32.gmra.mrb[0].mxu0 %v2136
      %v2264 = vpop.f32.mrb[0].mxu0
      %v2265 = vadd.f32 0.0, %v2264
      %v2266 = vpop.f32.mrb[0].mxu0
      %2267 = vmatprep.mubr.f32.mxu0 0.0
      %2268 = vmatmul.mubr.f32.gmra.mrb[0].mxu0 %v2139
      %v2269 = vpop.f32.mrb[0].mxu0
      %v2270 = vadd.f32 0.0, %v2269
      %v2271 = vpop.f32.mrb[0].mxu0
      %2272 = vmatprep.mubr.f32.mxu0 0.0
      %2273 = vmatmul.mubr.f32.gmra.mrb[0].mxu0 %v2142
      %v2274 = vpop.f32.mrb[0].mxu0
      %v2275 = vadd.f32 0.0, %v2274
      %v2276 = vpop.f32.mrb[0].mxu0
      %2277 = vmatprep.mubr.f32.mxu0 0.0
      %2278 = vmatmul.mubr.f32.gmra.mrb[0].mxu0 %v2145
      %v2279 = vpop.f32.mrb[0].mxu0
      %v2280 = vadd.f32 0.0, %v2279
      %v2281 = vpop.f32.mrb[0].mxu0
      %2282 = vmatprep.mubr.f32.mxu0 0.0
      %2283 = vmatmul.mubr.f32.gmra.mrb[0].mxu0 %v2148
      %v2284 = vpop.f32.mrb[0].mxu0
      %v2285 = vadd.f32 0.0, %v2284
      %v2286 = vpop.f32.mrb[0].mxu0
      %2287 = vmatprep.mubr.f32.mxu0 0.0
      %2288 = vmatmul.mubr.f32.gmra.mrb[0].mxu0 %v2151
      %v2289 = vpop.f32.mrb[0].mxu0
      %v2290 = vadd.f32 0.0, %v2289
      %v2291 = vpop.f32.mrb[0].mxu0
      %2292 = vmatprep.mubr.f32.mxu0 0.0
      %2293 = vmatmul.mubr.f32.gmra.mrb[0].mxu0 %v2154
      %v2294 = vpop.f32.mrb[0].mxu0
      %v2295 = vadd.f32 0.0, %v2294
      %v2296 = vpop.f32.mrb[0].mxu0
      %2297 = vmatprep.mubr.f32.mxu0 0.0
      %2298 = vmatmul.mubr.f32.gmra.mrb[0].mxu0 %v2157
      %v2299 = vpop.f32.mrb[0].mxu0
      %v2300 = vadd.f32 0.0, %v2299
      %v2301 = vpop.f32.mrb[0].mxu0
      %2302 = vmatprep.mubr.f32.mxu0 0.0
      %2303 = vmatmul.mubr.f32.gmra.mrb[0].mxu0 %v2160
      %v2304 = vpop.f32.mrb[0].mxu0
      %v2305 = vadd.f32 0.0, %v2304
      %v2306 = vpop.f32.mrb[0].mxu0
      %2307 = vmatprep.mubr.f32.mxu0 0.0
      %2308 = vmatmul.mubr.f32.gmra.mrb[0].mxu0 %v2163
      %v2309 = vpop.f32.mrb[0].mxu0
      %v2310 = vadd.f32 0.0, %v2309
      %v2311 = vpop.f32.mrb[0].mxu0
      %2312 = vdwg.mxu0
      %v2313 = vadd.f32 %v2099, %v2235
      %v2314 = vadd.f32 %v2100, %v2240
      %v2315 = vadd.f32 %v2101, %v2245
      %v2316 = vadd.f32 %v2102, %v2250
      %v2317 = vadd.f32 %v2103, %v2255
      %v2318 = vadd.f32 %v2104, %v2260
      %v2319 = vadd.f32 %v2105, %v2265
      %v2320 = vadd.f32 %v2106, %v2270
      %v2321 = vadd.f32 %v2107, %v2275
      %v2322 = vadd.f32 %v2108, %v2280
      %v2323 = vadd.f32 %v2109, %v2285
      %v2324 = vadd.f32 %v2110, %v2290
      %v2325 = vadd.f32 %v2111, %v2295
      %v2326 = vadd.f32 %v2112, %v2300
      %v2327 = vadd.f32 %v2113, %v2305
      %v2328 = vadd.f32 %v2114, %v2310
      %2329 = vst.msk [vmem:[#allocation3] sm:$0xff] %vm493, %v2313
      %2330 = vst.msk [vmem:[#allocation3 + $0x8] sm:$0xff] %vm493, %v2314
      %2331 = vst.msk [vmem:[#allocation3 + $0x10] sm:$0xff] %vm493, %v2315
      %2332 = vst.msk [vmem:[#allocation3 + $0x18] sm:$0xff] %vm493, %v2316
      %2333 = vst.msk [vmem:[#allocation3 + $0x20] sm:$0xff] %vm493, %v2317
      %2334 = vst.msk [vmem:[#allocation3 + $0x28] sm:$0xff] %vm493, %v2318
      %2335 = vst.msk [vmem:[#allocation3 + $0x30] sm:$0xff] %vm493, %v2319
      %2336 = vst.msk [vmem:[#allocation3 + $0x38] sm:$0xff] %vm493, %v2320
      %2337 = vst.msk [vmem:[#allocation3 + $0x40] sm:$0xff] %vm493, %v2321
      %2338 = vst.msk [vmem:[#allocation3 + $0x48] sm:$0xff] %vm493, %v2322
      %2339 = vst.msk [vmem:[#allocation3 + $0x50] sm:$0xff] %vm493, %v2323
      %2340 = vst.msk [vmem:[#allocation3 + $0x58] sm:$0xff] %vm493, %v2324
      %2341 = vst.msk [vmem:[#allocation3 + $0x60] sm:$0xff] %vm493, %v2325
      %2342 = vst.msk [vmem:[#allocation3 + $0x68] sm:$0xff] %vm493, %v2326
      %2343 = vst.msk [vmem:[#allocation3 + $0x70] sm:$0xff] %vm493, %v2327
      %2344 = vst.msk [vmem:[#allocation3 + $0x78] sm:$0xff] %vm493, %v2328
      %v2345 = vld [vmem:[%s2082 + $0x1] sm:$0xff]
      %v2346 = vld [vmem:[%s2082 + $0x9] sm:$0xff]
      %v2347 = vld [vmem:[%s2082 + $0x19] sm:$0xff]
      %v2348 = vld [vmem:[%s2082 + $0x21] sm:$0xff]
      %v2349 = vld [vmem:[%s2082 + $0x31] sm:$0xff]
      %v2350 = vld [vmem:[%s2082 + $0x39] sm:$0xff]
      %v2351 = vld [vmem:[%s2082 + $0x49] sm:$0xff]
      %v2352 = vld [vmem:[%s2082 + $0x51] sm:$0xff]
      %v2353 = vld [vmem:[%s2082 + $0x61] sm:$0xff]
      %v2354 = vld [vmem:[%s2082 + $0x69] sm:$0xff]
      %v2355 = vld [vmem:[%s2082 + $0x79] sm:$0xff]
      %v2356 = vld [vmem:[%s2082 + $0x81] sm:$0xff]
      %v2357 = vld [vmem:[%s2082 + $0x91] sm:$0xff]
      %v2358 = vld [vmem:[%s2082 + $0x99] sm:$0xff]
      %v2359 = vld [vmem:[%s2082 + $0xa9] sm:$0xff]
      %v2360 = vld [vmem:[%s2082 + $0xb1] sm:$0xff]
      %v2361 = vld [vmem:[#allocation3] sm:$0xff]
      %v2362 = vld [vmem:[#allocation3 + $0x8] sm:$0xff]
      %v2363 = vld [vmem:[#allocation3 + $0x10] sm:$0xff]
      %v2364 = vld [vmem:[#allocation3 + $0x18] sm:$0xff]
      %v2365 = vld [vmem:[#allocation3 + $0x20] sm:$0xff]
      %v2366 = vld [vmem:[#allocation3 + $0x28] sm:$0xff]
      %v2367 = vld [vmem:[#allocation3 + $0x30] sm:$0xff]
      %v2368 = vld [vmem:[#allocation3 + $0x38] sm:$0xff]
      %v2369 = vld [vmem:[#allocation3 + $0x40] sm:$0xff]
      %v2370 = vld [vmem:[#allocation3 + $0x48] sm:$0xff]
      %v2371 = vld [vmem:[#allocation3 + $0x50] sm:$0xff]
      %v2372 = vld [vmem:[#allocation3 + $0x58] sm:$0xff]
      %v2373 = vld [vmem:[#allocation3 + $0x60] sm:$0xff]
      %v2374 = vld [vmem:[#allocation3 + $0x68] sm:$0xff]
      %v2375 = vld [vmem:[#allocation3 + $0x70] sm:$0xff]
      %v2376 = vld [vmem:[#allocation3 + $0x78] sm:$0xff]
      %s2377 = scalar_lea.vmem %s3, 28
      %v2378 = vld [vmem:[%s2377] sm:$0xf]
      %v2380 = vsel %vm411, %v2345, 0
      %v2383 = vsel %vm411, %v2346, 0
      %v2386 = vsel %vm411, %v2347, 0
      %v2389 = vsel %vm411, %v2348, 0
      %v2392 = vsel %vm411, %v2349, 0
      %v2395 = vsel %vm411, %v2350, 0
      %v2398 = vsel %vm411, %v2351, 0
      %v2401 = vsel %vm411, %v2352, 0
      %v2404 = vsel %vm411, %v2353, 0
      %v2407 = vsel %vm411, %v2354, 0
      %v2410 = vsel %vm411, %v2355, 0
      %v2413 = vsel %vm411, %v2356, 0
      %v2416 = vsel %vm411, %v2357, 0
      %v2419 = vsel %vm411, %v2358, 0
      %v2422 = vsel %vm411, %v2359, 0
      %v2425 = vsel %vm411, %v2360, 0
      %v2428 = vsel %vm591, %v2378, 0
      %2430 = vmatprep.subr.mxu0 0.0
      %2431 = vmatpush1.msra.mxu0 %v2428
      %2432 = vmatprep.subr.mxu0 0.0
      %2433 = vmatpush1.msra.mxu0 0.0
      %2434 = vmatprep.subr.mxu0 0.0
      %2435 = vmatpush1.msra.mxu0 0.0
      %2436 = vmatprep.subr.mxu0 0.0
      %2437 = vmatpush1.msra.mxu0 0.0
      %2438 = vmatprep.subr.mxu0 0.0
      %2439 = vmatpush1.msra.mxu0 0.0
      %2440 = vmatprep.subr.mxu0 0.0
      %2441 = vmatpush1.msra.mxu0 0.0
      %2442 = vmatprep.subr.mxu0 0.0
      %2443 = vmatpush1.msra.mxu0 0.0
      %2444 = vmatprep.subr.mxu0 0.0
      %2445 = vmatpush1.msra.mxu0 0.0
      %2446 = vmatprep.subr.mxu0 0.0
      %2447 = vmatpush1.msra.mxu0 0.0
      %2448 = vmatprep.subr.mxu0 0.0
      %2449 = vmatpush1.msra.mxu0 0.0
      %2450 = vmatprep.subr.mxu0 0.0
      %2451 = vmatpush1.msra.mxu0 0.0
      %2452 = vmatprep.subr.mxu0 0.0
      %2453 = vmatpush1.msra.mxu0 0.0
      %2454 = vmatprep.subr.mxu0 0.0
      %2455 = vmatpush1.msra.mxu0 0.0
      %2456 = vmatprep.subr.mxu0 0.0
      %2457 = vmatpush1.msra.mxu0 0.0
      %2458 = vmatprep.subr.mxu0 0.0
      %2459 = vmatpush1.msra.mxu0 0.0
      %2460 = vmatprep.subr.mxu0 0.0
      %2461 = vmatpush1.msra.mxu0 0.0
      %2462 = vmatprep.subr.mxu0 0.0
      %2463 = vmatpush1.msra.mxu0 0.0
      %2464 = vmatprep.subr.mxu0 0.0
      %2465 = vmatpush1.msra.mxu0 0.0
      %2466 = vmatprep.subr.mxu0 0.0
      %2467 = vmatpush1.msra.mxu0 0.0
      %2468 = vmatprep.subr.mxu0 0.0
      %2469 = vmatpush1.msra.mxu0 0.0
      %2470 = vmatprep.subr.mxu0 0.0
      %2471 = vmatpush1.msra.mxu0 0.0
      %2472 = vmatprep.subr.mxu0 0.0
      %2473 = vmatpush1.msra.mxu0 0.0
      %2474 = vmatprep.subr.mxu0 0.0
      %2475 = vmatpush1.msra.mxu0 0.0
      %2476 = vmatprep.subr.mxu0 0.0
      %2477 = vmatpush1.msra.mxu0 0.0
      %2478 = vmatprep.subr.mxu0 0.0
      %2479 = vmatpush1.msra.mxu0 0.0
      %2480 = vmatprep.subr.mxu0 0.0
      %2481 = vmatpush1.msra.mxu0 0.0
      %2482 = vmatprep.subr.mxu0 0.0
      %2483 = vmatpush1.msra.mxu0 0.0
      %2484 = vmatprep.subr.mxu0 0.0
      %2485 = vmatpush1.msra.mxu0 0.0
      %2486 = vmatprep.subr.mxu0 0.0
      %2487 = vmatpush1.msra.mxu0 0.0
      %2488 = vmatprep.subr.mxu0 0.0
      %2489 = vmatpush1.msra.mxu0 0.0
      %2490 = vmatprep.subr.mxu0 0.0
      %2491 = vmatpush1.msra.mxu0 0.0
      %2492 = vmatprep.subr.mxu0 0.0
      %2493 = vmatpush1.msra.mxu0 0.0
      %2494 = vmatprep.mubr.f32.mxu0 0.0
      %2495 = vmatmul.mubr.f32.gmra.mrb[0].mxu0 %v2380
      %v2496 = vpop.f32.mrb[0].mxu0
      %v2497 = vadd.f32 0.0, %v2496
      %v2498 = vpop.f32.mrb[0].mxu0
      %2499 = vmatprep.mubr.f32.mxu0 0.0
      %2500 = vmatmul.mubr.f32.gmra.mrb[0].mxu0 %v2383
      %v2501 = vpop.f32.mrb[0].mxu0
      %v2502 = vadd.f32 0.0, %v2501
      %v2503 = vpop.f32.mrb[0].mxu0
      %2504 = vmatprep.mubr.f32.mxu0 0.0
      %2505 = vmatmul.mubr.f32.gmra.mrb[0].mxu0 %v2386
      %v2506 = vpop.f32.mrb[0].mxu0
      %v2507 = vadd.f32 0.0, %v2506
      %v2508 = vpop.f32.mrb[0].mxu0
      %2509 = vmatprep.mubr.f32.mxu0 0.0
      %2510 = vmatmul.mubr.f32.gmra.mrb[0].mxu0 %v2389
      %v2511 = vpop.f32.mrb[0].mxu0
      %v2512 = vadd.f32 0.0, %v2511
      %v2513 = vpop.f32.mrb[0].mxu0
      %2514 = vmatprep.mubr.f32.mxu0 0.0
      %2515 = vmatmul.mubr.f32.gmra.mrb[0].mxu0 %v2392
      %v2516 = vpop.f32.mrb[0].mxu0
      %v2517 = vadd.f32 0.0, %v2516
      %v2518 = vpop.f32.mrb[0].mxu0
      %2519 = vmatprep.mubr.f32.mxu0 0.0
      %2520 = vmatmul.mubr.f32.gmra.mrb[0].mxu0 %v2395
      %v2521 = vpop.f32.mrb[0].mxu0
      %v2522 = vadd.f32 0.0, %v2521
      %v2523 = vpop.f32.mrb[0].mxu0
      %2524 = vmatprep.mubr.f32.mxu0 0.0
      %2525 = vmatmul.mubr.f32.gmra.mrb[0].mxu0 %v2398
      %v2526 = vpop.f32.mrb[0].mxu0
      %v2527 = vadd.f32 0.0, %v2526
      %v2528 = vpop.f32.mrb[0].mxu0
      %2529 = vmatprep.mubr.f32.mxu0 0.0
      %2530 = vmatmul.mubr.f32.gmra.mrb[0].mxu0 %v2401
      %v2531 = vpop.f32.mrb[0].mxu0
      %v2532 = vadd.f32 0.0, %v2531
      %v2533 = vpop.f32.mrb[0].mxu0
      %2534 = vmatprep.mubr.f32.mxu0 0.0
      %2535 = vmatmul.mubr.f32.gmra.mrb[0].mxu0 %v2404
      %v2536 = vpop.f32.mrb[0].mxu0
      %v2537 = vadd.f32 0.0, %v2536
      %v2538 = vpop.f32.mrb[0].mxu0
      %2539 = vmatprep.mubr.f32.mxu0 0.0
      %2540 = vmatmul.mubr.f32.gmra.mrb[0].mxu0 %v2407
      %v2541 = vpop.f32.mrb[0].mxu0
      %v2542 = vadd.f32 0.0, %v2541
      %v2543 = vpop.f32.mrb[0].mxu0
      %2544 = vmatprep.mubr.f32.mxu0 0.0
      %2545 = vmatmul.mubr.f32.gmra.mrb[0].mxu0 %v2410
      %v2546 = vpop.f32.mrb[0].mxu0
      %v2547 = vadd.f32 0.0, %v2546
      %v2548 = vpop.f32.mrb[0].mxu0
      %2549 = vmatprep.mubr.f32.mxu0 0.0
      %2550 = vmatmul.mubr.f32.gmra.mrb[0].mxu0 %v2413
      %v2551 = vpop.f32.mrb[0].mxu0
      %v2552 = vadd.f32 0.0, %v2551
      %v2553 = vpop.f32.mrb[0].mxu0
      %2554 = vmatprep.mubr.f32.mxu0 0.0
      %2555 = vmatmul.mubr.f32.gmra.mrb[0].mxu0 %v2416
      %v2556 = vpop.f32.mrb[0].mxu0
      %v2557 = vadd.f32 0.0, %v2556
      %v2558 = vpop.f32.mrb[0].mxu0
      %2559 = vmatprep.mubr.f32.mxu0 0.0
      %2560 = vmatmul.mubr.f32.gmra.mrb[0].mxu0 %v2419
      %v2561 = vpop.f32.mrb[0].mxu0
      %v2562 = vadd.f32 0.0, %v2561
      %v2563 = vpop.f32.mrb[0].mxu0
      %2564 = vmatprep.mubr.f32.mxu0 0.0
      %2565 = vmatmul.mubr.f32.gmra.mrb[0].mxu0 %v2422
      %v2566 = vpop.f32.mrb[0].mxu0
      %v2567 = vadd.f32 0.0, %v2566
      %v2568 = vpop.f32.mrb[0].mxu0
      %2569 = vmatprep.mubr.f32.mxu0 0.0
      %2570 = vmatmul.mubr.f32.gmra.mrb[0].mxu0 %v2425
      %v2571 = vpop.f32.mrb[0].mxu0
      %v2572 = vadd.f32 0.0, %v2571
      %v2573 = vpop.f32.mrb[0].mxu0
      %2574 = vdwg.mxu0
      %v2575 = vadd.f32 %v2361, %v2497
      %v2576 = vadd.f32 %v2362, %v2502
      %v2577 = vadd.f32 %v2363, %v2507
      %v2578 = vadd.f32 %v2364, %v2512
      %v2579 = vadd.f32 %v2365, %v2517
      %v2580 = vadd.f32 %v2366, %v2522
      %v2581 = vadd.f32 %v2367, %v2527
      %v2582 = vadd.f32 %v2368, %v2532
      %v2583 = vadd.f32 %v2369, %v2537
      %v2584 = vadd.f32 %v2370, %v2542
      %v2585 = vadd.f32 %v2371, %v2547
      %v2586 = vadd.f32 %v2372, %v2552
      %v2587 = vadd.f32 %v2373, %v2557
      %v2588 = vadd.f32 %v2374, %v2562
      %v2589 = vadd.f32 %v2375, %v2567
      %v2590 = vadd.f32 %v2376, %v2572
      %2591 = vst.msk [vmem:[#allocation3] sm:$0xff] %vm493, %v2575
      %2592 = vst.msk [vmem:[#allocation3 + $0x8] sm:$0xff] %vm493, %v2576
      %2593 = vst.msk [vmem:[#allocation3 + $0x10] sm:$0xff] %vm493, %v2577
      %2594 = vst.msk [vmem:[#allocation3 + $0x18] sm:$0xff] %vm493, %v2578
      %2595 = vst.msk [vmem:[#allocation3 + $0x20] sm:$0xff] %vm493, %v2579
      %2596 = vst.msk [vmem:[#allocation3 + $0x28] sm:$0xff] %vm493, %v2580
      %2597 = vst.msk [vmem:[#allocation3 + $0x30] sm:$0xff] %vm493, %v2581
      %2598 = vst.msk [vmem:[#allocation3 + $0x38] sm:$0xff] %vm493, %v2582
      %2599 = vst.msk [vmem:[#allocation3 + $0x40] sm:$0xff] %vm493, %v2583
      %2600 = vst.msk [vmem:[#allocation3 + $0x48] sm:$0xff] %vm493, %v2584
      %2601 = vst.msk [vmem:[#allocation3 + $0x50] sm:$0xff] %vm493, %v2585
      %2602 = vst.msk [vmem:[#allocation3 + $0x58] sm:$0xff] %vm493, %v2586
      %2603 = vst.msk [vmem:[#allocation3 + $0x60] sm:$0xff] %vm493, %v2587
      %2604 = vst.msk [vmem:[#allocation3 + $0x68] sm:$0xff] %vm493, %v2588
      %2605 = vst.msk [vmem:[#allocation3 + $0x70] sm:$0xff] %vm493, %v2589
      %2606 = vst.msk [vmem:[#allocation3 + $0x78] sm:$0xff] %vm493, %v2590
      %v2607 = vld [vmem:[%s2082 + $0x2] sm:$0xff]
      %v2608 = vld [vmem:[%s2082 + $0xa] sm:$0xff]
      %v2609 = vld [vmem:[%s2082 + $0x1a] sm:$0xff]
      %v2610 = vld [vmem:[%s2082 + $0x22] sm:$0xff]
      %v2611 = vld [vmem:[%s2082 + $0x32] sm:$0xff]
      %v2612 = vld [vmem:[%s2082 + $0x3a] sm:$0xff]
      %v2613 = vld [vmem:[%s2082 + $0x4a] sm:$0xff]
      %v2614 = vld [vmem:[%s2082 + $0x52] sm:$0xff]
      %v2615 = vld [vmem:[%s2082 + $0x62] sm:$0xff]
      %v2616 = vld [vmem:[%s2082 + $0x6a] sm:$0xff]
      %v2617 = vld [vmem:[%s2082 + $0x7a] sm:$0xff]
      %v2618 = vld [vmem:[%s2082 + $0x82] sm:$0xff]
      %v2619 = vld [vmem:[%s2082 + $0x92] sm:$0xff]
      %v2620 = vld [vmem:[%s2082 + $0x9a] sm:$0xff]
      %v2621 = vld [vmem:[%s2082 + $0xaa] sm:$0xff]
      %v2622 = vld [vmem:[%s2082 + $0xb2] sm:$0xff]
      %v2623 = vld [vmem:[#allocation3] sm:$0xff]
      %v2624 = vld [vmem:[#allocation3 + $0x8] sm:$0xff]
      %v2625 = vld [vmem:[#allocation3 + $0x10] sm:$0xff]
      %v2626 = vld [vmem:[#allocation3 + $0x18] sm:$0xff]
      %v2627 = vld [vmem:[#allocation3 + $0x20] sm:$0xff]
      %v2628 = vld [vmem:[#allocation3 + $0x28] sm:$0xff]
      %v2629 = vld [vmem:[#allocation3 + $0x30] sm:$0xff]
      %v2630 = vld [vmem:[#allocation3 + $0x38] sm:$0xff]
      %v2631 = vld [vmem:[#allocation3 + $0x40] sm:$0xff]
      %v2632 = vld [vmem:[#allocation3 + $0x48] sm:$0xff]
      %v2633 = vld [vmem:[#allocation3 + $0x50] sm:$0xff]
      %v2634 = vld [vmem:[#allocation3 + $0x58] sm:$0xff]
      %v2635 = vld [vmem:[#allocation3 + $0x60] sm:$0xff]
      %v2636 = vld [vmem:[#allocation3 + $0x68] sm:$0xff]
      %v2637 = vld [vmem:[#allocation3 + $0x70] sm:$0xff]
      %v2638 = vld [vmem:[#allocation3 + $0x78] sm:$0xff]
      %s2639 = scalar_lea.vmem %s3, 32
      %v2640 = vld [vmem:[%s2639] sm:$0xf]
      %v2642 = vsel %vm411, %v2607, 0
      %v2645 = vsel %vm411, %v2608, 0
      %v2648 = vsel %vm411, %v2609, 0
      %v2651 = vsel %vm411, %v2610, 0
      %v2654 = vsel %vm411, %v2611, 0
      %v2657 = vsel %vm411, %v2612, 0
      %v2660 = vsel %vm411, %v2613, 0
      %v2663 = vsel %vm411, %v2614, 0
      %v2666 = vsel %vm411, %v2615, 0
      %v2669 = vsel %vm411, %v2616, 0
      %v2672 = vsel %vm411, %v2617, 0
      %v2675 = vsel %vm411, %v2618, 0
      %v2678 = vsel %vm411, %v2619, 0
      %v2681 = vsel %vm411, %v2620, 0
      %v2684 = vsel %vm411, %v2621, 0
      %v2687 = vsel %vm411, %v2622, 0
      %v2690 = vsel %vm591, %v2640, 0
      %2692 = vmatprep.subr.mxu0 0.0
      %2693 = vmatpush1.msra.mxu0 %v2690
      %2694 = vmatprep.subr.mxu0 0.0
      %2695 = vmatpush1.msra.mxu0 0.0
      %2696 = vmatprep.subr.mxu0 0.0
      %2697 = vmatpush1.msra.mxu0 0.0
      %2698 = vmatprep.subr.mxu0 0.0
      %2699 = vmatpush1.msra.mxu0 0.0
      %2700 = vmatprep.subr.mxu0 0.0
      %2701 = vmatpush1.msra.mxu0 0.0
      %2702 = vmatprep.subr.mxu0 0.0
      %2703 = vmatpush1.msra.mxu0 0.0
      %2704 = vmatprep.subr.mxu0 0.0
      %2705 = vmatpush1.msra.mxu0 0.0
      %2706 = vmatprep.subr.mxu0 0.0
      %2707 = vmatpush1.msra.mxu0 0.0
      %2708 = vmatprep.subr.mxu0 0.0
      %2709 = vmatpush1.msra.mxu0 0.0
      %2710 = vmatprep.subr.mxu0 0.0
      %2711 = vmatpush1.msra.mxu0 0.0
      %2712 = vmatprep.subr.mxu0 0.0
      %2713 = vmatpush1.msra.mxu0 0.0
      %2714 = vmatprep.subr.mxu0 0.0
      %2715 = vmatpush1.msra.mxu0 0.0
      %2716 = vmatprep.subr.mxu0 0.0
      %2717 = vmatpush1.msra.mxu0 0.0
      %2718 = vmatprep.subr.mxu0 0.0
      %2719 = vmatpush1.msra.mxu0 0.0
      %2720 = vmatprep.subr.mxu0 0.0
      %2721 = vmatpush1.msra.mxu0 0.0
      %2722 = vmatprep.subr.mxu0 0.0
      %2723 = vmatpush1.msra.mxu0 0.0
      %2724 = vmatprep.subr.mxu0 0.0
      %2725 = vmatpush1.msra.mxu0 0.0
      %2726 = vmatprep.subr.mxu0 0.0
      %2727 = vmatpush1.msra.mxu0 0.0
      %2728 = vmatprep.subr.mxu0 0.0
      %2729 = vmatpush1.msra.mxu0 0.0
      %2730 = vmatprep.subr.mxu0 0.0
      %2731 = vmatpush1.msra.mxu0 0.0
      %2732 = vmatprep.subr.mxu0 0.0
      %2733 = vmatpush1.msra.mxu0 0.0
      %2734 = vmatprep.subr.mxu0 0.0
      %2735 = vmatpush1.msra.mxu0 0.0
      %2736 = vmatprep.subr.mxu0 0.0
      %2737 = vmatpush1.msra.mxu0 0.0
      %2738 = vmatprep.subr.mxu0 0.0
      %2739 = vmatpush1.msra.mxu0 0.0
      %2740 = vmatprep.subr.mxu0 0.0
      %2741 = vmatpush1.msra.mxu0 0.0
      %2742 = vmatprep.subr.mxu0 0.0
      %2743 = vmatpush1.msra.mxu0 0.0
      %2744 = vmatprep.subr.mxu0 0.0
      %2745 = vmatpush1.msra.mxu0 0.0
      %2746 = vmatprep.subr.mxu0 0.0
      %2747 = vmatpush1.msra.mxu0 0.0
      %2748 = vmatprep.subr.mxu0 0.0
      %2749 = vmatpush1.msra.mxu0 0.0
      %2750 = vmatprep.subr.mxu0 0.0
      %2751 = vmatpush1.msra.mxu0 0.0
      %2752 = vmatprep.subr.mxu0 0.0
      %2753 = vmatpush1.msra.mxu0 0.0
      %2754 = vmatprep.subr.mxu0 0.0
      %2755 = vmatpush1.msra.mxu0 0.0
      %2756 = vmatprep.mubr.f32.mxu0 0.0
      %2757 = vmatmul.mubr.f32.gmra.mrb[0].mxu0 %v2642
      %v2758 = vpop.f32.mrb[0].mxu0
      %v2759 = vadd.f32 0.0, %v2758
      %v2760 = vpop.f32.mrb[0].mxu0
      %2761 = vmatprep.mubr.f32.mxu0 0.0
      %2762 = vmatmul.mubr.f32.gmra.mrb[0].mxu0 %v2645
      %v2763 = vpop.f32.mrb[0].mxu0
      %v2764 = vadd.f32 0.0, %v2763
      %v2765 = vpop.f32.mrb[0].mxu0
      %2766 = vmatprep.mubr.f32.mxu0 0.0
      %2767 = vmatmul.mubr.f32.gmra.mrb[0].mxu0 %v2648
      %v2768 = vpop.f32.mrb[0].mxu0
      %v2769 = vadd.f32 0.0, %v2768
      %v2770 = vpop.f32.mrb[0].mxu0
      %2771 = vmatprep.mubr.f32.mxu0 0.0
      %2772 = vmatmul.mubr.f32.gmra.mrb[0].mxu0 %v2651
      %v2773 = vpop.f32.mrb[0].mxu0
      %v2774 = vadd.f32 0.0, %v2773
      %v2775 = vpop.f32.mrb[0].mxu0
      %2776 = vmatprep.mubr.f32.mxu0 0.0
      %2777 = vmatmul.mubr.f32.gmra.mrb[0].mxu0 %v2654
      %v2778 = vpop.f32.mrb[0].mxu0
      %v2779 = vadd.f32 0.0, %v2778
      %v2780 = vpop.f32.mrb[0].mxu0
      %2781 = vmatprep.mubr.f32.mxu0 0.0
      %2782 = vmatmul.mubr.f32.gmra.mrb[0].mxu0 %v2657
      %v2783 = vpop.f32.mrb[0].mxu0
      %v2784 = vadd.f32 0.0, %v2783
      %v2785 = vpop.f32.mrb[0].mxu0
      %2786 = vmatprep.mubr.f32.mxu0 0.0
      %2787 = vmatmul.mubr.f32.gmra.mrb[0].mxu0 %v2660
      %v2788 = vpop.f32.mrb[0].mxu0
      %v2789 = vadd.f32 0.0, %v2788
      %v2790 = vpop.f32.mrb[0].mxu0
      %2791 = vmatprep.mubr.f32.mxu0 0.0
      %2792 = vmatmul.mubr.f32.gmra.mrb[0].mxu0 %v2663
      %v2793 = vpop.f32.mrb[0].mxu0
      %v2794 = vadd.f32 0.0, %v2793
      %v2795 = vpop.f32.mrb[0].mxu0
      %2796 = vmatprep.mubr.f32.mxu0 0.0
      %2797 = vmatmul.mubr.f32.gmra.mrb[0].mxu0 %v2666
      %v2798 = vpop.f32.mrb[0].mxu0
      %v2799 = vadd.f32 0.0, %v2798
      %v2800 = vpop.f32.mrb[0].mxu0
      %2801 = vmatprep.mubr.f32.mxu0 0.0
      %2802 = vmatmul.mubr.f32.gmra.mrb[0].mxu0 %v2669
      %v2803 = vpop.f32.mrb[0].mxu0
      %v2804 = vadd.f32 0.0, %v2803
      %v2805 = vpop.f32.mrb[0].mxu0
      %2806 = vmatprep.mubr.f32.mxu0 0.0
      %2807 = vmatmul.mubr.f32.gmra.mrb[0].mxu0 %v2672
      %v2808 = vpop.f32.mrb[0].mxu0
      %v2809 = vadd.f32 0.0, %v2808
      %v2810 = vpop.f32.mrb[0].mxu0
      %2811 = vmatprep.mubr.f32.mxu0 0.0
      %2812 = vmatmul.mubr.f32.gmra.mrb[0].mxu0 %v2675
      %v2813 = vpop.f32.mrb[0].mxu0
      %v2814 = vadd.f32 0.0, %v2813
      %v2815 = vpop.f32.mrb[0].mxu0
      %2816 = vmatprep.mubr.f32.mxu0 0.0
      %2817 = vmatmul.mubr.f32.gmra.mrb[0].mxu0 %v2678
      %v2818 = vpop.f32.mrb[0].mxu0
      %v2819 = vadd.f32 0.0, %v2818
      %v2820 = vpop.f32.mrb[0].mxu0
      %2821 = vmatprep.mubr.f32.mxu0 0.0
      %2822 = vmatmul.mubr.f32.gmra.mrb[0].mxu0 %v2681
      %v2823 = vpop.f32.mrb[0].mxu0
      %v2824 = vadd.f32 0.0, %v2823
      %v2825 = vpop.f32.mrb[0].mxu0
      %2826 = vmatprep.mubr.f32.mxu0 0.0
      %2827 = vmatmul.mubr.f32.gmra.mrb[0].mxu0 %v2684
      %v2828 = vpop.f32.mrb[0].mxu0
      %v2829 = vadd.f32 0.0, %v2828
      %v2830 = vpop.f32.mrb[0].mxu0
      %2831 = vmatprep.mubr.f32.mxu0 0.0
      %2832 = vmatmul.mubr.f32.gmra.mrb[0].mxu0 %v2687
      %v2833 = vpop.f32.mrb[0].mxu0
      %v2834 = vadd.f32 0.0, %v2833
      %v2835 = vpop.f32.mrb[0].mxu0
      %2836 = vdwg.mxu0
      %v2837 = vadd.f32 %v2623, %v2759
      %v2838 = vadd.f32 %v2624, %v2764
      %v2839 = vadd.f32 %v2625, %v2769
      %v2840 = vadd.f32 %v2626, %v2774
      %v2841 = vadd.f32 %v2627, %v2779
      %v2842 = vadd.f32 %v2628, %v2784
      %v2843 = vadd.f32 %v2629, %v2789
      %v2844 = vadd.f32 %v2630, %v2794
      %v2845 = vadd.f32 %v2631, %v2799
      %v2846 = vadd.f32 %v2632, %v2804
      %v2847 = vadd.f32 %v2633, %v2809
      %v2848 = vadd.f32 %v2634, %v2814
      %v2849 = vadd.f32 %v2635, %v2819
      %v2850 = vadd.f32 %v2636, %v2824
      %v2851 = vadd.f32 %v2637, %v2829
      %v2852 = vadd.f32 %v2638, %v2834
      %2853 = vst.msk [vmem:[#allocation3] sm:$0xff] %vm493, %v2837
      %2854 = vst.msk [vmem:[#allocation3 + $0x8] sm:$0xff] %vm493, %v2838
      %2855 = vst.msk [vmem:[#allocation3 + $0x10] sm:$0xff] %vm493, %v2839
      %2856 = vst.msk [vmem:[#allocation3 + $0x18] sm:$0xff] %vm493, %v2840
      %2857 = vst.msk [vmem:[#allocation3 + $0x20] sm:$0xff] %vm493, %v2841
      %2858 = vst.msk [vmem:[#allocation3 + $0x28] sm:$0xff] %vm493, %v2842
      %2859 = vst.msk [vmem:[#allocation3 + $0x30] sm:$0xff] %vm493, %v2843
      %2860 = vst.msk [vmem:[#allocation3 + $0x38] sm:$0xff] %vm493, %v2844
      %2861 = vst.msk [vmem:[#allocation3 + $0x40] sm:$0xff] %vm493, %v2845
      %2862 = vst.msk [vmem:[#allocation3 + $0x48] sm:$0xff] %vm493, %v2846
      %2863 = vst.msk [vmem:[#allocation3 + $0x50] sm:$0xff] %vm493, %v2847
      %2864 = vst.msk [vmem:[#allocation3 + $0x58] sm:$0xff] %vm493, %v2848
      %2865 = vst.msk [vmem:[#allocation3 + $0x60] sm:$0xff] %vm493, %v2849
      %2866 = vst.msk [vmem:[#allocation3 + $0x68] sm:$0xff] %vm493, %v2850
      %2867 = vst.msk [vmem:[#allocation3 + $0x70] sm:$0xff] %vm493, %v2851
      %2868 = vst.msk [vmem:[#allocation3 + $0x78] sm:$0xff] %vm493, %v2852
      %v2869 = vld [vmem:[#allocation3] sm:$0xff]
      %v2870 = vld [vmem:[#allocation3 + $0x8] sm:$0xff]
      %v2871 = vld [vmem:[#allocation3 + $0x10] sm:$0xff]
      %v2872 = vld [vmem:[#allocation3 + $0x18] sm:$0xff]
      %v2873 = vld [vmem:[#allocation3 + $0x20] sm:$0xff]
      %v2874 = vld [vmem:[#allocation3 + $0x28] sm:$0xff]
      %v2875 = vld [vmem:[#allocation3 + $0x30] sm:$0xff]
      %v2876 = vld [vmem:[#allocation3 + $0x38] sm:$0xff]
      %v2877 = vld [vmem:[#allocation3 + $0x40] sm:$0xff]
      %v2878 = vld [vmem:[#allocation3 + $0x48] sm:$0xff]
      %v2879 = vld [vmem:[#allocation3 + $0x50] sm:$0xff]
      %v2880 = vld [vmem:[#allocation3 + $0x58] sm:$0xff]
      %v2881 = vld [vmem:[#allocation3 + $0x60] sm:$0xff]
      %v2882 = vld [vmem:[#allocation3 + $0x68] sm:$0xff]
      %v2883 = vld [vmem:[#allocation3 + $0x70] sm:$0xff]
      %v2884 = vld [vmem:[#allocation3 + $0x78] sm:$0xff]
      %v2885 = vsel %vm493, %v2869, 0.0
      %v2886 = vsel %vm493, %v2870, 0.0
      %v2887 = vadd.f32 %v2885, %v2886
      %v2888 = vsel %vm493, %v2871, 0.0
      %v2889 = vadd.f32 %v2887, %v2888
      %v2890 = vsel %vm493, %v2872, 0.0
      %v2891 = vadd.f32 %v2889, %v2890
      %v2892 = vsel %vm493, %v2873, 0.0
      %v2893 = vadd.f32 %v2891, %v2892
      %v2894 = vsel %vm493, %v2874, 0.0
      %v2895 = vadd.f32 %v2893, %v2894
      %v2896 = vsel %vm493, %v2875, 0.0
      %v2897 = vadd.f32 %v2895, %v2896
      %v2898 = vsel %vm493, %v2876, 0.0
      %v2899 = vadd.f32 %v2897, %v2898
      %v2900 = vsel %vm493, %v2877, 0.0
      %v2901 = vadd.f32 %v2899, %v2900
      %v2902 = vsel %vm493, %v2878, 0.0
      %v2903 = vadd.f32 %v2901, %v2902
      %v2904 = vsel %vm493, %v2879, 0.0
      %v2905 = vadd.f32 %v2903, %v2904
      %v2906 = vsel %vm493, %v2880, 0.0
      %v2907 = vadd.f32 %v2905, %v2906
      %v2908 = vsel %vm493, %v2881, 0.0
      %v2909 = vadd.f32 %v2907, %v2908
      %v2910 = vsel %vm493, %v2882, 0.0
      %v2911 = vadd.f32 %v2909, %v2910
      %v2912 = vsel %vm493, %v2883, 0.0
      %v2913 = vadd.f32 %v2911, %v2912
      %v2914 = vsel %vm493, %v2884, 0.0
      %v2915 = vadd.f32 %v2913, %v2914
      %v2916 = vrot.slane %v2915, 4
      %v2917 = vadd.f32 %v2915, %v2916
      %v2918 = vrot.slane %v2917, 2
      %v2919 = vadd.f32 %v2917, %v2918
      %v2920 = vrot.slane %v2919, 1
      %v2921 = vadd.f32 %v2919, %v2920
      %vm2922 = vcmask 57344
      %2923 = vst.msk [vmem:[%s408] sm:$0x1] %vm2922, %v2921
      %v2924 = vmul.f32 %v2869, %v2869
      %v2925 = vmul.f32 %v2870, %v2870
      %v2926 = vmul.f32 %v2871, %v2871
      %v2927 = vmul.f32 %v2872, %v2872
      %v2928 = vmul.f32 %v2873, %v2873
      %v2929 = vmul.f32 %v2874, %v2874
      %v2930 = vmul.f32 %v2875, %v2875
      %v2931 = vmul.f32 %v2876, %v2876
      %v2932 = vmul.f32 %v2877, %v2877
      %v2933 = vmul.f32 %v2878, %v2878
      %v2934 = vmul.f32 %v2879, %v2879
      %v2935 = vmul.f32 %v2880, %v2880
      %v2936 = vmul.f32 %v2881, %v2881
      %v2937 = vmul.f32 %v2882, %v2882
      %v2938 = vmul.f32 %v2883, %v2883
      %v2939 = vmul.f32 %v2884, %v2884
      %v2940 = vsel %vm493, %v2924, 0.0
      %v2941 = vsel %vm493, %v2925, 0.0
      %v2942 = vadd.f32 %v2940, %v2941
      %v2943 = vsel %vm493, %v2926, 0.0
      %v2944 = vadd.f32 %v2942, %v2943
      %v2945 = vsel %vm493, %v2927, 0.0
      %v2946 = vadd.f32 %v2944, %v2945
      %v2947 = vsel %vm493, %v2928, 0.0
      %v2948 = vadd.f32 %v2946, %v2947
      %v2949 = vsel %vm493, %v2929, 0.0
      %v2950 = vadd.f32 %v2948, %v2949
      %v2951 = vsel %vm493, %v2930, 0.0
      %v2952 = vadd.f32 %v2950, %v2951
      %v2953 = vsel %vm493, %v2931, 0.0
      %v2954 = vadd.f32 %v2952, %v2953
      %v2955 = vsel %vm493, %v2932, 0.0
      %v2956 = vadd.f32 %v2954, %v2955
      %v2957 = vsel %vm493, %v2933, 0.0
      %v2958 = vadd.f32 %v2956, %v2957
      %v2959 = vsel %vm493, %v2934, 0.0
      %v2960 = vadd.f32 %v2958, %v2959
      %v2961 = vsel %vm493, %v2935, 0.0
      %v2962 = vadd.f32 %v2960, %v2961
      %v2963 = vsel %vm493, %v2936, 0.0
      %v2964 = vadd.f32 %v2962, %v2963
      %v2965 = vsel %vm493, %v2937, 0.0
      %v2966 = vadd.f32 %v2964, %v2965
      %v2967 = vsel %vm493, %v2938, 0.0
      %v2968 = vadd.f32 %v2966, %v2967
      %v2969 = vsel %vm493, %v2939, 0.0
      %v2970 = vadd.f32 %v2968, %v2969
      %v2971 = vrot.slane %v2970, 4
      %v2972 = vadd.f32 %v2970, %v2971
      %v2973 = vrot.slane %v2972, 2
      %v2974 = vadd.f32 %v2972, %v2973
      %v2975 = vrot.slane %v2974, 1
      %v2976 = vadd.f32 %v2974, %v2975
      %2977 = vst.msk [vmem:[%s408 + $0x1] sm:$0x1] %vm2922, %v2976
      %2978 = vst.msk [vmem:[%s400] sm:$0xff] %vm493, %v2869
      %2979 = vst.msk [vmem:[%s400 + $0x8] sm:$0xff] %vm493, %v2870
      %2980 = vst.msk [vmem:[%s400 + $0x10] sm:$0xff] %vm493, %v2871
      %2981 = vst.msk [vmem:[%s400 + $0x18] sm:$0xff] %vm493, %v2872
      %2982 = vst.msk [vmem:[%s400 + $0x20] sm:$0xff] %vm493, %v2873
      %2983 = vst.msk [vmem:[%s400 + $0x28] sm:$0xff] %vm493, %v2874
      %2984 = vst.msk [vmem:[%s400 + $0x30] sm:$0xff] %vm493, %v2875
      %2985 = vst.msk [vmem:[%s400 + $0x38] sm:$0xff] %vm493, %v2876
      %2986 = vst.msk [vmem:[%s400 + $0x40] sm:$0xff] %vm493, %v2877
      %2987 = vst.msk [vmem:[%s400 + $0x48] sm:$0xff] %vm493, %v2878
      %2988 = vst.msk [vmem:[%s400 + $0x50] sm:$0xff] %vm493, %v2879
      %2989 = vst.msk [vmem:[%s400 + $0x58] sm:$0xff] %vm493, %v2880
      %2990 = vst.msk [vmem:[%s400 + $0x60] sm:$0xff] %vm493, %v2881
      %2991 = vst.msk [vmem:[%s400 + $0x68] sm:$0xff] %vm493, %v2882
      %2992 = vst.msk [vmem:[%s400 + $0x70] sm:$0xff] %vm493, %v2883
      %2993 = vst.msk [vmem:[%s400 + $0x78] sm:$0xff] %vm493, %v2884
      %s2994 = smul.u32 %s21, 2
      %s2995 = sadd.s32 %s2994, %s22
      %p2996 = scmp.lt.s32.totalorder %s2995, 3
      %s2997 = scalar_select %p2996, %s2995, 3
      %s2998 = smul.addr %s2997, 16
      %s2999 = smul.addr %s2998, 8
      %s3000 = scalar_lea.vmem %s4, %s2999
      %s3001 = smul.u32 %s21, 2
      %s3002 = sadd.s32 %s3001, %s22
      %p3003 = scmp.lt.s32.totalorder %s3002, 3
      %s3004 = scalar_select %p3003, %s3002, 3
      %s3005 = smul.addr %s3004, 2
      %s3006 = scalar_lea.vmem %s5, %s3005
      // Predicated region
      $region45: #{block_forward.2} parent=35 // pred_check
        %p3007 = pneg %p172
      $region46: #{block_forward.2} parent=35 // pred_check_branch
        %3009 = sbr.rel (%p3007) target = $region48
      $region47: #{block_forward.2} parent=35 // pred_region
        %s3010 = smul.u32 %s21, 2
        %s3011 = sadd.s32 %s3010, %s22
      $region48: #{block_forward.2} parent=35 // pred_fallthru
        _
      // Predicated region
      $region49: #{block_forward.2} parent=35 // pred_check
        %p3012 = pneg %p202
      $region50: #{block_forward.2} parent=35 // pred_check_branch
        %3014 = sbr.rel (%p3012) target = $region52
      $region51: #{block_forward.2} parent=35 // pred_region
        %s3015 = smul.u32 %s21, 2
        %s3016 = sadd.s32 %s3015, %s22
      $region52: #{block_forward.2} parent=35 // pred_fallthru
        _
    $region36: #{block_forward.2} parent=5 // pred_fallthru
      _
    %p3017 = scmp.le.s32.totalorder 2, %s12
    // Predicated region
    $region53: #{block_forward.2} parent=5 // pred_check
      %p3018 = pneg %p3017
    $region54: #{block_forward.2} parent=5 // pred_check_branch
      %3020 = sbr.rel (%p3018) target = $region56
    $region55: #{block_forward.2} parent=5 // pred_region
      %s3021 = ssub.s32 %s12, 2
      // Predicated region
      $region57: #{block_forward.2} parent=55 // pred_check
        %p3022 = pneg %p178
      $region58: #{block_forward.2} parent=55 // pred_check_branch
        %3024 = sbr.rel (%p3022) target = $region60
      $region59: #{block_forward.2} parent=55 // pred_region
        %s3025 = smul.u32 %s23, 2
        %s3026 = sadd.s32 %s3025, %s24
        %p3027 = scmp.lt.s32.totalorder %s3026, 3
        %s3028 = scalar_select %p3027, %s3026, 3
        %s3029 = smul.addr %s3028, 16
        %s3030 = smul.addr %s3029, 8
        %s3031 = scalar_lea.vmem %s4, %s3030
      $region60: #{block_forward.2} parent=55 // pred_fallthru
        _
      // Predicated region
      $region61: #{block_forward.2} parent=55 // pred_check
        %p3032 = pneg %p208
      $region62: #{block_forward.2} parent=55 // pred_check_branch
        %3034 = sbr.rel (%p3032) target = $region64
      $region63: #{block_forward.2} parent=55 // pred_region
        %s3035 = smul.u32 %s23, 2
        %s3036 = sadd.s32 %s3035, %s24
        %p3037 = scmp.lt.s32.totalorder %s3036, 3
        %s3038 = scalar_select %p3037, %s3036, 3
        %s3039 = smul.addr %s3038, 2
        %s3040 = scalar_lea.vmem %s5, %s3039
      $region64: #{block_forward.2} parent=55 // pred_fallthru
        _
    $region56: #{block_forward.2} parent=5 // pred_fallthru
      _
  $region6: #{block_forward.2} parent=0 // loop_footer
    %s16 = sadd.s32 1, %s12
  $region7: #{block_forward.2} parent=0 // loop_footer_branch
    %11 = sbr.rel target = $region3
  $region8: #{block_forward.2} parent=0 // loop_exit
    _

</llo_original>
